<compile_context>
chip_gen: v7x
topology: tpu7x:2x2x1
jax: 0.10.0
libtpu: 0.0.40
codegen_flags: <defaults>
</compile_context>

<pallas_src>
import functools

import jax
import jax.numpy as jnp
from jax import lax
from jax.experimental import pallas as pl
from jax.experimental.pallas import tpu as pltpu

# ---- small deterministic config (mistral-nano-like, lane-friendly) ----
N_LAYER    = 4
N_HEAD     = 8
N_KV_HEAD  = 2
HEAD_DIM   = 128          # full lane width
EMBD_DIM   = 32
HIDDEN_DIM = 128
VOCAB_SIZE = 3072         # lane-dense (multiple of 128), ~nano's 3000
CXT_SIZE   = 32
NORM_EPS   = 1e-5
ROPE_THETA = 10000.0

REP      = N_HEAD // N_KV_HEAD
QKV_DIM  = (N_HEAD + 2 * N_KV_HEAD) * HEAD_DIM     # 1536, one fused matmul


# ---------------- kernel helpers (traced inside the kernel) ----------------
def _rmsnorm(x, w, eps):
    ms = jnp.mean(x * x, axis=-1, keepdims=True)
    return x * lax.rsqrt(ms + eps) * w


# ---------------- fused transformer kernel (grid over layers) --------------
def fused_mistral_kernel(idx_ref,                         # scalar prefetch (SMEM)
                         wte_ref,                         # HBM (pl.ANY)
                         cosq_ref, sinq_ref, cosk_ref, sink_ref,
                         anw_ref, wqkv_ref, wo_ref,
                         fnw_ref, w13_ref, w2_ref,
                         lnf_ref, wlm_ref,
                         out_ref,
                         x_scr, mask_scr, emb_sem,
                         *, n_head, n_kv, head_dim, hidden, eps):
    l = pl.program_id(0)
    n_layer = pl.num_programs(0)
    t, d = x_scr.shape
    rep = n_head // n_kv
    half = head_dim // 2

    # ---- first grid step: embedding row gather (DMA from HBM) + mask ----
    @pl.when(l == 0)
    def _():
        # idx lives in SMEM (scalar prefetch); wte stays in HBM. Gather the
        # t token rows straight into the f32 residual scratch (no one-hot,
        # no VMEM-resident vocab table). Dropout after wte is eval-identity.
        for i in range(t):
            cp = pltpu.make_async_copy(
                wte_ref.at[pl.ds(idx_ref[i], 1), :],
                x_scr.at[pl.ds(i, 1), :],
                emb_sem)
            cp.start()
            cp.wait()
        # Additive causal mask, precomputed once in the grouped (rep*t, t)
        # query layout (query position of grouped row m is m % t).
        qpos = lax.broadcasted_iota(jnp.int32, (rep * t, t), 0) % t
        kpos = lax.broadcasted_iota(jnp.int32, (rep * t, t), 1)
        mask_scr[...] = jnp.where(kpos <= qpos, 0.0, -1e30).astype(jnp.float32)

    x = x_scr[...]                                      # (t, d) f32 residual

    # ---------------- attention (fused QKV, grouped GQA heads) -------------
    hn = _rmsnorm(x, anw_ref[0], eps).astype(jnp.bfloat16)          # (t, d)
    qkv = jnp.dot(hn, wqkv_ref[0],
                  preferred_element_type=jnp.float32)               # (t, 1536)

    # Split into heads with lane-aligned slices; group queries by KV head so
    # the scores matmul has M = rep*t (no KV replication in vregs).
    k_off = n_head * head_dim
    v_off = k_off + n_kv * head_dim
    qg = jnp.stack([
        jnp.concatenate(
            [qkv[:, (g * rep + r) * head_dim:(g * rep + r + 1) * head_dim]
             for r in range(rep)], axis=0)
        for g in range(n_kv)], axis=0)                  # (n_kv, rep*t, hd)
    kg = jnp.stack(
        [qkv[:, k_off + g * head_dim:k_off + (g + 1) * head_dim]
         for g in range(n_kv)], axis=0)                 # (n_kv, t, hd)
    vg = jnp.stack(
        [qkv[:, v_off + g * head_dim:v_off + (g + 1) * head_dim]
         for g in range(n_kv)], axis=0)                 # (n_kv, t, hd)

    # rotate-half RoPE (XLU roll); sign folded into sin, attention scale
    # folded into the q tables in the wrapper.
    qg = qg * cosq_ref[...][None] + pltpu.roll(qg, shift=half, axis=2) * sinq_ref[...][None]
    kg = kg * cosk_ref[...][None] + pltpu.roll(kg, shift=half, axis=2) * sink_ref[...][None]

    s = jnp.einsum('gmd,gkd->gmk',
                   qg.astype(jnp.bfloat16), kg.astype(jnp.bfloat16),
                   preferred_element_type=jnp.float32)   # (n_kv, rep*t, t)
    s = s + mask_scr[...][None]
    m = jnp.max(s, axis=-1, keepdims=True)
    p = jnp.exp(s - m)                                   # unnormalized (f32)
    lsum = jnp.sum(p, axis=-1, keepdims=True)
    ctx = jnp.einsum('gmk,gkd->gmd',
                     p.astype(jnp.bfloat16), vg.astype(jnp.bfloat16),
                     preferred_element_type=jnp.float32) # (n_kv, rep*t, hd)
    ctx = ctx * pl.reciprocal(lsum, approx=True)         # deferred softmax norm

    # Re-pack lane-dense (t, H*HD) so the cross-head sum rides the MXU K dim.
    ctx_flat = jnp.concatenate(
        [ctx[g, r * t:(r + 1) * t, :] for g in range(n_kv) for r in range(rep)],
        axis=1).astype(jnp.bfloat16)                     # (t, H*HD)
    x1 = x + jnp.dot(ctx_flat, wo_ref[0], preferred_element_type=jnp.float32)

    # ---------------- SwiGLU MLP (fused gate|up projection) ----------------
    h2 = _rmsnorm(x1, fnw_ref[0], eps).astype(jnp.bfloat16)
    h13 = jnp.dot(h2, w13_ref[0], preferred_element_type=jnp.float32)  # (t, 2*hidden)
    gate = h13[:, :hidden]
    up = h13[:, hidden:]
    act = (gate * jax.nn.sigmoid(gate) * up).astype(jnp.bfloat16)
    x2 = x1 + jnp.dot(act, w2_ref[0], preferred_element_type=jnp.float32)

    x_scr[...] = x2

    # ---- final RMSNorm + lm_head fused into the last grid step ----
    @pl.when(l == n_layer - 1)
    def _():
        hf = _rmsnorm(x2, lnf_ref[...], eps).astype(jnp.bfloat16)
        out_ref[...] = jnp.dot(hf, wlm_ref[...],
                               preferred_element_type=jnp.float32)


# ---------------- wrapper ----------------
def _rope_tables(t):
    # rotate-half convention; the +/-1 rotate-half sign is folded into sin.
    inv_freq = 1.0 / (ROPE_THETA ** (jnp.arange(0, HEAD_DIM, 2,
                                                 dtype=jnp.float32) / HEAD_DIM))
    pos = jnp.arange(t, dtype=jnp.float32)
    ang = pos[:, None] * inv_freq[None, :]                    # (t, hd/2)
    cos = jnp.concatenate([jnp.cos(ang), jnp.cos(ang)], axis=-1)
    sin = jnp.concatenate([-jnp.sin(ang), jnp.sin(ang)], axis=-1)
    return cos.astype(jnp.float32), sin.astype(jnp.float32)


def mistral_forward(idx, params):
    b, t = idx.shape
    assert b == 1, 'Only batch size 1 is supported'
    assert t <= CXT_SIZE

    scale = HEAD_DIM ** -0.5
    cos, sin = _rope_tables(t)
    # grouped-query RoPE tables (row m <-> position m % t), with the 1/sqrt(hd)
    # attention scale folded in so the kernel never multiplies the scores.
    cos_q = jnp.tile(cos, (REP, 1)) * scale
    sin_q = jnp.tile(sin, (REP, 1)) * scale
    idx1d = idx[0].astype(jnp.int32)                          # scalar prefetch

    kern = functools.partial(fused_mistral_kernel, n_head=N_HEAD,
                             n_kv=N_KV_HEAD, head_dim=HEAD_DIM,
                             hidden=HIDDEN_DIM, eps=NORM_EPS)

    # index_maps receive the scalar-prefetch ref as a trailing positional arg.
    resident2  = lambda l, idx_ref: (0, 0)       # fetched once, stays in VMEM
    per_layer3 = lambda l, idx_ref: (l, 0, 0)    # double-buffered across layers

    grid_spec = pltpu.PrefetchScalarGridSpec(
        num_scalar_prefetch=1,
        grid=(N_LAYER,),
        in_specs=[
            pl.BlockSpec(memory_space=pl.ANY),                           # wte (HBM)
            pl.BlockSpec((REP * t, HEAD_DIM), resident2),                # cos_q
            pl.BlockSpec((REP * t, HEAD_DIM), resident2),                # sin_q
            pl.BlockSpec((t, HEAD_DIM), resident2),                      # cos_k
            pl.BlockSpec((t, HEAD_DIM), resident2),                      # sin_k
            pl.BlockSpec((1, 1, EMBD_DIM), per_layer3),                  # attn_norm
            pl.BlockSpec((1, EMBD_DIM, QKV_DIM), per_layer3),            # wqkv
            pl.BlockSpec((1, N_HEAD * HEAD_DIM, EMBD_DIM), per_layer3),  # wo
            pl.BlockSpec((1, 1, EMBD_DIM), per_layer3),                  # ffn_norm
            pl.BlockSpec((1, EMBD_DIM, 2 * HIDDEN_DIM), per_layer3),     # w13
            pl.BlockSpec((1, HIDDEN_DIM, EMBD_DIM), per_layer3),         # w2
            pl.BlockSpec((1, EMBD_DIM), resident2),                      # ln_f
            pl.BlockSpec((EMBD_DIM, VOCAB_SIZE), resident2),             # lm_head
        ],
        out_specs=pl.BlockSpec((t, VOCAB_SIZE), resident2),
        scratch_shapes=[
            pltpu.VMEM((t, EMBD_DIM), jnp.float32),        # residual stream
            pltpu.VMEM((REP * t, t), jnp.float32),         # additive causal mask
            pltpu.SemaphoreType.DMA(()),                   # embedding gather sem
        ],
    )

    logits = pl.pallas_call(
        kern,
        out_shape=jax.ShapeDtypeStruct((t, VOCAB_SIZE), jnp.float32),
        grid_spec=grid_spec,
        compiler_params=pltpu.CompilerParams(
            dimension_semantics=("arbitrary",)),
    )(idx1d, params['wte'], cos_q, sin_q, cos, sin,
      params['attn_norm'], params['wqkv'], params['wo'],
      params['ffn_norm'], params['w13'], params['w2'],
      params['ln_f'], params['lm_head'])
    return logits[None, :, :]                                   # (1, t, vocab)


# ---------------- parameter init (deterministic, synthetic) ----------------
def init_params(key):
    def nrm(k, shape, dtype=jnp.bfloat16, scale=0.02):
        return (scale * jax.random.normal(k, shape, dtype=jnp.float32)).astype(dtype)

    ks = jax.random.split(key, 6)
    return {
        # wte kept f32 so embedding rows DMA directly into the f32 residual.
        'wte': nrm(ks[0], (VOCAB_SIZE, EMBD_DIM), dtype=jnp.float32),
        'attn_norm': jnp.ones((N_LAYER, 1, EMBD_DIM), jnp.float32),
        'ffn_norm': jnp.ones((N_LAYER, 1, EMBD_DIM), jnp.float32),
        # fused [Wq | Wk | Wv] per layer: (E, (H + 2*KV)*HD), head-major blocks
        'wqkv': nrm(ks[1], (N_LAYER, EMBD_DIM, QKV_DIM)),
        # output projection with heads folded into K: (H*HD, E)
        'wo': nrm(ks[2], (N_LAYER, N_HEAD * HEAD_DIM, EMBD_DIM)),
        # fused [W1 | W3] per layer: (E, 2*HIDDEN)
        'w13': nrm(ks[3], (N_LAYER, EMBD_DIM, 2 * HIDDEN_DIM)),
        'w2': nrm(ks[4], (N_LAYER, HIDDEN_DIM, EMBD_DIM)),
        'ln_f': jnp.ones((1, EMBD_DIM), jnp.float32),
        'lm_head': nrm(ks[5], (EMBD_DIM, VOCAB_SIZE)),
    }


if __name__ == "__main__":
    key = jax.random.PRNGKey(0)
    pkey, ikey = jax.random.split(key)
    params = init_params(pkey)

    T = 8
    idx = jax.random.randint(ikey, (1, T), 0, VOCAB_SIZE, dtype=jnp.int32)

    logits = jax.jit(mistral_forward)(idx, params)
    jax.block_until_ready(logits)
    assert logits.shape == (1, T, VOCAB_SIZE)
    assert bool(jnp.all(jnp.isfinite(logits)))
    print("KERNEL_OK")
</pallas_src>

<mosaic_0001>
module attributes {stable_mosaic.version = 11 : i64} {
  func.func @fused_mistral_kernel(%arg0: i32, %arg1: memref<8xi32, #tpu.memory_space<smem>>, %arg2: memref<3072x32xf32, #tpu.memory_space<any>>, %arg3: memref<32x128xf32, #tpu.memory_space<vmem>>, %arg4: memref<32x128xf32, #tpu.memory_space<vmem>>, %arg5: memref<8x128xf32, #tpu.memory_space<vmem>>, %arg6: memref<8x128xf32, #tpu.memory_space<vmem>>, %arg7: memref<1x1x32xf32, #tpu.memory_space<vmem>>, %arg8: memref<1x32x1536xbf16, #tpu.memory_space<vmem>>, %arg9: memref<1x1024x32xbf16, #tpu.memory_space<vmem>>, %arg10: memref<1x1x32xf32, #tpu.memory_space<vmem>>, %arg11: memref<1x32x256xbf16, #tpu.memory_space<vmem>>, %arg12: memref<1x128x32xbf16, #tpu.memory_space<vmem>>, %arg13: memref<1x32xf32, #tpu.memory_space<vmem>>, %arg14: memref<32x3072xbf16, #tpu.memory_space<vmem>>, %arg15: memref<8x3072xf32, #tpu.memory_space<vmem>>, %arg16: memref<8x32xf32, #tpu.memory_space<vmem>>, %arg17: memref<32x8xf32, #tpu.memory_space<vmem>>, %arg18: memref<!tpu.dma_semaphore, #tpu.memory_space<semaphore_mem>>) attributes {dimension_semantics = [#tpu.dimension_semantics<arbitrary>], iteration_bounds = array<i64: 4>, scalar_prefetch = 1 : i64, scratch_operands = 3 : i64, tpu.core_type = #tpu.core_type<tc>, window_params = [{}, {pipeline_mode = #tpu.pipeline_mode<synchronous>, transform_indices = @transform_1, window_bounds = array<i64: 32, 128>}, {pipeline_mode = #tpu.pipeline_mode<synchronous>, transform_indices = @transform_2, window_bounds = array<i64: 32, 128>}, {pipeline_mode = #tpu.pipeline_mode<synchronous>, transform_indices = @transform_3, window_bounds = array<i64: 8, 128>}, {pipeline_mode = #tpu.pipeline_mode<synchronous>, transform_indices = @transform_4, window_bounds = array<i64: 8, 128>}, {transform_indices = @transform_5, window_bounds = array<i64: 1, 1, 32>}, {transform_indices = @transform_6, window_bounds = array<i64: 1, 32, 1536>}, {transform_indices = @transform_7, window_bounds = array<i64: 1, 1024, 32>}, {transform_indices = @transform_8, window_bounds = array<i64: 1, 1, 32>}, {transform_indices = @transform_9, window_bounds = array<i64: 1, 32, 256>}, {transform_indices = @transform_10, window_bounds = array<i64: 1, 128, 32>}, {pipeline_mode = #tpu.pipeline_mode<synchronous>, transform_indices = @transform_11, window_bounds = array<i64: 1, 32>}, {pipeline_mode = #tpu.pipeline_mode<synchronous>, transform_indices = @transform_12, window_bounds = array<i64: 32, 3072>}, {pipeline_mode = #tpu.pipeline_mode<synchronous>, transform_indices = @transform_13, window_bounds = array<i64: 8, 3072>}]} {
    %c0_i32 = arith.constant 0 : i32
    %0 = arith.cmpi eq, %arg0, %c0_i32 : i32
    %1 = arith.extui %0 : i1 to i32
    %c0_i32_0 = arith.constant 0 : i32
    %2 = arith.cmpi ne, %1, %c0_i32_0 : i32
    scf.if %2 {
      %c0_48 = arith.constant 0 : index
      %143 = memref.load %arg1[%c0_48] : memref<8xi32, #tpu.memory_space<smem>>
      %c0_i32_49 = arith.constant 0 : i32
      %144 = tpu.memref_slice %arg2[%143, %c0_i32_49] : memref<3072x32xf32, #tpu.memory_space<any>> -> memref<1x32xf32, #tpu.memory_space<any>>
      %c0_i32_50 = arith.constant 0 : i32
      %c0_i32_51 = arith.constant 0 : i32
      %145 = tpu.memref_slice %arg16[%c0_i32_50, %c0_i32_51] : memref<8x32xf32, #tpu.memory_space<vmem>> -> memref<1x32xf32, #tpu.memory_space<vmem>>
      tpu.enqueue_dma source(%144 : memref<1x32xf32, #tpu.memory_space<any>>) target(%145 : memref<1x32xf32, #tpu.memory_space<vmem>>) target_semaphore(%arg18 : memref<!tpu.dma_semaphore, #tpu.memory_space<semaphore_mem>>)
      %c0_i32_52 = arith.constant 0 : i32
      %146 = tpu.memref_slice %arg2[%143, %c0_i32_52] : memref<3072x32xf32, #tpu.memory_space<any>> -> memref<1x32xf32, #tpu.memory_space<any>>
      %c0_i32_53 = arith.constant 0 : i32
      %c0_i32_54 = arith.constant 0 : i32
      %147 = tpu.memref_slice %arg16[%c0_i32_53, %c0_i32_54] : memref<8x32xf32, #tpu.memory_space<vmem>> -> memref<1x32xf32, #tpu.memory_space<vmem>>
      tpu.wait_dma2 semaphore(%arg18 : memref<!tpu.dma_semaphore, #tpu.memory_space<semaphore_mem>>) src(%146 : memref<1x32xf32, #tpu.memory_space<any>>) dst(%147 : memref<1x32xf32, #tpu.memory_space<vmem>>)
      %c1 = arith.constant 1 : index
      %148 = memref.load %arg1[%c1] : memref<8xi32, #tpu.memory_space<smem>>
      %c0_i32_55 = arith.constant 0 : i32
      %149 = tpu.memref_slice %arg2[%148, %c0_i32_55] : memref<3072x32xf32, #tpu.memory_space<any>> -> memref<1x32xf32, #tpu.memory_space<any>>
      %c1_i32 = arith.constant 1 : i32
      %c0_i32_56 = arith.constant 0 : i32
      %150 = tpu.memref_slice %arg16[%c1_i32, %c0_i32_56] : memref<8x32xf32, #tpu.memory_space<vmem>> -> memref<1x32xf32, #tpu.memory_space<vmem>>
      tpu.enqueue_dma source(%149 : memref<1x32xf32, #tpu.memory_space<any>>) target(%150 : memref<1x32xf32, #tpu.memory_space<vmem>>) target_semaphore(%arg18 : memref<!tpu.dma_semaphore, #tpu.memory_space<semaphore_mem>>)
      %c0_i32_57 = arith.constant 0 : i32
      %151 = tpu.memref_slice %arg2[%148, %c0_i32_57] : memref<3072x32xf32, #tpu.memory_space<any>> -> memref<1x32xf32, #tpu.memory_space<any>>
      %c1_i32_58 = arith.constant 1 : i32
      %c0_i32_59 = arith.constant 0 : i32
      %152 = tpu.memref_slice %arg16[%c1_i32_58, %c0_i32_59] : memref<8x32xf32, #tpu.memory_space<vmem>> -> memref<1x32xf32, #tpu.memory_space<vmem>>
      tpu.wait_dma2 semaphore(%arg18 : memref<!tpu.dma_semaphore, #tpu.memory_space<semaphore_mem>>) src(%151 : memref<1x32xf32, #tpu.memory_space<any>>) dst(%152 : memref<1x32xf32, #tpu.memory_space<vmem>>)
      %c2 = arith.constant 2 : index
      %153 = memref.load %arg1[%c2] : memref<8xi32, #tpu.memory_space<smem>>
      %c0_i32_60 = arith.constant 0 : i32
      %154 = tpu.memref_slice %arg2[%153, %c0_i32_60] : memref<3072x32xf32, #tpu.memory_space<any>> -> memref<1x32xf32, #tpu.memory_space<any>>
      %c2_i32 = arith.constant 2 : i32
      %c0_i32_61 = arith.constant 0 : i32
      %155 = tpu.memref_slice %arg16[%c2_i32, %c0_i32_61] : memref<8x32xf32, #tpu.memory_space<vmem>> -> memref<1x32xf32, #tpu.memory_space<vmem>>
      tpu.enqueue_dma source(%154 : memref<1x32xf32, #tpu.memory_space<any>>) target(%155 : memref<1x32xf32, #tpu.memory_space<vmem>>) target_semaphore(%arg18 : memref<!tpu.dma_semaphore, #tpu.memory_space<semaphore_mem>>)
      %c0_i32_62 = arith.constant 0 : i32
      %156 = tpu.memref_slice %arg2[%153, %c0_i32_62] : memref<3072x32xf32, #tpu.memory_space<any>> -> memref<1x32xf32, #tpu.memory_space<any>>
      %c2_i32_63 = arith.constant 2 : i32
      %c0_i32_64 = arith.constant 0 : i32
      %157 = tpu.memref_slice %arg16[%c2_i32_63, %c0_i32_64] : memref<8x32xf32, #tpu.memory_space<vmem>> -> memref<1x32xf32, #tpu.memory_space<vmem>>
      tpu.wait_dma2 semaphore(%arg18 : memref<!tpu.dma_semaphore, #tpu.memory_space<semaphore_mem>>) src(%156 : memref<1x32xf32, #tpu.memory_space<any>>) dst(%157 : memref<1x32xf32, #tpu.memory_space<vmem>>)
      %c3 = arith.constant 3 : index
      %158 = memref.load %arg1[%c3] : memref<8xi32, #tpu.memory_space<smem>>
      %c0_i32_65 = arith.constant 0 : i32
      %159 = tpu.memref_slice %arg2[%158, %c0_i32_65] : memref<3072x32xf32, #tpu.memory_space<any>> -> memref<1x32xf32, #tpu.memory_space<any>>
      %c3_i32_66 = arith.constant 3 : i32
      %c0_i32_67 = arith.constant 0 : i32
      %160 = tpu.memref_slice %arg16[%c3_i32_66, %c0_i32_67] : memref<8x32xf32, #tpu.memory_space<vmem>> -> memref<1x32xf32, #tpu.memory_space<vmem>>
      tpu.enqueue_dma source(%159 : memref<1x32xf32, #tpu.memory_space<any>>) target(%160 : memref<1x32xf32, #tpu.memory_space<vmem>>) target_semaphore(%arg18 : memref<!tpu.dma_semaphore, #tpu.memory_space<semaphore_mem>>)
      %c0_i32_68 = arith.constant 0 : i32
      %161 = tpu.memref_slice %arg2[%158, %c0_i32_68] : memref<3072x32xf32, #tpu.memory_space<any>> -> memref<1x32xf32, #tpu.memory_space<any>>
      %c3_i32_69 = arith.constant 3 : i32
      %c0_i32_70 = arith.constant 0 : i32
      %162 = tpu.memref_slice %arg16[%c3_i32_69, %c0_i32_70] : memref<8x32xf32, #tpu.memory_space<vmem>> -> memref<1x32xf32, #tpu.memory_space<vmem>>
      tpu.wait_dma2 semaphore(%arg18 : memref<!tpu.dma_semaphore, #tpu.memory_space<semaphore_mem>>) src(%161 : memref<1x32xf32, #tpu.memory_space<any>>) dst(%162 : memref<1x32xf32, #tpu.memory_space<vmem>>)
      %c4 = arith.constant 4 : index
      %163 = memref.load %arg1[%c4] : memref<8xi32, #tpu.memory_space<smem>>
      %c0_i32_71 = arith.constant 0 : i32
      %164 = tpu.memref_slice %arg2[%163, %c0_i32_71] : memref<3072x32xf32, #tpu.memory_space<any>> -> memref<1x32xf32, #tpu.memory_space<any>>
      %c4_i32 = arith.constant 4 : i32
      %c0_i32_72 = arith.constant 0 : i32
      %165 = tpu.memref_slice %arg16[%c4_i32, %c0_i32_72] : memref<8x32xf32, #tpu.memory_space<vmem>> -> memref<1x32xf32, #tpu.memory_space<vmem>>
      tpu.enqueue_dma source(%164 : memref<1x32xf32, #tpu.memory_space<any>>) target(%165 : memref<1x32xf32, #tpu.memory_space<vmem>>) target_semaphore(%arg18 : memref<!tpu.dma_semaphore, #tpu.memory_space<semaphore_mem>>)
      %c0_i32_73 = arith.constant 0 : i32
      %166 = tpu.memref_slice %arg2[%163, %c0_i32_73] : memref<3072x32xf32, #tpu.memory_space<any>> -> memref<1x32xf32, #tpu.memory_space<any>>
      %c4_i32_74 = arith.constant 4 : i32
      %c0_i32_75 = arith.constant 0 : i32
      %167 = tpu.memref_slice %arg16[%c4_i32_74, %c0_i32_75] : memref<8x32xf32, #tpu.memory_space<vmem>> -> memref<1x32xf32, #tpu.memory_space<vmem>>
      tpu.wait_dma2 semaphore(%arg18 : memref<!tpu.dma_semaphore, #tpu.memory_space<semaphore_mem>>) src(%166 : memref<1x32xf32, #tpu.memory_space<any>>) dst(%167 : memref<1x32xf32, #tpu.memory_space<vmem>>)
      %c5 = arith.constant 5 : index
      %168 = memref.load %arg1[%c5] : memref<8xi32, #tpu.memory_space<smem>>
      %c0_i32_76 = arith.constant 0 : i32
      %169 = tpu.memref_slice %arg2[%168, %c0_i32_76] : memref<3072x32xf32, #tpu.memory_space<any>> -> memref<1x32xf32, #tpu.memory_space<any>>
      %c5_i32 = arith.constant 5 : i32
      %c0_i32_77 = arith.constant 0 : i32
      %170 = tpu.memref_slice %arg16[%c5_i32, %c0_i32_77] : memref<8x32xf32, #tpu.memory_space<vmem>> -> memref<1x32xf32, #tpu.memory_space<vmem>>
      tpu.enqueue_dma source(%169 : memref<1x32xf32, #tpu.memory_space<any>>) target(%170 : memref<1x32xf32, #tpu.memory_space<vmem>>) target_semaphore(%arg18 : memref<!tpu.dma_semaphore, #tpu.memory_space<semaphore_mem>>)
      %c0_i32_78 = arith.constant 0 : i32
      %171 = tpu.memref_slice %arg2[%168, %c0_i32_78] : memref<3072x32xf32, #tpu.memory_space<any>> -> memref<1x32xf32, #tpu.memory_space<any>>
      %c5_i32_79 = arith.constant 5 : i32
      %c0_i32_80 = arith.constant 0 : i32
      %172 = tpu.memref_slice %arg16[%c5_i32_79, %c0_i32_80] : memref<8x32xf32, #tpu.memory_space<vmem>> -> memref<1x32xf32, #tpu.memory_space<vmem>>
      tpu.wait_dma2 semaphore(%arg18 : memref<!tpu.dma_semaphore, #tpu.memory_space<semaphore_mem>>) src(%171 : memref<1x32xf32, #tpu.memory_space<any>>) dst(%172 : memref<1x32xf32, #tpu.memory_space<vmem>>)
      %c6 = arith.constant 6 : index
      %173 = memref.load %arg1[%c6] : memref<8xi32, #tpu.memory_space<smem>>
      %c0_i32_81 = arith.constant 0 : i32
      %174 = tpu.memref_slice %arg2[%173, %c0_i32_81] : memref<3072x32xf32, #tpu.memory_space<any>> -> memref<1x32xf32, #tpu.memory_space<any>>
      %c6_i32 = arith.constant 6 : i32
      %c0_i32_82 = arith.constant 0 : i32
      %175 = tpu.memref_slice %arg16[%c6_i32, %c0_i32_82] : memref<8x32xf32, #tpu.memory_space<vmem>> -> memref<1x32xf32, #tpu.memory_space<vmem>>
      tpu.enqueue_dma source(%174 : memref<1x32xf32, #tpu.memory_space<any>>) target(%175 : memref<1x32xf32, #tpu.memory_space<vmem>>) target_semaphore(%arg18 : memref<!tpu.dma_semaphore, #tpu.memory_space<semaphore_mem>>)
      %c0_i32_83 = arith.constant 0 : i32
      %176 = tpu.memref_slice %arg2[%173, %c0_i32_83] : memref<3072x32xf32, #tpu.memory_space<any>> -> memref<1x32xf32, #tpu.memory_space<any>>
      %c6_i32_84 = arith.constant 6 : i32
      %c0_i32_85 = arith.constant 0 : i32
      %177 = tpu.memref_slice %arg16[%c6_i32_84, %c0_i32_85] : memref<8x32xf32, #tpu.memory_space<vmem>> -> memref<1x32xf32, #tpu.memory_space<vmem>>
      tpu.wait_dma2 semaphore(%arg18 : memref<!tpu.dma_semaphore, #tpu.memory_space<semaphore_mem>>) src(%176 : memref<1x32xf32, #tpu.memory_space<any>>) dst(%177 : memref<1x32xf32, #tpu.memory_space<vmem>>)
      %c7 = arith.constant 7 : index
      %178 = memref.load %arg1[%c7] : memref<8xi32, #tpu.memory_space<smem>>
      %c0_i32_86 = arith.constant 0 : i32
      %179 = tpu.memref_slice %arg2[%178, %c0_i32_86] : memref<3072x32xf32, #tpu.memory_space<any>> -> memref<1x32xf32, #tpu.memory_space<any>>
      %c7_i32 = arith.constant 7 : i32
      %c0_i32_87 = arith.constant 0 : i32
      %180 = tpu.memref_slice %arg16[%c7_i32, %c0_i32_87] : memref<8x32xf32, #tpu.memory_space<vmem>> -> memref<1x32xf32, #tpu.memory_space<vmem>>
      tpu.enqueue_dma source(%179 : memref<1x32xf32, #tpu.memory_space<any>>) target(%180 : memref<1x32xf32, #tpu.memory_space<vmem>>) target_semaphore(%arg18 : memref<!tpu.dma_semaphore, #tpu.memory_space<semaphore_mem>>)
      %c0_i32_88 = arith.constant 0 : i32
      %181 = tpu.memref_slice %arg2[%178, %c0_i32_88] : memref<3072x32xf32, #tpu.memory_space<any>> -> memref<1x32xf32, #tpu.memory_space<any>>
      %c7_i32_89 = arith.constant 7 : i32
      %c0_i32_90 = arith.constant 0 : i32
      %182 = tpu.memref_slice %arg16[%c7_i32_89, %c0_i32_90] : memref<8x32xf32, #tpu.memory_space<vmem>> -> memref<1x32xf32, #tpu.memory_space<vmem>>
      tpu.wait_dma2 semaphore(%arg18 : memref<!tpu.dma_semaphore, #tpu.memory_space<semaphore_mem>>) src(%181 : memref<1x32xf32, #tpu.memory_space<any>>) dst(%182 : memref<1x32xf32, #tpu.memory_space<vmem>>)
      %183 = tpu.iota {dimensions = array<i32: 0>} : vector<32x8xi32>
      %c8_i32 = arith.constant 8 : i32
      %c0_i32_91 = arith.constant 0 : i32
      %184 = arith.cmpi eq, %c8_i32, %c0_i32_91 : i32
      %c1_i32_92 = arith.constant 1 : i32
      %185 = arith.select %184, %c1_i32_92, %c8_i32 : i32
      %186 = vector.broadcast %185 : i32 to vector<32x8xi32>
      %187 = arith.remsi %183, %186 : vector<32x8xi32>
      %c0_i32_93 = arith.constant 0 : i32
      %188 = vector.broadcast %c0_i32_93 : i32 to vector<32x8xi32>
      %189 = arith.cmpi ne, %187, %188 : vector<32x8xi32>
      %c0_i32_94 = arith.constant 0 : i32
      %190 = vector.broadcast %c0_i32_94 : i32 to vector<32x8xi32>
      %191 = arith.cmpi slt, %187, %190 : vector<32x8xi32>
      %c0_i32_95 = arith.constant 0 : i32
      %192 = arith.cmpi slt, %185, %c0_i32_95 : i32
      %193 = vector.broadcast %192 : i1 to vector<32x8xi1>
      %194 = vector.broadcast %193 : vector<32x8xi1> to vector<32x8xi1>
      %195 = arith.xori %191, %194 : vector<32x8xi1>
      %196 = arith.andi %195, %189 : vector<32x8xi1>
      %197 = vector.broadcast %185 : i32 to vector<32x8xi32>
      %198 = arith.addi %187, %197 : vector<32x8xi32>
      %199 = arith.select %196, %198, %187 : vector<32x8xi1>, vector<32x8xi32>
      %200 = tpu.iota {dimensions = array<i32: 1>} : vector<32x8xi32>
      %201 = arith.cmpi sle, %200, %199 : vector<32x8xi32>
      %cst_96 = arith.constant 0.000000e+00 : f32
      %cst_97 = arith.constant -1.000000e+30 : f32
      %202 = vector.broadcast %cst_96 : f32 to vector<32x8xf32>
      %203 = vector.broadcast %cst_97 : f32 to vector<32x8xf32>
      %204 = arith.select %201, %202, %203 : vector<32x8xi1>, vector<32x8xf32>
      %c0_98 = arith.constant 0 : index
      %c0_99 = arith.constant 0 : index
      %205 = vector.load %arg17[%c0_98, %c0_99] : memref<32x8xf32, #tpu.memory_space<vmem>>, vector<32x8xf32>
      tpu.vector_store %arg17[%c0_98, %c0_99], %204 {strides = array<i32>} : memref<32x8xf32, #tpu.memory_space<vmem>>, vector<32x8xf32>,
    } else {
    }
    %c0 = arith.constant 0 : index
    %c0_1 = arith.constant 0 : index
    %3 = vector.load %arg16[%c0, %c0_1] : memref<8x32xf32, #tpu.memory_space<vmem>>, vector<8x32xf32>
    %c0_2 = arith.constant 0 : index
    %c0_3 = arith.constant 0 : index
    %c0_4 = arith.constant 0 : index
    %4 = vector.load %arg7[%c0_2, %c0_3, %c0_4] : memref<1x1x32xf32, #tpu.memory_space<vmem>>, vector<1x1x32xf32>
    %5 = vector.shape_cast %4 : vector<1x1x32xf32> to vector<1x32xf32>
    %6 = arith.mulf %3, %3 : vector<8x32xf32>
    %cst = arith.constant dense<0.000000e+00> : vector<8xf32>
    %7 = vector.multi_reduction <add>, %6, %cst [1] : vector<8x32xf32> to vector<8xf32>
    %8 = vector.shape_cast %7 : vector<8xf32> to vector<8x1xf32>
    %cst_5 = arith.constant 3.200000e+01 : f32
    %9 = vector.broadcast %cst_5 : f32 to vector<8x1xf32>
    %10 = arith.divf %8, %9 : vector<8x1xf32>
    %cst_6 = arith.constant 9.99999974E-6 : f32
    %11 = vector.broadcast %cst_6 : f32 to vector<8x1xf32>
    %12 = arith.addf %10, %11 : vector<8x1xf32>
    %13 = math.rsqrt %12 : vector<8x1xf32>
    %14 = vector.broadcast %13 : vector<8x1xf32> to vector<8x32xf32>
    %15 = arith.mulf %3, %14 : vector<8x32xf32>
    %16 = vector.broadcast %5 : vector<1x32xf32> to vector<8x32xf32>
    %17 = arith.mulf %15, %16 : vector<8x32xf32>
    %18 = arith.truncf %17 : vector<8x32xf32> to vector<8x32xbf16>
    %c0_7 = arith.constant 0 : index
    %c0_8 = arith.constant 0 : index
    %c0_9 = arith.constant 0 : index
    %19 = vector.load %arg8[%c0_7, %c0_8, %c0_9] : memref<1x32x1536xbf16, #tpu.memory_space<vmem>>, vector<1x32x1536xbf16>
    %20 = vector.shape_cast %19 : vector<1x32x1536xbf16> to vector<32x1536xbf16>
    %cst_10 = arith.constant dense<0.000000e+00> : vector<8x1536xf32>
    %21 = tpu.matmul %18, %20, %cst_10 {dimension_numbers = #tpu.dot_dimension_numbers<[1], [0], [0], [1], [0, 0, 1, 1], [], []>} : vector<8x32xbf16>, vector<32x1536xbf16>, vector<8x1536xf32> -> vector<8x1536xf32>
    %22 = vector.extract_strided_slice %21 {offsets = [0, 0], sizes = [8, 128], strides = [1, 1]} : vector<8x1536xf32> to vector<8x128xf32>
    %23 = vector.extract_strided_slice %21 {offsets = [0, 128], sizes = [8, 128], strides = [1, 1]} : vector<8x1536xf32> to vector<8x128xf32>
    %24 = vector.extract_strided_slice %21 {offsets = [0, 256], sizes = [8, 128], strides = [1, 1]} : vector<8x1536xf32> to vector<8x128xf32>
    %25 = vector.extract_strided_slice %21 {offsets = [0, 384], sizes = [8, 128], strides = [1, 1]} : vector<8x1536xf32> to vector<8x128xf32>
    %26 = tpu.concatenate %22, %23, %24, %25 in 0 : vector<8x128xf32>, vector<8x128xf32>, vector<8x128xf32>, vector<8x128xf32> -> vector<32x128xf32>
    %27 = vector.extract_strided_slice %21 {offsets = [0, 512], sizes = [8, 128], strides = [1, 1]} : vector<8x1536xf32> to vector<8x128xf32>
    %28 = vector.extract_strided_slice %21 {offsets = [0, 640], sizes = [8, 128], strides = [1, 1]} : vector<8x1536xf32> to vector<8x128xf32>
    %29 = vector.extract_strided_slice %21 {offsets = [0, 768], sizes = [8, 128], strides = [1, 1]} : vector<8x1536xf32> to vector<8x128xf32>
    %30 = vector.extract_strided_slice %21 {offsets = [0, 896], sizes = [8, 128], strides = [1, 1]} : vector<8x1536xf32> to vector<8x128xf32>
    %31 = tpu.concatenate %27, %28, %29, %30 in 0 : vector<8x128xf32>, vector<8x128xf32>, vector<8x128xf32>, vector<8x128xf32> -> vector<32x128xf32>
    %32 = vector.shape_cast %26 : vector<32x128xf32> to vector<1x32x128xf32>
    %33 = vector.shape_cast %31 : vector<32x128xf32> to vector<1x32x128xf32>
    %34 = tpu.concatenate %32, %33 in 0 : vector<1x32x128xf32>, vector<1x32x128xf32> -> vector<2x32x128xf32>
    %35 = vector.extract_strided_slice %21 {offsets = [0, 1024], sizes = [8, 128], strides = [1, 1]} : vector<8x1536xf32> to vector<8x128xf32>
    %36 = vector.extract_strided_slice %21 {offsets = [0, 1152], sizes = [8, 128], strides = [1, 1]} : vector<8x1536xf32> to vector<8x128xf32>
    %37 = vector.shape_cast %35 : vector<8x128xf32> to vector<1x8x128xf32>
    %38 = vector.shape_cast %36 : vector<8x128xf32> to vector<1x8x128xf32>
    %39 = tpu.concatenate %37, %38 in 0 : vector<1x8x128xf32>, vector<1x8x128xf32> -> vector<2x8x128xf32>
    %40 = vector.extract_strided_slice %21 {offsets = [0, 1280], sizes = [8, 128], strides = [1, 1]} : vector<8x1536xf32> to vector<8x128xf32>
    %41 = vector.extract_strided_slice %21 {offsets = [0, 1408], sizes = [8, 128], strides = [1, 1]} : vector<8x1536xf32> to vector<8x128xf32>
    %42 = vector.shape_cast %40 : vector<8x128xf32> to vector<1x8x128xf32>
    %43 = vector.shape_cast %41 : vector<8x128xf32> to vector<1x8x128xf32>
    %44 = tpu.concatenate %42, %43 in 0 : vector<1x8x128xf32>, vector<1x8x128xf32> -> vector<2x8x128xf32>
    %c0_11 = arith.constant 0 : index
    %c0_12 = arith.constant 0 : index
    %45 = vector.load %arg3[%c0_11, %c0_12] : memref<32x128xf32, #tpu.memory_space<vmem>>, vector<32x128xf32>
    %46 = vector.shape_cast %45 : vector<32x128xf32> to vector<1x32x128xf32>
    %47 = vector.broadcast %46 : vector<1x32x128xf32> to vector<2x32x128xf32>
    %48 = arith.mulf %34, %47 : vector<2x32x128xf32>
    %c64_i32 = arith.constant 64 : i32
    %49 = tpu.dynamic_rotate %34 by %c64_i32 dim 2 : vector<2x32x128xf32>, i32 -> vector<2x32x128xf32>
    %c0_13 = arith.constant 0 : index
    %c0_14 = arith.constant 0 : index
    %50 = vector.load %arg4[%c0_13, %c0_14] : memref<32x128xf32, #tpu.memory_space<vmem>>, vector<32x128xf32>
    %51 = vector.shape_cast %50 : vector<32x128xf32> to vector<1x32x128xf32>
    %52 = vector.broadcast %51 : vector<1x32x128xf32> to vector<2x32x128xf32>
    %53 = arith.mulf %49, %52 : vector<2x32x128xf32>
    %54 = arith.addf %48, %53 : vector<2x32x128xf32>
    %c0_15 = arith.constant 0 : index
    %c0_16 = arith.constant 0 : index
    %55 = vector.load %arg5[%c0_15, %c0_16] : memref<8x128xf32, #tpu.memory_space<vmem>>, vector<8x128xf32>
    %56 = vector.shape_cast %55 : vector<8x128xf32> to vector<1x8x128xf32>
    %57 = vector.broadcast %56 : vector<1x8x128xf32> to vector<2x8x128xf32>
    %58 = arith.mulf %39, %57 : vector<2x8x128xf32>
    %c64_i32_17 = arith.constant 64 : i32
    %59 = tpu.dynamic_rotate %39 by %c64_i32_17 dim 2 : vector<2x8x128xf32>, i32 -> vector<2x8x128xf32>
    %c0_18 = arith.constant 0 : index
    %c0_19 = arith.constant 0 : index
    %60 = vector.load %arg6[%c0_18, %c0_19] : memref<8x128xf32, #tpu.memory_space<vmem>>, vector<8x128xf32>
    %61 = vector.shape_cast %60 : vector<8x128xf32> to vector<1x8x128xf32>
    %62 = vector.broadcast %61 : vector<1x8x128xf32> to vector<2x8x128xf32>
    %63 = arith.mulf %59, %62 : vector<2x8x128xf32>
    %64 = arith.addf %58, %63 : vector<2x8x128xf32>
    %65 = arith.truncf %54 : vector<2x32x128xf32> to vector<2x32x128xbf16>
    %66 = arith.truncf %64 : vector<2x8x128xf32> to vector<2x8x128xbf16>
    "tpu.trace_start"() <{level = 10 : i32, message = "gmd,gkd->gmk"}> : () -> ()
    %cst_20 = arith.constant dense<0.000000e+00> : vector<2x32x8xf32>
    %67 = tpu.matmul %65, %66, %cst_20 {dimension_numbers = #tpu.dot_dimension_numbers<[2], [2], [1], [1], [0, 0, 0, 1, 1, 1], [0], [0]>} : vector<2x32x128xbf16>, vector<2x8x128xbf16>, vector<2x32x8xf32> -> vector<2x32x8xf32>
    "tpu.trace_stop"() : () -> ()
    %c0_21 = arith.constant 0 : index
    %c0_22 = arith.constant 0 : index
    %68 = vector.load %arg17[%c0_21, %c0_22] : memref<32x8xf32, #tpu.memory_space<vmem>>, vector<32x8xf32>
    %69 = vector.shape_cast %68 : vector<32x8xf32> to vector<1x32x8xf32>
    %70 = vector.broadcast %69 : vector<1x32x8xf32> to vector<2x32x8xf32>
    %71 = arith.addf %67, %70 : vector<2x32x8xf32>
    %cst_23 = arith.constant dense<0xFF800000> : vector<2x32xf32>
    %72 = vector.multi_reduction <maximumf>, %71, %cst_23 [2] : vector<2x32x8xf32> to vector<2x32xf32>
    %73 = vector.shape_cast %72 : vector<2x32xf32> to vector<2x32x1xf32>
    %74 = vector.broadcast %73 : vector<2x32x1xf32> to vector<2x32x8xf32>
    %75 = arith.subf %71, %74 : vector<2x32x8xf32>
    %76 = math.exp %75 : vector<2x32x8xf32>
    %cst_24 = arith.constant dense<0.000000e+00> : vector<2x32xf32>
    %77 = vector.multi_reduction <add>, %76, %cst_24 [2] : vector<2x32x8xf32> to vector<2x32xf32>
    %78 = vector.shape_cast %77 : vector<2x32xf32> to vector<2x32x1xf32>
    %79 = arith.truncf %76 : vector<2x32x8xf32> to vector<2x32x8xbf16>
    %80 = arith.truncf %44 : vector<2x8x128xf32> to vector<2x8x128xbf16>
    "tpu.trace_start"() <{level = 10 : i32, message = "gmk,gkd->gmd"}> : () -> ()
    %cst_25 = arith.constant dense<0.000000e+00> : vector<2x32x128xf32>
    %81 = tpu.matmul %79, %80, %cst_25 {dimension_numbers = #tpu.dot_dimension_numbers<[2], [1], [1], [2], [0, 0, 0, 1, 1, 2], [0], [0]>} : vector<2x32x8xbf16>, vector<2x8x128xbf16>, vector<2x32x128xf32> -> vector<2x32x128xf32>
    "tpu.trace_stop"() : () -> ()
    %82 = tpu.reciprocal %78 {approx = true} : vector<2x32x1xf32> -> vector<2x32x1xf32>
    %83 = vector.broadcast %82 : vector<2x32x1xf32> to vector<2x32x128xf32>
    %84 = arith.mulf %81, %83 : vector<2x32x128xf32>
    %85 = vector.extract_strided_slice %84 {offsets = [0, 0, 0], sizes = [1, 8, 128], strides = [1, 1, 1]} : vector<2x32x128xf32> to vector<1x8x128xf32>
    %86 = vector.shape_cast %85 : vector<1x8x128xf32> to vector<8x128xf32>
    %87 = vector.extract_strided_slice %84 {offsets = [0, 8, 0], sizes = [1, 8, 128], strides = [1, 1, 1]} : vector<2x32x128xf32> to vector<1x8x128xf32>
    %88 = vector.shape_cast %87 : vector<1x8x128xf32> to vector<8x128xf32>
    %89 = vector.extract_strided_slice %84 {offsets = [0, 16, 0], sizes = [1, 8, 128], strides = [1, 1, 1]} : vector<2x32x128xf32> to vector<1x8x128xf32>
    %90 = vector.shape_cast %89 : vector<1x8x128xf32> to vector<8x128xf32>
    %91 = vector.extract_strided_slice %84 {offsets = [0, 24, 0], sizes = [1, 8, 128], strides = [1, 1, 1]} : vector<2x32x128xf32> to vector<1x8x128xf32>
    %92 = vector.shape_cast %91 : vector<1x8x128xf32> to vector<8x128xf32>
    %93 = vector.extract_strided_slice %84 {offsets = [1, 0, 0], sizes = [1, 8, 128], strides = [1, 1, 1]} : vector<2x32x128xf32> to vector<1x8x128xf32>
    %94 = vector.shape_cast %93 : vector<1x8x128xf32> to vector<8x128xf32>
    %95 = vector.extract_strided_slice %84 {offsets = [1, 8, 0], sizes = [1, 8, 128], strides = [1, 1, 1]} : vector<2x32x128xf32> to vector<1x8x128xf32>
    %96 = vector.shape_cast %95 : vector<1x8x128xf32> to vector<8x128xf32>
    %97 = vector.extract_strided_slice %84 {offsets = [1, 16, 0], sizes = [1, 8, 128], strides = [1, 1, 1]} : vector<2x32x128xf32> to vector<1x8x128xf32>
    %98 = vector.shape_cast %97 : vector<1x8x128xf32> to vector<8x128xf32>
    %99 = vector.extract_strided_slice %84 {offsets = [1, 24, 0], sizes = [1, 8, 128], strides = [1, 1, 1]} : vector<2x32x128xf32> to vector<1x8x128xf32>
    %100 = vector.shape_cast %99 : vector<1x8x128xf32> to vector<8x128xf32>
    %101 = tpu.concatenate %86, %88, %90, %92, %94, %96, %98, %100 in 1 : vector<8x128xf32>, vector<8x128xf32>, vector<8x128xf32>, vector<8x128xf32>, vector<8x128xf32>, vector<8x128xf32>, vector<8x128xf32>, vector<8x128xf32> -> vector<8x1024xf32>
    %102 = arith.truncf %101 : vector<8x1024xf32> to vector<8x1024xbf16>
    %c0_26 = arith.constant 0 : index
    %c0_27 = arith.constant 0 : index
    %c0_28 = arith.constant 0 : index
    %103 = vector.load %arg9[%c0_26, %c0_27, %c0_28] : memref<1x1024x32xbf16, #tpu.memory_space<vmem>>, vector<1x1024x32xbf16>
    %104 = vector.shape_cast %103 : vector<1x1024x32xbf16> to vector<1024x32xbf16>
    %cst_29 = arith.constant dense<0.000000e+00> : vector<8x32xf32>
    %105 = tpu.matmul %102, %104, %cst_29 {dimension_numbers = #tpu.dot_dimension_numbers<[1], [0], [0], [1], [0, 0, 1, 1], [], []>} : vector<8x1024xbf16>, vector<1024x32xbf16>, vector<8x32xf32> -> vector<8x32xf32>
    %106 = arith.addf %3, %105 : vector<8x32xf32>
    %c0_30 = arith.constant 0 : index
    %c0_31 = arith.constant 0 : index
    %c0_32 = arith.constant 0 : index
    %107 = vector.load %arg10[%c0_30, %c0_31, %c0_32] : memref<1x1x32xf32, #tpu.memory_space<vmem>>, vector<1x1x32xf32>
    %108 = vector.shape_cast %107 : vector<1x1x32xf32> to vector<1x32xf32>
    %109 = arith.mulf %106, %106 : vector<8x32xf32>
    %cst_33 = arith.constant dense<0.000000e+00> : vector<8xf32>
    %110 = vector.multi_reduction <add>, %109, %cst_33 [1] : vector<8x32xf32> to vector<8xf32>
    %111 = vector.shape_cast %110 : vector<8xf32> to vector<8x1xf32>
    %cst_34 = arith.constant 3.200000e+01 : f32
    %112 = vector.broadcast %cst_34 : f32 to vector<8x1xf32>
    %113 = arith.divf %111, %112 : vector<8x1xf32>
    %cst_35 = arith.constant 9.99999974E-6 : f32
    %114 = vector.broadcast %cst_35 : f32 to vector<8x1xf32>
    %115 = arith.addf %113, %114 : vector<8x1xf32>
    %116 = math.rsqrt %115 : vector<8x1xf32>
    %117 = vector.broadcast %116 : vector<8x1xf32> to vector<8x32xf32>
    %118 = arith.mulf %106, %117 : vector<8x32xf32>
    %119 = vector.broadcast %108 : vector<1x32xf32> to vector<8x32xf32>
    %120 = arith.mulf %118, %119 : vector<8x32xf32>
    %121 = arith.truncf %120 : vector<8x32xf32> to vector<8x32xbf16>
    %c0_36 = arith.constant 0 : index
    %c0_37 = arith.constant 0 : index
    %c0_38 = arith.constant 0 : index
    %122 = vector.load %arg11[%c0_36, %c0_37, %c0_38] : memref<1x32x256xbf16, #tpu.memory_space<vmem>>, vector<1x32x256xbf16>
    %123 = vector.shape_cast %122 : vector<1x32x256xbf16> to vector<32x256xbf16>
    %cst_39 = arith.constant dense<0.000000e+00> : vector<8x256xf32>
    %124 = tpu.matmul %121, %123, %cst_39 {dimension_numbers = #tpu.dot_dimension_numbers<[1], [0], [0], [1], [0, 0, 1, 1], [], []>} : vector<8x32xbf16>, vector<32x256xbf16>, vector<8x256xf32> -> vector<8x256xf32>
    %125 = vector.extract_strided_slice %124 {offsets = [0, 0], sizes = [8, 128], strides = [1, 1]} : vector<8x256xf32> to vector<8x128xf32>
    %126 = vector.extract_strided_slice %124 {offsets = [0, 128], sizes = [8, 128], strides = [1, 1]} : vector<8x256xf32> to vector<8x128xf32>
    %127 = arith.negf %125 : vector<8x128xf32>
    %128 = math.exp %127 : vector<8x128xf32>
    %cst_40 = arith.constant 1.000000e+00 : f32
    %129 = vector.broadcast %cst_40 : f32 to vector<8x128xf32>
    %130 = arith.addf %129, %128 : vector<8x128xf32>
    %131 = arith.divf %129, %130 : vector<8x128xf32>
    %132 = arith.mulf %125, %131 : vector<8x128xf32>
    %133 = arith.mulf %132, %126 : vector<8x128xf32>
    %134 = arith.truncf %133 : vector<8x128xf32> to vector<8x128xbf16>
    %c0_41 = arith.constant 0 : index
    %c0_42 = arith.constant 0 : index
    %c0_43 = arith.constant 0 : index
    %135 = vector.load %arg12[%c0_41, %c0_42, %c0_43] : memref<1x128x32xbf16, #tpu.memory_space<vmem>>, vector<1x128x32xbf16>
    %136 = vector.shape_cast %135 : vector<1x128x32xbf16> to vector<128x32xbf16>
    %cst_44 = arith.constant dense<0.000000e+00> : vector<8x32xf32>
    %137 = tpu.matmul %134, %136, %cst_44 {dimension_numbers = #tpu.dot_dimension_numbers<[1], [0], [0], [1], [0, 0, 1, 1], [], []>} : vector<8x128xbf16>, vector<128x32xbf16>, vector<8x32xf32> -> vector<8x32xf32>
    %138 = arith.addf %106, %137 : vector<8x32xf32>
    %c0_45 = arith.constant 0 : index
    %c0_46 = arith.constant 0 : index
    %139 = vector.load %arg16[%c0_45, %c0_46] : memref<8x32xf32, #tpu.memory_space<vmem>>, vector<8x32xf32>
    tpu.vector_store %arg16[%c0_45, %c0_46], %138 {strides = array<i32>} : memref<8x32xf32, #tpu.memory_space<vmem>>, vector<8x32xf32>,
    %c3_i32 = arith.constant 3 : i32
    %140 = arith.cmpi eq, %arg0, %c3_i32 : i32
    %141 = arith.extui %140 : i1 to i32
    %c0_i32_47 = arith.constant 0 : i32
    %142 = arith.cmpi ne, %141, %c0_i32_47 : i32
    scf.if %142 {
      %c0_48 = arith.constant 0 : index
      %c0_49 = arith.constant 0 : index
      %143 = vector.load %arg13[%c0_48, %c0_49] : memref<1x32xf32, #tpu.memory_space<vmem>>, vector<1x32xf32>
      %144 = arith.mulf %138, %138 : vector<8x32xf32>
      %cst_50 = arith.constant dense<0.000000e+00> : vector<8xf32>
      %145 = vector.multi_reduction <add>, %144, %cst_50 [1] : vector<8x32xf32> to vector<8xf32>
      %146 = vector.shape_cast %145 : vector<8xf32> to vector<8x1xf32>
      %cst_51 = arith.constant 3.200000e+01 : f32
      %147 = vector.broadcast %cst_51 : f32 to vector<8x1xf32>
      %148 = arith.divf %146, %147 : vector<8x1xf32>
      %cst_52 = arith.constant 9.99999974E-6 : f32
      %149 = vector.broadcast %cst_52 : f32 to vector<8x1xf32>
      %150 = arith.addf %148, %149 : vector<8x1xf32>
      %151 = math.rsqrt %150 : vector<8x1xf32>
      %152 = vector.broadcast %151 : vector<8x1xf32> to vector<8x32xf32>
      %153 = arith.mulf %138, %152 : vector<8x32xf32>
      %154 = vector.broadcast %143 : vector<1x32xf32> to vector<8x32xf32>
      %155 = arith.mulf %153, %154 : vector<8x32xf32>
      %156 = arith.truncf %155 : vector<8x32xf32> to vector<8x32xbf16>
      %c0_53 = arith.constant 0 : index
      %c0_54 = arith.constant 0 : index
      %157 = vector.load %arg14[%c0_53, %c0_54] : memref<32x3072xbf16, #tpu.memory_space<vmem>>, vector<32x3072xbf16>
      %cst_55 = arith.constant dense<0.000000e+00> : vector<8x3072xf32>
      %158 = tpu.matmul %156, %157, %cst_55 {dimension_numbers = #tpu.dot_dimension_numbers<[1], [0], [0], [1], [0, 0, 1, 1], [], []>} : vector<8x32xbf16>, vector<32x3072xbf16>, vector<8x3072xf32> -> vector<8x3072xf32>
      %c0_56 = arith.constant 0 : index
      %c0_57 = arith.constant 0 : index
      %159 = vector.load %arg15[%c0_56, %c0_57] : memref<8x3072xf32, #tpu.memory_space<vmem>>, vector<8x3072xf32>
      tpu.vector_store %arg15[%c0_56, %c0_57], %158 {strides = array<i32>} : memref<8x3072xf32, #tpu.memory_space<vmem>>, vector<8x3072xf32>,
    } else {
    }
    return
  }
  func.func @transform_1(%arg0: i32, %arg1: memref<8xi32, #tpu.memory_space<smem>>) -> (i32, i32) {
    %c0_i32 = arith.constant 0 : i32
    %c0_i32_0 = arith.constant 0 : i32
    %c0_i32_1 = arith.constant 0 : i32
    return %c0_i32, %c0_i32_0 : i32, i32
  }
  func.func @transform_2(%arg0: i32, %arg1: memref<8xi32, #tpu.memory_space<smem>>) -> (i32, i32) {
    %c0_i32 = arith.constant 0 : i32
    %c0_i32_0 = arith.constant 0 : i32
    %c0_i32_1 = arith.constant 0 : i32
    return %c0_i32, %c0_i32_0 : i32, i32
  }
  func.func @transform_3(%arg0: i32, %arg1: memref<8xi32, #tpu.memory_space<smem>>) -> (i32, i32) {
    %c0_i32 = arith.constant 0 : i32
    %c0_i32_0 = arith.constant 0 : i32
    %c0_i32_1 = arith.constant 0 : i32
    return %c0_i32, %c0_i32_0 : i32, i32
  }
  func.func @transform_4(%arg0: i32, %arg1: memref<8xi32, #tpu.memory_space<smem>>) -> (i32, i32) {
    %c0_i32 = arith.constant 0 : i32
    %c0_i32_0 = arith.constant 0 : i32
    %c0_i32_1 = arith.constant 0 : i32
    return %c0_i32, %c0_i32_0 : i32, i32
  }
  func.func @transform_5(%arg0: i32, %arg1: memref<8xi32, #tpu.memory_space<smem>>) -> (i32, i32, i32) {
    %c0_i32 = arith.constant 0 : i32
    %c0_i32_0 = arith.constant 0 : i32
    %c0_i32_1 = arith.constant 0 : i32
    return %arg0, %c0_i32, %c0_i32_0 : i32, i32, i32
  }
  func.func @transform_6(%arg0: i32, %arg1: memref<8xi32, #tpu.memory_space<smem>>) -> (i32, i32, i32) {
    %c0_i32 = arith.constant 0 : i32
    %c0_i32_0 = arith.constant 0 : i32
    %c0_i32_1 = arith.constant 0 : i32
    return %arg0, %c0_i32, %c0_i32_0 : i32, i32, i32
  }
  func.func @transform_7(%arg0: i32, %arg1: memref<8xi32, #tpu.memory_space<smem>>) -> (i32, i32, i32) {
    %c0_i32 = arith.constant 0 : i32
    %c0_i32_0 = arith.constant 0 : i32
    %c0_i32_1 = arith.constant 0 : i32
    return %arg0, %c0_i32, %c0_i32_0 : i32, i32, i32
  }
  func.func @transform_8(%arg0: i32, %arg1: memref<8xi32, #tpu.memory_space<smem>>) -> (i32, i32, i32) {
    %c0_i32 = arith.constant 0 : i32
    %c0_i32_0 = arith.constant 0 : i32
    %c0_i32_1 = arith.constant 0 : i32
    return %arg0, %c0_i32, %c0_i32_0 : i32, i32, i32
  }
  func.func @transform_9(%arg0: i32, %arg1: memref<8xi32, #tpu.memory_space<smem>>) -> (i32, i32, i32) {
    %c0_i32 = arith.constant 0 : i32
    %c0_i32_0 = arith.constant 0 : i32
    %c0_i32_1 = arith.constant 0 : i32
    return %arg0, %c0_i32, %c0_i32_0 : i32, i32, i32
  }
  func.func @transform_10(%arg0: i32, %arg1: memref<8xi32, #tpu.memory_space<smem>>) -> (i32, i32, i32) {
    %c0_i32 = arith.constant 0 : i32
    %c0_i32_0 = arith.constant 0 : i32
    %c0_i32_1 = arith.constant 0 : i32
    return %arg0, %c0_i32, %c0_i32_0 : i32, i32, i32
  }
  func.func @transform_11(%arg0: i32, %arg1: memref<8xi32, #tpu.memory_space<smem>>) -> (i32, i32) {
    %c0_i32 = arith.constant 0 : i32
    %c0_i32_0 = arith.constant 0 : i32
    %c0_i32_1 = arith.constant 0 : i32
    return %c0_i32, %c0_i32_0 : i32, i32
  }
  func.func @transform_12(%arg0: i32, %arg1: memref<8xi32, #tpu.memory_space<smem>>) -> (i32, i32) {
    %c0_i32 = arith.constant 0 : i32
    %c0_i32_0 = arith.constant 0 : i32
    %c0_i32_1 = arith.constant 0 : i32
    return %c0_i32, %c0_i32_0 : i32, i32
  }
  func.func @transform_13(%arg0: i32, %arg1: memref<8xi32, #tpu.memory_space<smem>>) -> (i32, i32) {
    %c0_i32 = arith.constant 0 : i32
    %c0_i32_0 = arith.constant 0 : i32
    %c0_i32_1 = arith.constant 0 : i32
    return %c0_i32, %c0_i32_0 : i32, i32
  }
}

</mosaic_0001>

<llo_original>
// kernel: mistral_forward.1
$region0: #{mistral_forward.1}
  #allocation0 [shape = 'u32[]', space=smem, size = 0x4, offset = 0x4, fixed_abs, tag = 'smem constant byte address 0x4 - core index']
  #allocation1 [shape = 'u32[144,128]{1,0:T(1,128)}', space=vmem, size = 0x12000, scoped, tag = 'internal scratch']
  #allocation2 [shape = 'f32[8,32]{1,0:T(8,128)}', space=vmem, size = 0x1000, scoped, tag = 'scratch operand']
  #allocation3 [shape = 'f32[32,8]{1,0:T(8,128)}', space=vmem, size = 0x4000, scoped, tag = 'scratch operand']
  #allocation4 [shape = 's32[1]{0}', space=sflag, size = 0x4, scoped, tag = 'scratch operand']
  #allocation5 [shape = 's32[1]{0}', space=sflag, size = 0x4, scoped, tag = 'scoped memory for mistral_forward.1']
  #allocation6 [shape = 'u8[512]{0}', space=smem, size = 0x200, scoped, tag = 'prefetched SMEM operand 0']
  #allocation9 [shape = 's32[]', space=sflag, size = 0x4, offset = 0, fixed_abs, tag = 'sflag constant byte address 0x0 - dummy sync flag']
  #allocation10 [shape = 's32[]', space=sflag, size = 0x4, offset = 0, fixed_abs, tag = 'sflag constant byte address 0x0 - dummy sync flag']
  #allocation11 [shape = 's32[]', space=sflag, size = 0x4, offset = 0, fixed_abs, tag = 'sflag constant byte address 0x0 - dummy sync flag']
  #allocation12 [shape = 's32[]', space=sflag, size = 0x4, offset = 0, fixed_abs, tag = 'sflag constant byte address 0x0 - dummy sync flag']
  #allocation13 [shape = 's32[]', space=sflag, size = 0x4, offset = 0, fixed_abs, tag = 'sflag constant byte address 0x0 - dummy sync flag']
  #allocation14 [shape = 's32[]', space=sflag, size = 0x4, offset = 0, fixed_abs, tag = 'sflag constant byte address 0x0 - dummy sync flag']
  #allocation15 [shape = 's32[]', space=sflag, size = 0x4, offset = 0, fixed_abs, tag = 'sflag constant byte address 0x0 - dummy sync flag']
  #allocation16 [shape = 's32[]', space=sflag, size = 0x4, offset = 0, fixed_abs, tag = 'sflag constant byte address 0x0 - dummy sync flag']
  %s0 = inlined_call_operand.vmem [shape: s32[8], index: 0, kind: input, shape index: {}]
  %s1 = inlined_call_operand.vmem [shape: f32[3072,32], index: 1, kind: input, shape index: {}]
  %s2 = inlined_call_operand.vmem [shape: f32[32,128], index: 2, kind: input, shape index: {}]
  %s3 = inlined_call_operand.vmem [shape: f32[32,128], index: 3, kind: input, shape index: {}]
  %s4 = inlined_call_operand.vmem [shape: f32[8,128], index: 4, kind: input, shape index: {}]
  %s5 = inlined_call_operand.vmem [shape: f32[8,128], index: 5, kind: input, shape index: {}]
  %s6 = inlined_call_operand.vmem [shape: f32[4,1,32], index: 6, kind: input, shape index: {}]
  %s7 = inlined_call_operand.vmem [shape: bf16[4,32,1536], index: 7, kind: input, shape index: {}]
  %s8 = inlined_call_operand.vmem [shape: bf16[4,1024,32], index: 8, kind: input, shape index: {}]
  %s9 = inlined_call_operand.vmem [shape: f32[4,1,32], index: 9, kind: input, shape index: {}]
  %s10 = inlined_call_operand.vmem [shape: bf16[4,32,256], index: 10, kind: input, shape index: {}]
  %s11 = inlined_call_operand.vmem [shape: bf16[4,128,32], index: 11, kind: input, shape index: {}]
  %s12 = inlined_call_operand.vmem [shape: f32[1,32], index: 12, kind: input, shape index: {}]
  %s13 = inlined_call_operand.vmem [shape: bf16[32,3072], index: 13, kind: input, shape index: {}]
  %s14 = inlined_call_operand.hbm [shape: f32[8,3072], index: 14, kind: output, shape index: {}]
  %s15 = sld [smem:[#allocation0]]
  $region329: #{mistral_forward.1} parent=0
    _
  %s17 = ssub.s32 1, %s15
  %s18 = scalar_select 0, %s17, %s15
  %s19 = sshll.u32 %s0, 4
  %s20 = int_to_ptr.vmem [resolvable:$true] %s19
  %22 = dma.vmem_to_smem %s20, 16, [#allocation6], [#allocation5]
  %23 = dma.done [#allocation5], 16
  %24 = sfence
  $region1: #{mistral_forward.1} parent=0
    #allocation7 [shape = 'u8[98304]{0}', space=vmem, size = 0x18000, scoped, tag = 'output window, operand 0, single buffered']
    #allocation8 [shape = 's32[2]{0}', space=sflag, size = 0x8, scoped, tag = 'scoped memory for mistral_forward.1']
    %25 = vsyncpa [#allocation8], 0
    loop: start=0, step=1, limit=6
    $region2: #{mistral_forward.1} parent=1 // loop_pre_header
      _
    $region3: #{mistral_forward.1} parent=1 // loop_header
      %s27 = sphi 0, %s31
      %p28 = scmp.ge.s32.totalorder %s27, 6
      %s35 = sphi 0, %s35
      %s37 = sphi 0, %s35
      %s38 = sphi 0, %s37
      %s52 = sphi 0, %s38
      %s56 = sphi 0, %s56
      %s58 = sphi 0, %s56
      %s59 = sphi 0, %s58
      %s73 = sphi 0, %s59
      %s77 = sphi 0, %s77
      %s79 = sphi 0, %s77
      %s80 = sphi 0, %s79
      %s94 = sphi 0, %s80
      %s98 = sphi 0, %s98
      %s100 = sphi 0, %s98
      %s101 = sphi 0, %s100
      %s115 = sphi 0, %s101
      %s121 = sphi 0, %s123
      %s124 = sphi 0, %s121
      %s125 = sphi 0, %s124
      %s141 = sphi 0, %s125
      %s147 = sphi 0, %s149
      %s150 = sphi 0, %s147
      %s151 = sphi 0, %s150
      %s167 = sphi 0, %s151
      %s173 = sphi 0, %s175
      %s176 = sphi 0, %s173
      %s177 = sphi 0, %s176
      %s193 = sphi 0, %s177
      %s199 = sphi 0, %s201
      %s202 = sphi 0, %s199
      %s203 = sphi 0, %s202
      %s219 = sphi 0, %s203
      %s225 = sphi 0, %s227
      %s228 = sphi 0, %s225
      %s229 = sphi 0, %s228
      %s245 = sphi 0, %s229
      %s251 = sphi 0, %s253
      %s254 = sphi 0, %s251
      %s255 = sphi 0, %s254
      %s271 = sphi 0, %s255
      %s275 = sphi 0, %s275
      %s277 = sphi 0, %s275
      %s278 = sphi 0, %s277
      %s292 = sphi 0, %s278
      %s296 = sphi 0, %s296
      %s298 = sphi 0, %s296
      %s299 = sphi 0, %s298
      %s313 = sphi 0, %s299
      %s317 = sphi 0, %s317
      %s319 = sphi 0, %s317
      %s320 = sphi 0, %s319
      %s334 = sphi 0, %s320
    $region4: #{mistral_forward.1} parent=1 // loop_header_branch
      %30 = sbr.rel (%p28) target = $region8
    $region5: #{mistral_forward.1} parent=1 // loop_body
      %s32 = ssub.s32 %s27, 1
      %s33 = ssub.s32 %s27, 2
      %s34 = sadd.s32 %s27, 1
      %s36 = sadd.s32 %s35, 1
      %p39 = scmp.eq.s32.totalorder %s27, 3
      %p40 = scmp.ne.s32.totalorder %s35, %s37
      %p41 = scmp.eq.s32.totalorder %s27, 0
      %p42 = por %p40, %p41
      %p43 = scmp.ne.s32.totalorder %s35, %s37
      %p44 = scmp.eq.s32.totalorder %s32, 3
      %p45 = por %p43, %p44
      %p46 = scmp.ne.s32.totalorder %s37, %s38
      %p47 = scmp.eq.s32.totalorder %s32, 0
      %p48 = por %p46, %p47
      %p49 = scmp.ne.s32.totalorder %s37, %s38
      %p50 = scmp.eq.s32.totalorder %s33, 3
      %p51 = por %p49, %p50
      %p53 = scmp.ne.s32.totalorder %s38, %s52
      %p54 = scmp.eq.s32.totalorder %s33, 0
      %p55 = por %p53, %p54
      %s57 = sadd.s32 %s56, 1
      %p60 = scmp.eq.s32.totalorder %s27, 3
      %p61 = scmp.ne.s32.totalorder %s56, %s58
      %p62 = scmp.eq.s32.totalorder %s27, 0
      %p63 = por %p61, %p62
      %p64 = scmp.ne.s32.totalorder %s56, %s58
      %p65 = scmp.eq.s32.totalorder %s32, 3
      %p66 = por %p64, %p65
      %p67 = scmp.ne.s32.totalorder %s58, %s59
      %p68 = scmp.eq.s32.totalorder %s32, 0
      %p69 = por %p67, %p68
      %p70 = scmp.ne.s32.totalorder %s58, %s59
      %p71 = scmp.eq.s32.totalorder %s33, 3
      %p72 = por %p70, %p71
      %p74 = scmp.ne.s32.totalorder %s59, %s73
      %p75 = scmp.eq.s32.totalorder %s33, 0
      %p76 = por %p74, %p75
      %s78 = sadd.s32 %s77, 1
      %p81 = scmp.eq.s32.totalorder %s27, 3
      %p82 = scmp.ne.s32.totalorder %s77, %s79
      %p83 = scmp.eq.s32.totalorder %s27, 0
      %p84 = por %p82, %p83
      %p85 = scmp.ne.s32.totalorder %s77, %s79
      %p86 = scmp.eq.s32.totalorder %s32, 3
      %p87 = por %p85, %p86
      %p88 = scmp.ne.s32.totalorder %s79, %s80
      %p89 = scmp.eq.s32.totalorder %s32, 0
      %p90 = por %p88, %p89
      %p91 = scmp.ne.s32.totalorder %s79, %s80
      %p92 = scmp.eq.s32.totalorder %s33, 3
      %p93 = por %p91, %p92
      %p95 = scmp.ne.s32.totalorder %s80, %s94
      %p96 = scmp.eq.s32.totalorder %s33, 0
      %p97 = por %p95, %p96
      %s99 = sadd.s32 %s98, 1
      %p102 = scmp.eq.s32.totalorder %s27, 3
      %p103 = scmp.ne.s32.totalorder %s98, %s100
      %p104 = scmp.eq.s32.totalorder %s27, 0
      %p105 = por %p103, %p104
      %p106 = scmp.ne.s32.totalorder %s98, %s100
      %p107 = scmp.eq.s32.totalorder %s32, 3
      %p108 = por %p106, %p107
      %p109 = scmp.ne.s32.totalorder %s100, %s101
      %p110 = scmp.eq.s32.totalorder %s32, 0
      %p111 = por %p109, %p110
      %p112 = scmp.ne.s32.totalorder %s100, %s101
      %p113 = scmp.eq.s32.totalorder %s33, 3
      %p114 = por %p112, %p113
      %p116 = scmp.ne.s32.totalorder %s101, %s115
      %p117 = scmp.eq.s32.totalorder %s33, 0
      %p118 = por %p116, %p117
      %s119 = ssub.s32 %s27, %s34
      %p120 = scmp.eq.s32.totalorder %s119, 0
      %s122 = sadd.s32 %s121, 1
      %s123 = scalar_select %p120, %s121, %s122
      %p126 = pneg %p120
      %p127 = scmp.eq.s32.totalorder %s27, 3
      %p128 = por %p126, %p127
      %p129 = scmp.ne.s32.totalorder %s121, %s124
      %p130 = scmp.eq.s32.totalorder %s27, 0
      %p131 = por %p129, %p130
      %p132 = scmp.ne.s32.totalorder %s121, %s124
      %p133 = scmp.eq.s32.totalorder %s32, 3
      %p134 = por %p132, %p133
      %p135 = scmp.ne.s32.totalorder %s124, %s125
      %p136 = scmp.eq.s32.totalorder %s32, 0
      %p137 = por %p135, %p136
      %p138 = scmp.ne.s32.totalorder %s124, %s125
      %p139 = scmp.eq.s32.totalorder %s33, 3
      %p140 = por %p138, %p139
      %p142 = scmp.ne.s32.totalorder %s125, %s141
      %p143 = scmp.eq.s32.totalorder %s33, 0
      %p144 = por %p142, %p143
      %s145 = ssub.s32 %s27, %s34
      %p146 = scmp.eq.s32.totalorder %s145, 0
      %s148 = sadd.s32 %s147, 1
      %s149 = scalar_select %p146, %s147, %s148
      %p152 = pneg %p146
      %p153 = scmp.eq.s32.totalorder %s27, 3
      %p154 = por %p152, %p153
      %p155 = scmp.ne.s32.totalorder %s147, %s150
      %p156 = scmp.eq.s32.totalorder %s27, 0
      %p157 = por %p155, %p156
      %p158 = scmp.ne.s32.totalorder %s147, %s150
      %p159 = scmp.eq.s32.totalorder %s32, 3
      %p160 = por %p158, %p159
      %p161 = scmp.ne.s32.totalorder %s150, %s151
      %p162 = scmp.eq.s32.totalorder %s32, 0
      %p163 = por %p161, %p162
      %p164 = scmp.ne.s32.totalorder %s150, %s151
      %p165 = scmp.eq.s32.totalorder %s33, 3
      %p166 = por %p164, %p165
      %p168 = scmp.ne.s32.totalorder %s151, %s167
      %p169 = scmp.eq.s32.totalorder %s33, 0
      %p170 = por %p168, %p169
      %s171 = ssub.s32 %s27, %s34
      %p172 = scmp.eq.s32.totalorder %s171, 0
      %s174 = sadd.s32 %s173, 1
      %s175 = scalar_select %p172, %s173, %s174
      %p178 = pneg %p172
      %p179 = scmp.eq.s32.totalorder %s27, 3
      %p180 = por %p178, %p179
      %p181 = scmp.ne.s32.totalorder %s173, %s176
      %p182 = scmp.eq.s32.totalorder %s27, 0
      %p183 = por %p181, %p182
      %p184 = scmp.ne.s32.totalorder %s173, %s176
      %p185 = scmp.eq.s32.totalorder %s32, 3
      %p186 = por %p184, %p185
      %p187 = scmp.ne.s32.totalorder %s176, %s177
      %p188 = scmp.eq.s32.totalorder %s32, 0
      %p189 = por %p187, %p188
      %p190 = scmp.ne.s32.totalorder %s176, %s177
      %p191 = scmp.eq.s32.totalorder %s33, 3
      %p192 = por %p190, %p191
      %p194 = scmp.ne.s32.totalorder %s177, %s193
      %p195 = scmp.eq.s32.totalorder %s33, 0
      %p196 = por %p194, %p195
      %s197 = ssub.s32 %s27, %s34
      %p198 = scmp.eq.s32.totalorder %s197, 0
      %s200 = sadd.s32 %s199, 1
      %s201 = scalar_select %p198, %s199, %s200
      %p204 = pneg %p198
      %p205 = scmp.eq.s32.totalorder %s27, 3
      %p206 = por %p204, %p205
      %p207 = scmp.ne.s32.totalorder %s199, %s202
      %p208 = scmp.eq.s32.totalorder %s27, 0
      %p209 = por %p207, %p208
      %p210 = scmp.ne.s32.totalorder %s199, %s202
      %p211 = scmp.eq.s32.totalorder %s32, 3
      %p212 = por %p210, %p211
      %p213 = scmp.ne.s32.totalorder %s202, %s203
      %p214 = scmp.eq.s32.totalorder %s32, 0
      %p215 = por %p213, %p214
      %p216 = scmp.ne.s32.totalorder %s202, %s203
      %p217 = scmp.eq.s32.totalorder %s33, 3
      %p218 = por %p216, %p217
      %p220 = scmp.ne.s32.totalorder %s203, %s219
      %p221 = scmp.eq.s32.totalorder %s33, 0
      %p222 = por %p220, %p221
      %s223 = ssub.s32 %s27, %s34
      %p224 = scmp.eq.s32.totalorder %s223, 0
      %s226 = sadd.s32 %s225, 1
      %s227 = scalar_select %p224, %s225, %s226
      %p230 = pneg %p224
      %p231 = scmp.eq.s32.totalorder %s27, 3
      %p232 = por %p230, %p231
      %p233 = scmp.ne.s32.totalorder %s225, %s228
      %p234 = scmp.eq.s32.totalorder %s27, 0
      %p235 = por %p233, %p234
      %p236 = scmp.ne.s32.totalorder %s225, %s228
      %p237 = scmp.eq.s32.totalorder %s32, 3
      %p238 = por %p236, %p237
      %p239 = scmp.ne.s32.totalorder %s228, %s229
      %p240 = scmp.eq.s32.totalorder %s32, 0
      %p241 = por %p239, %p240
      %p242 = scmp.ne.s32.totalorder %s228, %s229
      %p243 = scmp.eq.s32.totalorder %s33, 3
      %p244 = por %p242, %p243
      %p246 = scmp.ne.s32.totalorder %s229, %s245
      %p247 = scmp.eq.s32.totalorder %s33, 0
      %p248 = por %p246, %p247
      %s249 = ssub.s32 %s27, %s34
      %p250 = scmp.eq.s32.totalorder %s249, 0
      %s252 = sadd.s32 %s251, 1
      %s253 = scalar_select %p250, %s251, %s252
      %p256 = pneg %p250
      %p257 = scmp.eq.s32.totalorder %s27, 3
      %p258 = por %p256, %p257
      %p259 = scmp.ne.s32.totalorder %s251, %s254
      %p260 = scmp.eq.s32.totalorder %s27, 0
      %p261 = por %p259, %p260
      %p262 = scmp.ne.s32.totalorder %s251, %s254
      %p263 = scmp.eq.s32.totalorder %s32, 3
      %p264 = por %p262, %p263
      %p265 = scmp.ne.s32.totalorder %s254, %s255
      %p266 = scmp.eq.s32.totalorder %s32, 0
      %p267 = por %p265, %p266
      %p268 = scmp.ne.s32.totalorder %s254, %s255
      %p269 = scmp.eq.s32.totalorder %s33, 3
      %p270 = por %p268, %p269
      %p272 = scmp.ne.s32.totalorder %s255, %s271
      %p273 = scmp.eq.s32.totalorder %s33, 0
      %p274 = por %p272, %p273
      %s276 = sadd.s32 %s275, 1
      %p279 = scmp.eq.s32.totalorder %s27, 3
      %p280 = scmp.ne.s32.totalorder %s275, %s277
      %p281 = scmp.eq.s32.totalorder %s27, 0
      %p282 = por %p280, %p281
      %p283 = scmp.ne.s32.totalorder %s275, %s277
      %p284 = scmp.eq.s32.totalorder %s32, 3
      %p285 = por %p283, %p284
      %p286 = scmp.ne.s32.totalorder %s277, %s278
      %p287 = scmp.eq.s32.totalorder %s32, 0
      %p288 = por %p286, %p287
      %p289 = scmp.ne.s32.totalorder %s277, %s278
      %p290 = scmp.eq.s32.totalorder %s33, 3
      %p291 = por %p289, %p290
      %p293 = scmp.ne.s32.totalorder %s278, %s292
      %p294 = scmp.eq.s32.totalorder %s33, 0
      %p295 = por %p293, %p294
      %s297 = sadd.s32 %s296, 1
      %p300 = scmp.eq.s32.totalorder %s27, 3
      %p301 = scmp.ne.s32.totalorder %s296, %s298
      %p302 = scmp.eq.s32.totalorder %s27, 0
      %p303 = por %p301, %p302
      %p304 = scmp.ne.s32.totalorder %s296, %s298
      %p305 = scmp.eq.s32.totalorder %s32, 3
      %p306 = por %p304, %p305
      %p307 = scmp.ne.s32.totalorder %s298, %s299
      %p308 = scmp.eq.s32.totalorder %s32, 0
      %p309 = por %p307, %p308
      %p310 = scmp.ne.s32.totalorder %s298, %s299
      %p311 = scmp.eq.s32.totalorder %s33, 3
      %p312 = por %p310, %p311
      %p314 = scmp.ne.s32.totalorder %s299, %s313
      %p315 = scmp.eq.s32.totalorder %s33, 0
      %p316 = por %p314, %p315
      %s318 = sadd.s32 %s317, 1
      %p321 = scmp.eq.s32.totalorder %s27, 3
      %p322 = scmp.ne.s32.totalorder %s317, %s319
      %p323 = scmp.eq.s32.totalorder %s27, 0
      %p324 = por %p322, %p323
      %p325 = scmp.ne.s32.totalorder %s317, %s319
      %p326 = scmp.eq.s32.totalorder %s32, 3
      %p327 = por %p325, %p326
      %p328 = scmp.ne.s32.totalorder %s319, %s320
      %p329 = scmp.eq.s32.totalorder %s32, 0
      %p330 = por %p328, %p329
      %p331 = scmp.ne.s32.totalorder %s319, %s320
      %p332 = scmp.eq.s32.totalorder %s33, 3
      %p333 = por %p331, %p332
      %p335 = scmp.ne.s32.totalorder %s320, %s334
      %p336 = scmp.eq.s32.totalorder %s33, 0
      %p337 = por %p335, %p336
      %p338 = scmp.le.s32.totalorder 1, %s27
      %p339 = scmp.lt.s32.totalorder %s27, 5
      %p340 = pnand %p338, %p339
      %p341 = pneg %p340
      // Predicated region
      $region9: #{mistral_forward.1} parent=5 // pred_check
        _
      $region10: #{mistral_forward.1} parent=5 // pred_check_branch
        %343 = sbr.rel (%p340) target = $region12
      $region11: #{mistral_forward.1} parent=5 // pred_region
        %s344 = ssub.s32 %s27, 1
        // Predicated region
        $region13: #{mistral_forward.1} parent=11 // pred_check
          %p345 = pneg %p48
        $region14: #{mistral_forward.1} parent=11 // pred_check_branch
          %347 = sbr.rel (%p345) target = $region16
        $region15: #{mistral_forward.1} parent=11 // pred_region
          _
        $region16: #{mistral_forward.1} parent=11 // pred_fallthru
          _
        // Predicated region
        $region17: #{mistral_forward.1} parent=11 // pred_check
          %p348 = pneg %p69
        $region18: #{mistral_forward.1} parent=11 // pred_check_branch
          %350 = sbr.rel (%p348) target = $region20
        $region19: #{mistral_forward.1} parent=11 // pred_region
          _
        $region20: #{mistral_forward.1} parent=11 // pred_fallthru
          _
        // Predicated region
        $region21: #{mistral_forward.1} parent=11 // pred_check
          %p351 = pneg %p90
        $region22: #{mistral_forward.1} parent=11 // pred_check_branch
          %353 = sbr.rel (%p351) target = $region24
        $region23: #{mistral_forward.1} parent=11 // pred_region
          _
        $region24: #{mistral_forward.1} parent=11 // pred_fallthru
          _
        // Predicated region
        $region25: #{mistral_forward.1} parent=11 // pred_check
          %p354 = pneg %p111
        $region26: #{mistral_forward.1} parent=11 // pred_check_branch
          %356 = sbr.rel (%p354) target = $region28
        $region27: #{mistral_forward.1} parent=11 // pred_region
          _
        $region28: #{mistral_forward.1} parent=11 // pred_fallthru
          _
        // Predicated region
        $region29: #{mistral_forward.1} parent=11 // pred_check
          %p357 = pneg %p288
        $region30: #{mistral_forward.1} parent=11 // pred_check_branch
          %359 = sbr.rel (%p357) target = $region32
        $region31: #{mistral_forward.1} parent=11 // pred_region
          _
        $region32: #{mistral_forward.1} parent=11 // pred_fallthru
          _
        // Predicated region
        $region33: #{mistral_forward.1} parent=11 // pred_check
          %p360 = pneg %p309
        $region34: #{mistral_forward.1} parent=11 // pred_check_branch
          %362 = sbr.rel (%p360) target = $region36
        $region35: #{mistral_forward.1} parent=11 // pred_region
          _
        $region36: #{mistral_forward.1} parent=11 // pred_fallthru
          _
      $region12: #{mistral_forward.1} parent=5 // pred_fallthru
        _
      %p363 = scmp.lt.s32.totalorder %s27, 4
      // Predicated region
      $region37: #{mistral_forward.1} parent=5 // pred_check
        %p364 = pneg %p363
      $region38: #{mistral_forward.1} parent=5 // pred_check_branch
        %366 = sbr.rel (%p364) target = $region40
      $region39: #{mistral_forward.1} parent=5 // pred_region
        // Predicated region
        $region41: #{mistral_forward.1} parent=39 // pred_check
          %p367 = pneg %p131
        $region42: #{mistral_forward.1} parent=39 // pred_check_branch
          %369 = sbr.rel (%p367) target = $region44
        $region43: #{mistral_forward.1} parent=39 // pred_region
          %p370 = scmp.lt.s32.totalorder %s27, 3
          %s371 = scalar_select %p370, %s27, 3
          %s372 = scalar_lea.vmem %s6, %s371
        $region44: #{mistral_forward.1} parent=39 // pred_fallthru
          _
        // Predicated region
        $region45: #{mistral_forward.1} parent=39 // pred_check
          %p373 = pneg %p157
        $region46: #{mistral_forward.1} parent=39 // pred_check_branch
          %375 = sbr.rel (%p373) target = $region48
        $region47: #{mistral_forward.1} parent=39 // pred_region
          %p376 = scmp.lt.s32.totalorder %s27, 3
          %s377 = scalar_select %p376, %s27, 3
          %s378 = smul.addr %s377, 48
          %s379 = smul.addr %s378, 4
          %s380 = scalar_lea.vmem %s7, %s379
        $region48: #{mistral_forward.1} parent=39 // pred_fallthru
          _
        // Predicated region
        $region49: #{mistral_forward.1} parent=39 // pred_check
          %p381 = pneg %p183
        $region50: #{mistral_forward.1} parent=39 // pred_check_branch
          %383 = sbr.rel (%p381) target = $region52
        $region51: #{mistral_forward.1} parent=39 // pred_region
          %p384 = scmp.lt.s32.totalorder %s27, 3
          %s385 = scalar_select %p384, %s27, 3
          %s386 = smul.addr %s385, 128
          %s387 = smul.addr %s386, 4
          %s388 = scalar_lea.vmem %s8, %s387
        $region52: #{mistral_forward.1} parent=39 // pred_fallthru
          _
        // Predicated region
        $region53: #{mistral_forward.1} parent=39 // pred_check
          %p389 = pneg %p209
        $region54: #{mistral_forward.1} parent=39 // pred_check_branch
          %391 = sbr.rel (%p389) target = $region56
        $region55: #{mistral_forward.1} parent=39 // pred_region
          %p392 = scmp.lt.s32.totalorder %s27, 3
          %s393 = scalar_select %p392, %s27, 3
          %s394 = scalar_lea.vmem %s9, %s393
        $region56: #{mistral_forward.1} parent=39 // pred_fallthru
          _
        // Predicated region
        $region57: #{mistral_forward.1} parent=39 // pred_check
          %p395 = pneg %p235
        $region58: #{mistral_forward.1} parent=39 // pred_check_branch
          %397 = sbr.rel (%p395) target = $region60
        $region59: #{mistral_forward.1} parent=39 // pred_region
          %p398 = scmp.lt.s32.totalorder %s27, 3
          %s399 = scalar_select %p398, %s27, 3
          %s400 = smul.addr %s399, 8
          %s401 = smul.addr %s400, 4
          %s402 = scalar_lea.vmem %s10, %s401
        $region60: #{mistral_forward.1} parent=39 // pred_fallthru
          _
        // Predicated region
        $region61: #{mistral_forward.1} parent=39 // pred_check
          %p403 = pneg %p261
        $region62: #{mistral_forward.1} parent=39 // pred_check_branch
          %405 = sbr.rel (%p403) target = $region64
        $region63: #{mistral_forward.1} parent=39 // pred_region
          %p406 = scmp.lt.s32.totalorder %s27, 3
          %s407 = scalar_select %p406, %s27, 3
          %s408 = smul.addr %s407, 16
          %s409 = smul.addr %s408, 4
          %s410 = scalar_lea.vmem %s11, %s409
        $region64: #{mistral_forward.1} parent=39 // pred_fallthru
          _
      $region40: #{mistral_forward.1} parent=5 // pred_fallthru
        _
      %p411 = scmp.le.s32.totalorder 1, %s27
      %p412 = scmp.lt.s32.totalorder %s27, 5
      %p413 = pnand %p411, %p412
      %p414 = pneg %p413
      // Predicated region
      $region65: #{mistral_forward.1} parent=5 // pred_check
        _
      $region66: #{mistral_forward.1} parent=5 // pred_check_branch
        %416 = sbr.rel (%p413) target = $region68
      $region67: #{mistral_forward.1} parent=5 // pred_region
        %s417 = ssub.s32 %s27, 1
        %p418 = pneg %p48
        %p419 = pneg %p45
        %p420 = pneg %p69
        %p421 = pneg %p66
        %p422 = pneg %p90
        %p423 = pneg %p87
        %p424 = pneg %p111
        %p425 = pneg %p108
        %p426 = scmp.lt.s32.totalorder %s32, 3
        %s427 = scalar_select %p426, %s32, 3
        %s428 = scalar_lea.vmem %s6, %s427
        %p429 = pneg %p137
        %p430 = pneg %p134
        %p431 = scmp.lt.s32.totalorder %s32, 3
        %s432 = scalar_select %p431, %s32, 3
        %s433 = smul.addr %s432, 48
        %s434 = smul.addr %s433, 4
        %s435 = scalar_lea.vmem %s7, %s434
        %p436 = pneg %p163
        %p437 = pneg %p160
        %p438 = scmp.lt.s32.totalorder %s32, 3
        %s439 = scalar_select %p438, %s32, 3
        %s440 = smul.addr %s439, 128
        %s441 = smul.addr %s440, 4
        %s442 = scalar_lea.vmem %s8, %s441
        %p443 = pneg %p189
        %p444 = pneg %p186
        %p445 = scmp.lt.s32.totalorder %s32, 3
        %s446 = scalar_select %p445, %s32, 3
        %s447 = scalar_lea.vmem %s9, %s446
        %p448 = pneg %p215
        %p449 = pneg %p212
        %p450 = scmp.lt.s32.totalorder %s32, 3
        %s451 = scalar_select %p450, %s32, 3
        %s452 = smul.addr %s451, 8
        %s453 = smul.addr %s452, 4
        %s454 = scalar_lea.vmem %s10, %s453
        %p455 = pneg %p241
        %p456 = pneg %p238
        %p457 = scmp.lt.s32.totalorder %s32, 3
        %s458 = scalar_select %p457, %s32, 3
        %s459 = smul.addr %s458, 16
        %s460 = smul.addr %s459, 4
        %s461 = scalar_lea.vmem %s11, %s460
        %p462 = pneg %p267
        %p463 = pneg %p264
        %p464 = pneg %p288
        %p465 = pneg %p285
        %p466 = pneg %p309
        %p467 = pneg %p306
        %p468 = pneg %p330
        %p469 = pneg %p327
        %p470 = scmp.lt.s32.totalorder %s32, 3
        %s471 = scalar_select %p470, %s32, 3
        %s472 = scalar_lea.vmem %s6, %s471
        %p473 = scmp.lt.s32.totalorder %s32, 3
        %s474 = scalar_select %p473, %s32, 3
        %s475 = smul.addr %s474, 48
        %s476 = smul.addr %s475, 4
        %s477 = scalar_lea.vmem %s7, %s476
        %p478 = scmp.lt.s32.totalorder %s32, 3
        %s479 = scalar_select %p478, %s32, 3
        %s480 = smul.addr %s479, 128
        %s481 = smul.addr %s480, 4
        %s482 = scalar_lea.vmem %s8, %s481
        %p483 = scmp.lt.s32.totalorder %s32, 3
        %s484 = scalar_select %p483, %s32, 3
        %s485 = scalar_lea.vmem %s9, %s484
        %p486 = scmp.lt.s32.totalorder %s32, 3
        %s487 = scalar_select %p486, %s32, 3
        %s488 = smul.addr %s487, 8
        %s489 = smul.addr %s488, 4
        %s490 = scalar_lea.vmem %s10, %s489
        %p491 = scmp.lt.s32.totalorder %s32, 3
        %s492 = scalar_select %p491, %s32, 3
        %s493 = smul.addr %s492, 16
        %s494 = smul.addr %s493, 4
        %s495 = scalar_lea.vmem %s11, %s494
        %p497 = scmp.eq.s32.totalorder %s32, 0
        // Predicated region
        $region69: #{mistral_forward.1} parent=67 // pred_check
          %p498 = pneg %p497
        $region70: #{mistral_forward.1} parent=67 // pred_check_branch
          %500 = sbr.rel (%p498) target = $region72
        $region71: #{mistral_forward.1} parent=67 // pred_region
          %s501 = sld [smem:[#allocation6]]
          %s502 = scalar_lea.vmem %s1, %s501
          %p504 = scmp.lt.u32.totalorder 1, 8
          %p505 = pneg %p504
          // Predicated region
          $region73: #{mistral_forward.1} parent=71 // pred_check
            _
          $region74: #{mistral_forward.1} parent=71 // pred_check_branch
            %507 = sbr.rel (%p504) target = $region76
          $region75: #{mistral_forward.1} parent=71 // pred_region
            %s522 = sand.u32 1, 7
            %p523 = scmp.eq.s32.totalorder %s522, 0
            %p524 = pneg %p523
            // Predicated region
            $region88: #{mistral_forward.1} parent=75 // pred_check
              _
            $region89: #{mistral_forward.1} parent=75 // pred_check_branch
              %526 = sbr.rel (%p523) target = $region91
            $region90: #{mistral_forward.1} parent=75 // pred_region
              %s527 = sand.u32 1, 7
              %s528 = ssub.s32 1, %s527
              %s529 = scalar_lea.vmem %s502, %s528
              %s530 = ssub.s32 1, %s527
              %s531 = scalar_lea.vmem [#allocation2], %s530
              %s532 = sshllo.u32 0, %s527
              loop: start=0, step=1, limit=1
              $region92: #{mistral_forward.1} parent=90 // loop_pre_header
                _
              $region93: #{mistral_forward.1} parent=90 // loop_header
                %s534 = sphi 0, %s538
                %p535 = scmp.ge.s32.totalorder %s534, 1
                %s539 = sphi %s529, %s529
                %s540 = sphi %s531, %s531
              $region94: #{mistral_forward.1} parent=90 // loop_header_branch
                %537 = sbr.rel (%p535) target = $region98
              $region95: #{mistral_forward.1} parent=90 // loop_body
                %v541 = vld [vmem:[%s539] sm:%s532]
                %542 = vst [vmem:[%s540] sm:%s532] %v541
              $region96: #{mistral_forward.1} parent=90 // loop_footer
                %s538 = sadd.s32 1, %s534
              $region97: #{mistral_forward.1} parent=90 // loop_footer_branch
                %533 = sbr.rel target = $region93
              $region98: #{mistral_forward.1} parent=90 // loop_exit
                _
            $region91: #{mistral_forward.1} parent=75 // pred_fallthru
              _
          $region76: #{mistral_forward.1} parent=71 // pred_fallthru
            _
          // Predicated region
          $region77: #{mistral_forward.1} parent=71 // pred_check
            %p508 = pneg %p504
          $region78: #{mistral_forward.1} parent=71 // pred_check_branch
            %510 = sbr.rel (%p508) target = $region80
          $region79: #{mistral_forward.1} parent=71 // pred_region
            %s511 = sshllo.u32 0, 1
            loop: start=0, step=1, limit=1
            $region81: #{mistral_forward.1} parent=79 // loop_pre_header
              _
            $region82: #{mistral_forward.1} parent=79 // loop_header
              %s513 = sphi 0, %s517
              %p514 = scmp.ge.s32.totalorder %s513, 1
              %s518 = sphi %s502, %s502
              %s519 = sphi [#allocation2], [#allocation2]
            $region83: #{mistral_forward.1} parent=79 // loop_header_branch
              %516 = sbr.rel (%p514) target = $region87
            $region84: #{mistral_forward.1} parent=79 // loop_body
              %v520 = vld [vmem:[%s518] sm:%s511]
              %521 = vst [vmem:[%s519] sm:%s511] %v520
            $region85: #{mistral_forward.1} parent=79 // loop_footer
              %s517 = sadd.s32 1, %s513
            $region86: #{mistral_forward.1} parent=79 // loop_footer_branch
              %512 = sbr.rel target = $region82
            $region87: #{mistral_forward.1} parent=79 // loop_exit
              _
          $region80: #{mistral_forward.1} parent=71 // pred_fallthru
            _
          // Predicated region
          $region99: #{mistral_forward.1} parent=71 // pred_check
            _
          $region100: #{mistral_forward.1} parent=71 // pred_check_branch
            %545 = sbr.rel (0) target = $region102
          $region101: #{mistral_forward.1} parent=71 // pred_region
            %546 = vsyncadd [#allocation4], 16
          $region102: #{mistral_forward.1} parent=71 // pred_fallthru
            _
          %s547 = smul.u32 1, 1
          %s548 = sshll.u32 %s547, 4
          %549 = dma.done [#allocation4], %s548
          %s550 = sld [smem:[#allocation6 + $0x1]]
          %s551 = scalar_lea.vmem %s1, %s550
          %s552 = scalar_lea.vmem [#allocation2], 1
          %p554 = scmp.lt.u32.totalorder 1, 8
          %p555 = pneg %p554
          // Predicated region
          $region103: #{mistral_forward.1} parent=71 // pred_check
            _
          $region104: #{mistral_forward.1} parent=71 // pred_check_branch
            %557 = sbr.rel (%p554) target = $region106
          $region105: #{mistral_forward.1} parent=71 // pred_region
            %s572 = sand.u32 1, 7
            %p573 = scmp.eq.s32.totalorder %s572, 0
            %p574 = pneg %p573
            // Predicated region
            $region118: #{mistral_forward.1} parent=105 // pred_check
              _
            $region119: #{mistral_forward.1} parent=105 // pred_check_branch
              %576 = sbr.rel (%p573) target = $region121
            $region120: #{mistral_forward.1} parent=105 // pred_region
              %s577 = sand.u32 1, 7
              %s578 = ssub.s32 1, %s577
              %s579 = scalar_lea.vmem %s551, %s578
              %s580 = ssub.s32 1, %s577
              %s581 = scalar_lea.vmem %s552, %s580 [#allocation2]
              %s582 = sshllo.u32 0, %s577
              loop: start=0, step=1, limit=1
              $region122: #{mistral_forward.1} parent=120 // loop_pre_header
                _
              $region123: #{mistral_forward.1} parent=120 // loop_header
                %s584 = sphi 0, %s588
                %p585 = scmp.ge.s32.totalorder %s584, 1
                %s589 = sphi %s579, %s579
                %s590 = sphi %s581, %s581
              $region124: #{mistral_forward.1} parent=120 // loop_header_branch
                %587 = sbr.rel (%p585) target = $region128
              $region125: #{mistral_forward.1} parent=120 // loop_body
                %v591 = vld [vmem:[%s589] sm:%s582]
                %592 = vst [vmem:[%s590] sm:%s582] %v591
              $region126: #{mistral_forward.1} parent=120 // loop_footer
                %s588 = sadd.s32 1, %s584
              $region127: #{mistral_forward.1} parent=120 // loop_footer_branch
                %583 = sbr.rel target = $region123
              $region128: #{mistral_forward.1} parent=120 // loop_exit
                _
            $region121: #{mistral_forward.1} parent=105 // pred_fallthru
              _
          $region106: #{mistral_forward.1} parent=71 // pred_fallthru
            _
          // Predicated region
          $region107: #{mistral_forward.1} parent=71 // pred_check
            %p558 = pneg %p554
          $region108: #{mistral_forward.1} parent=71 // pred_check_branch
            %560 = sbr.rel (%p558) target = $region110
          $region109: #{mistral_forward.1} parent=71 // pred_region
            %s561 = sshllo.u32 0, 1
            loop: start=0, step=1, limit=1
            $region111: #{mistral_forward.1} parent=109 // loop_pre_header
              _
            $region112: #{mistral_forward.1} parent=109 // loop_header
              %s563 = sphi 0, %s567
              %p564 = scmp.ge.s32.totalorder %s563, 1
              %s568 = sphi %s551, %s551
              %s569 = sphi %s552, %s552
            $region113: #{mistral_forward.1} parent=109 // loop_header_branch
              %566 = sbr.rel (%p564) target = $region117
            $region114: #{mistral_forward.1} parent=109 // loop_body
              %v570 = vld [vmem:[%s568] sm:%s561]
              %571 = vst [vmem:[%s569] sm:%s561] %v570
            $region115: #{mistral_forward.1} parent=109 // loop_footer
              %s567 = sadd.s32 1, %s563
            $region116: #{mistral_forward.1} parent=109 // loop_footer_branch
              %562 = sbr.rel target = $region112
            $region117: #{mistral_forward.1} parent=109 // loop_exit
              _
          $region110: #{mistral_forward.1} parent=71 // pred_fallthru
            _
          // Predicated region
          $region129: #{mistral_forward.1} parent=71 // pred_check
            _
          $region130: #{mistral_forward.1} parent=71 // pred_check_branch
            %595 = sbr.rel (0) target = $region132
          $region131: #{mistral_forward.1} parent=71 // pred_region
            %596 = vsyncadd [#allocation4], 16
          $region132: #{mistral_forward.1} parent=71 // pred_fallthru
            _
          %s597 = sshll.u32 %s547, 4
          %598 = dma.done [#allocation4], %s597
          %s599 = sld [smem:[#allocation6 + $0x2]]
          %s600 = scalar_lea.vmem %s1, %s599
          %s601 = scalar_lea.vmem [#allocation2], 2
          %p603 = scmp.lt.u32.totalorder 1, 8
          %p604 = pneg %p603
          // Predicated region
          $region133: #{mistral_forward.1} parent=71 // pred_check
            _
          $region134: #{mistral_forward.1} parent=71 // pred_check_branch
            %606 = sbr.rel (%p603) target = $region136
          $region135: #{mistral_forward.1} parent=71 // pred_region
            %s621 = sand.u32 1, 7
            %p622 = scmp.eq.s32.totalorder %s621, 0
            %p623 = pneg %p622
            // Predicated region
            $region148: #{mistral_forward.1} parent=135 // pred_check
              _
            $region149: #{mistral_forward.1} parent=135 // pred_check_branch
              %625 = sbr.rel (%p622) target = $region151
            $region150: #{mistral_forward.1} parent=135 // pred_region
              %s626 = sand.u32 1, 7
              %s627 = ssub.s32 1, %s626
              %s628 = scalar_lea.vmem %s600, %s627
              %s629 = ssub.s32 1, %s626
              %s630 = scalar_lea.vmem %s601, %s629 [#allocation2]
              %s631 = sshllo.u32 0, %s626
              loop: start=0, step=1, limit=1
              $region152: #{mistral_forward.1} parent=150 // loop_pre_header
                _
              $region153: #{mistral_forward.1} parent=150 // loop_header
                %s633 = sphi 0, %s637
                %p634 = scmp.ge.s32.totalorder %s633, 1
                %s638 = sphi %s628, %s628
                %s639 = sphi %s630, %s630
              $region154: #{mistral_forward.1} parent=150 // loop_header_branch
                %636 = sbr.rel (%p634) target = $region158
              $region155: #{mistral_forward.1} parent=150 // loop_body
                %v640 = vld [vmem:[%s638] sm:%s631]
                %641 = vst [vmem:[%s639] sm:%s631] %v640
              $region156: #{mistral_forward.1} parent=150 // loop_footer
                %s637 = sadd.s32 1, %s633
              $region157: #{mistral_forward.1} parent=150 // loop_footer_branch
                %632 = sbr.rel target = $region153
              $region158: #{mistral_forward.1} parent=150 // loop_exit
                _
            $region151: #{mistral_forward.1} parent=135 // pred_fallthru
              _
          $region136: #{mistral_forward.1} parent=71 // pred_fallthru
            _
          // Predicated region
          $region137: #{mistral_forward.1} parent=71 // pred_check
            %p607 = pneg %p603
          $region138: #{mistral_forward.1} parent=71 // pred_check_branch
            %609 = sbr.rel (%p607) target = $region140
          $region139: #{mistral_forward.1} parent=71 // pred_region
            %s610 = sshllo.u32 0, 1
            loop: start=0, step=1, limit=1
            $region141: #{mistral_forward.1} parent=139 // loop_pre_header
              _
            $region142: #{mistral_forward.1} parent=139 // loop_header
              %s612 = sphi 0, %s616
              %p613 = scmp.ge.s32.totalorder %s612, 1
              %s617 = sphi %s600, %s600
              %s618 = sphi %s601, %s601
            $region143: #{mistral_forward.1} parent=139 // loop_header_branch
              %615 = sbr.rel (%p613) target = $region147
            $region144: #{mistral_forward.1} parent=139 // loop_body
              %v619 = vld [vmem:[%s617] sm:%s610]
              %620 = vst [vmem:[%s618] sm:%s610] %v619
            $region145: #{mistral_forward.1} parent=139 // loop_footer
              %s616 = sadd.s32 1, %s612
            $region146: #{mistral_forward.1} parent=139 // loop_footer_branch
              %611 = sbr.rel target = $region142
            $region147: #{mistral_forward.1} parent=139 // loop_exit
              _
          $region140: #{mistral_forward.1} parent=71 // pred_fallthru
            _
          // Predicated region
          $region159: #{mistral_forward.1} parent=71 // pred_check
            _
          $region160: #{mistral_forward.1} parent=71 // pred_check_branch
            %644 = sbr.rel (0) target = $region162
          $region161: #{mistral_forward.1} parent=71 // pred_region
            %645 = vsyncadd [#allocation4], 16
          $region162: #{mistral_forward.1} parent=71 // pred_fallthru
            _
          %s646 = sshll.u32 %s547, 4
          %647 = dma.done [#allocation4], %s646
          %s648 = sld [smem:[#allocation6 + $0x3]]
          %s649 = scalar_lea.vmem %s1, %s648
          %s650 = scalar_lea.vmem [#allocation2], 3
          %p652 = scmp.lt.u32.totalorder 1, 8
          %p653 = pneg %p652
          // Predicated region
          $region163: #{mistral_forward.1} parent=71 // pred_check
            _
          $region164: #{mistral_forward.1} parent=71 // pred_check_branch
            %655 = sbr.rel (%p652) target = $region166
          $region165: #{mistral_forward.1} parent=71 // pred_region
            %s670 = sand.u32 1, 7
            %p671 = scmp.eq.s32.totalorder %s670, 0
            %p672 = pneg %p671
            // Predicated region
            $region178: #{mistral_forward.1} parent=165 // pred_check
              _
            $region179: #{mistral_forward.1} parent=165 // pred_check_branch
              %674 = sbr.rel (%p671) target = $region181
            $region180: #{mistral_forward.1} parent=165 // pred_region
              %s675 = sand.u32 1, 7
              %s676 = ssub.s32 1, %s675
              %s677 = scalar_lea.vmem %s649, %s676
              %s678 = ssub.s32 1, %s675
              %s679 = scalar_lea.vmem %s650, %s678 [#allocation2]
              %s680 = sshllo.u32 0, %s675
              loop: start=0, step=1, limit=1
              $region182: #{mistral_forward.1} parent=180 // loop_pre_header
                _
              $region183: #{mistral_forward.1} parent=180 // loop_header
                %s682 = sphi 0, %s686
                %p683 = scmp.ge.s32.totalorder %s682, 1
                %s687 = sphi %s677, %s677
                %s688 = sphi %s679, %s679
              $region184: #{mistral_forward.1} parent=180 // loop_header_branch
                %685 = sbr.rel (%p683) target = $region188
              $region185: #{mistral_forward.1} parent=180 // loop_body
                %v689 = vld [vmem:[%s687] sm:%s680]
                %690 = vst [vmem:[%s688] sm:%s680] %v689
              $region186: #{mistral_forward.1} parent=180 // loop_footer
                %s686 = sadd.s32 1, %s682
              $region187: #{mistral_forward.1} parent=180 // loop_footer_branch
                %681 = sbr.rel target = $region183
              $region188: #{mistral_forward.1} parent=180 // loop_exit
                _
            $region181: #{mistral_forward.1} parent=165 // pred_fallthru
              _
          $region166: #{mistral_forward.1} parent=71 // pred_fallthru
            _
          // Predicated region
          $region167: #{mistral_forward.1} parent=71 // pred_check
            %p656 = pneg %p652
          $region168: #{mistral_forward.1} parent=71 // pred_check_branch
            %658 = sbr.rel (%p656) target = $region170
          $region169: #{mistral_forward.1} parent=71 // pred_region
            %s659 = sshllo.u32 0, 1
            loop: start=0, step=1, limit=1
            $region171: #{mistral_forward.1} parent=169 // loop_pre_header
              _
            $region172: #{mistral_forward.1} parent=169 // loop_header
              %s661 = sphi 0, %s665
              %p662 = scmp.ge.s32.totalorder %s661, 1
              %s666 = sphi %s649, %s649
              %s667 = sphi %s650, %s650
            $region173: #{mistral_forward.1} parent=169 // loop_header_branch
              %664 = sbr.rel (%p662) target = $region177
            $region174: #{mistral_forward.1} parent=169 // loop_body
              %v668 = vld [vmem:[%s666] sm:%s659]
              %669 = vst [vmem:[%s667] sm:%s659] %v668
            $region175: #{mistral_forward.1} parent=169 // loop_footer
              %s665 = sadd.s32 1, %s661
            $region176: #{mistral_forward.1} parent=169 // loop_footer_branch
              %660 = sbr.rel target = $region172
            $region177: #{mistral_forward.1} parent=169 // loop_exit
              _
          $region170: #{mistral_forward.1} parent=71 // pred_fallthru
            _
          // Predicated region
          $region189: #{mistral_forward.1} parent=71 // pred_check
            _
          $region190: #{mistral_forward.1} parent=71 // pred_check_branch
            %693 = sbr.rel (0) target = $region192
          $region191: #{mistral_forward.1} parent=71 // pred_region
            %694 = vsyncadd [#allocation4], 16
          $region192: #{mistral_forward.1} parent=71 // pred_fallthru
            _
          %s695 = sshll.u32 %s547, 4
          %696 = dma.done [#allocation4], %s695
          %s697 = sld [smem:[#allocation6 + $0x4]]
          %s698 = scalar_lea.vmem %s1, %s697
          %s699 = scalar_lea.vmem [#allocation2], 4
          %p701 = scmp.lt.u32.totalorder 1, 8
          %p702 = pneg %p701
          // Predicated region
          $region193: #{mistral_forward.1} parent=71 // pred_check
            _
          $region194: #{mistral_forward.1} parent=71 // pred_check_branch
            %704 = sbr.rel (%p701) target = $region196
          $region195: #{mistral_forward.1} parent=71 // pred_region
            %s719 = sand.u32 1, 7
            %p720 = scmp.eq.s32.totalorder %s719, 0
            %p721 = pneg %p720
            // Predicated region
            $region208: #{mistral_forward.1} parent=195 // pred_check
              _
            $region209: #{mistral_forward.1} parent=195 // pred_check_branch
              %723 = sbr.rel (%p720) target = $region211
            $region210: #{mistral_forward.1} parent=195 // pred_region
              %s724 = sand.u32 1, 7
              %s725 = ssub.s32 1, %s724
              %s726 = scalar_lea.vmem %s698, %s725
              %s727 = ssub.s32 1, %s724
              %s728 = scalar_lea.vmem %s699, %s727 [#allocation2]
              %s729 = sshllo.u32 0, %s724
              loop: start=0, step=1, limit=1
              $region212: #{mistral_forward.1} parent=210 // loop_pre_header
                _
              $region213: #{mistral_forward.1} parent=210 // loop_header
                %s731 = sphi 0, %s735
                %p732 = scmp.ge.s32.totalorder %s731, 1
                %s736 = sphi %s726, %s726
                %s737 = sphi %s728, %s728
              $region214: #{mistral_forward.1} parent=210 // loop_header_branch
                %734 = sbr.rel (%p732) target = $region218
              $region215: #{mistral_forward.1} parent=210 // loop_body
                %v738 = vld [vmem:[%s736] sm:%s729]
                %739 = vst [vmem:[%s737] sm:%s729] %v738
              $region216: #{mistral_forward.1} parent=210 // loop_footer
                %s735 = sadd.s32 1, %s731
              $region217: #{mistral_forward.1} parent=210 // loop_footer_branch
                %730 = sbr.rel target = $region213
              $region218: #{mistral_forward.1} parent=210 // loop_exit
                _
            $region211: #{mistral_forward.1} parent=195 // pred_fallthru
              _
          $region196: #{mistral_forward.1} parent=71 // pred_fallthru
            _
          // Predicated region
          $region197: #{mistral_forward.1} parent=71 // pred_check
            %p705 = pneg %p701
          $region198: #{mistral_forward.1} parent=71 // pred_check_branch
            %707 = sbr.rel (%p705) target = $region200
          $region199: #{mistral_forward.1} parent=71 // pred_region
            %s708 = sshllo.u32 0, 1
            loop: start=0, step=1, limit=1
            $region201: #{mistral_forward.1} parent=199 // loop_pre_header
              _
            $region202: #{mistral_forward.1} parent=199 // loop_header
              %s710 = sphi 0, %s714
              %p711 = scmp.ge.s32.totalorder %s710, 1
              %s715 = sphi %s698, %s698
              %s716 = sphi %s699, %s699
            $region203: #{mistral_forward.1} parent=199 // loop_header_branch
              %713 = sbr.rel (%p711) target = $region207
            $region204: #{mistral_forward.1} parent=199 // loop_body
              %v717 = vld [vmem:[%s715] sm:%s708]
              %718 = vst [vmem:[%s716] sm:%s708] %v717
            $region205: #{mistral_forward.1} parent=199 // loop_footer
              %s714 = sadd.s32 1, %s710
            $region206: #{mistral_forward.1} parent=199 // loop_footer_branch
              %709 = sbr.rel target = $region202
            $region207: #{mistral_forward.1} parent=199 // loop_exit
              _
          $region200: #{mistral_forward.1} parent=71 // pred_fallthru
            _
          // Predicated region
          $region219: #{mistral_forward.1} parent=71 // pred_check
            _
          $region220: #{mistral_forward.1} parent=71 // pred_check_branch
            %742 = sbr.rel (0) target = $region222
          $region221: #{mistral_forward.1} parent=71 // pred_region
            %743 = vsyncadd [#allocation4], 16
          $region222: #{mistral_forward.1} parent=71 // pred_fallthru
            _
          %s744 = sshll.u32 %s547, 4
          %745 = dma.done [#allocation4], %s744
          %s746 = sld [smem:[#allocation6 + $0x5]]
          %s747 = scalar_lea.vmem %s1, %s746
          %s748 = scalar_lea.vmem [#allocation2], 5
          %p750 = scmp.lt.u32.totalorder 1, 8
          %p751 = pneg %p750
          // Predicated region
          $region223: #{mistral_forward.1} parent=71 // pred_check
            _
          $region224: #{mistral_forward.1} parent=71 // pred_check_branch
            %753 = sbr.rel (%p750) target = $region226
          $region225: #{mistral_forward.1} parent=71 // pred_region
            %s768 = sand.u32 1, 7
            %p769 = scmp.eq.s32.totalorder %s768, 0
            %p770 = pneg %p769
            // Predicated region
            $region238: #{mistral_forward.1} parent=225 // pred_check
              _
            $region239: #{mistral_forward.1} parent=225 // pred_check_branch
              %772 = sbr.rel (%p769) target = $region241
            $region240: #{mistral_forward.1} parent=225 // pred_region
              %s773 = sand.u32 1, 7
              %s774 = ssub.s32 1, %s773
              %s775 = scalar_lea.vmem %s747, %s774
              %s776 = ssub.s32 1, %s773
              %s777 = scalar_lea.vmem %s748, %s776 [#allocation2]
              %s778 = sshllo.u32 0, %s773
              loop: start=0, step=1, limit=1
              $region242: #{mistral_forward.1} parent=240 // loop_pre_header
                _
              $region243: #{mistral_forward.1} parent=240 // loop_header
                %s780 = sphi 0, %s784
                %p781 = scmp.ge.s32.totalorder %s780, 1
                %s785 = sphi %s775, %s775
                %s786 = sphi %s777, %s777
              $region244: #{mistral_forward.1} parent=240 // loop_header_branch
                %783 = sbr.rel (%p781) target = $region248
              $region245: #{mistral_forward.1} parent=240 // loop_body
                %v787 = vld [vmem:[%s785] sm:%s778]
                %788 = vst [vmem:[%s786] sm:%s778] %v787
              $region246: #{mistral_forward.1} parent=240 // loop_footer
                %s784 = sadd.s32 1, %s780
              $region247: #{mistral_forward.1} parent=240 // loop_footer_branch
                %779 = sbr.rel target = $region243
              $region248: #{mistral_forward.1} parent=240 // loop_exit
                _
            $region241: #{mistral_forward.1} parent=225 // pred_fallthru
              _
          $region226: #{mistral_forward.1} parent=71 // pred_fallthru
            _
          // Predicated region
          $region227: #{mistral_forward.1} parent=71 // pred_check
            %p754 = pneg %p750
          $region228: #{mistral_forward.1} parent=71 // pred_check_branch
            %756 = sbr.rel (%p754) target = $region230
          $region229: #{mistral_forward.1} parent=71 // pred_region
            %s757 = sshllo.u32 0, 1
            loop: start=0, step=1, limit=1
            $region231: #{mistral_forward.1} parent=229 // loop_pre_header
              _
            $region232: #{mistral_forward.1} parent=229 // loop_header
              %s759 = sphi 0, %s763
              %p760 = scmp.ge.s32.totalorder %s759, 1
              %s764 = sphi %s747, %s747
              %s765 = sphi %s748, %s748
            $region233: #{mistral_forward.1} parent=229 // loop_header_branch
              %762 = sbr.rel (%p760) target = $region237
            $region234: #{mistral_forward.1} parent=229 // loop_body
              %v766 = vld [vmem:[%s764] sm:%s757]
              %767 = vst [vmem:[%s765] sm:%s757] %v766
            $region235: #{mistral_forward.1} parent=229 // loop_footer
              %s763 = sadd.s32 1, %s759
            $region236: #{mistral_forward.1} parent=229 // loop_footer_branch
              %758 = sbr.rel target = $region232
            $region237: #{mistral_forward.1} parent=229 // loop_exit
              _
          $region230: #{mistral_forward.1} parent=71 // pred_fallthru
            _
          // Predicated region
          $region249: #{mistral_forward.1} parent=71 // pred_check
            _
          $region250: #{mistral_forward.1} parent=71 // pred_check_branch
            %791 = sbr.rel (0) target = $region252
          $region251: #{mistral_forward.1} parent=71 // pred_region
            %792 = vsyncadd [#allocation4], 16
          $region252: #{mistral_forward.1} parent=71 // pred_fallthru
            _
          %s793 = sshll.u32 %s547, 4
          %794 = dma.done [#allocation4], %s793
          %s795 = sld [smem:[#allocation6 + $0x6]]
          %s796 = scalar_lea.vmem %s1, %s795
          %s797 = scalar_lea.vmem [#allocation2], 6
          %p799 = scmp.lt.u32.totalorder 1, 8
          %p800 = pneg %p799
          // Predicated region
          $region253: #{mistral_forward.1} parent=71 // pred_check
            _
          $region254: #{mistral_forward.1} parent=71 // pred_check_branch
            %802 = sbr.rel (%p799) target = $region256
          $region255: #{mistral_forward.1} parent=71 // pred_region
            %s817 = sand.u32 1, 7
            %p818 = scmp.eq.s32.totalorder %s817, 0
            %p819 = pneg %p818
            // Predicated region
            $region268: #{mistral_forward.1} parent=255 // pred_check
              _
            $region269: #{mistral_forward.1} parent=255 // pred_check_branch
              %821 = sbr.rel (%p818) target = $region271
            $region270: #{mistral_forward.1} parent=255 // pred_region
              %s822 = sand.u32 1, 7
              %s823 = ssub.s32 1, %s822
              %s824 = scalar_lea.vmem %s796, %s823
              %s825 = ssub.s32 1, %s822
              %s826 = scalar_lea.vmem %s797, %s825 [#allocation2]
              %s827 = sshllo.u32 0, %s822
              loop: start=0, step=1, limit=1
              $region272: #{mistral_forward.1} parent=270 // loop_pre_header
                _
              $region273: #{mistral_forward.1} parent=270 // loop_header
                %s829 = sphi 0, %s833
                %p830 = scmp.ge.s32.totalorder %s829, 1
                %s834 = sphi %s824, %s824
                %s835 = sphi %s826, %s826
              $region274: #{mistral_forward.1} parent=270 // loop_header_branch
                %832 = sbr.rel (%p830) target = $region278
              $region275: #{mistral_forward.1} parent=270 // loop_body
                %v836 = vld [vmem:[%s834] sm:%s827]
                %837 = vst [vmem:[%s835] sm:%s827] %v836
              $region276: #{mistral_forward.1} parent=270 // loop_footer
                %s833 = sadd.s32 1, %s829
              $region277: #{mistral_forward.1} parent=270 // loop_footer_branch
                %828 = sbr.rel target = $region273
              $region278: #{mistral_forward.1} parent=270 // loop_exit
                _
            $region271: #{mistral_forward.1} parent=255 // pred_fallthru
              _
          $region256: #{mistral_forward.1} parent=71 // pred_fallthru
            _
          // Predicated region
          $region257: #{mistral_forward.1} parent=71 // pred_check
            %p803 = pneg %p799
          $region258: #{mistral_forward.1} parent=71 // pred_check_branch
            %805 = sbr.rel (%p803) target = $region260
          $region259: #{mistral_forward.1} parent=71 // pred_region
            %s806 = sshllo.u32 0, 1
            loop: start=0, step=1, limit=1
            $region261: #{mistral_forward.1} parent=259 // loop_pre_header
              _
            $region262: #{mistral_forward.1} parent=259 // loop_header
              %s808 = sphi 0, %s812
              %p809 = scmp.ge.s32.totalorder %s808, 1
              %s813 = sphi %s796, %s796
              %s814 = sphi %s797, %s797
            $region263: #{mistral_forward.1} parent=259 // loop_header_branch
              %811 = sbr.rel (%p809) target = $region267
            $region264: #{mistral_forward.1} parent=259 // loop_body
              %v815 = vld [vmem:[%s813] sm:%s806]
              %816 = vst [vmem:[%s814] sm:%s806] %v815
            $region265: #{mistral_forward.1} parent=259 // loop_footer
              %s812 = sadd.s32 1, %s808
            $region266: #{mistral_forward.1} parent=259 // loop_footer_branch
              %807 = sbr.rel target = $region262
            $region267: #{mistral_forward.1} parent=259 // loop_exit
              _
          $region260: #{mistral_forward.1} parent=71 // pred_fallthru
            _
          // Predicated region
          $region279: #{mistral_forward.1} parent=71 // pred_check
            _
          $region280: #{mistral_forward.1} parent=71 // pred_check_branch
            %840 = sbr.rel (0) target = $region282
          $region281: #{mistral_forward.1} parent=71 // pred_region
            %841 = vsyncadd [#allocation4], 16
          $region282: #{mistral_forward.1} parent=71 // pred_fallthru
            _
          %s842 = sshll.u32 %s547, 4
          %843 = dma.done [#allocation4], %s842
          %s844 = sld [smem:[#allocation6 + $0x7]]
          %s845 = scalar_lea.vmem %s1, %s844
          %s846 = scalar_lea.vmem [#allocation2], 7
          %p848 = scmp.lt.u32.totalorder 1, 8
          %p849 = pneg %p848
          // Predicated region
          $region283: #{mistral_forward.1} parent=71 // pred_check
            _
          $region284: #{mistral_forward.1} parent=71 // pred_check_branch
            %851 = sbr.rel (%p848) target = $region286
          $region285: #{mistral_forward.1} parent=71 // pred_region
            %s866 = sand.u32 1, 7
            %p867 = scmp.eq.s32.totalorder %s866, 0
            %p868 = pneg %p867
            // Predicated region
            $region298: #{mistral_forward.1} parent=285 // pred_check
              _
            $region299: #{mistral_forward.1} parent=285 // pred_check_branch
              %870 = sbr.rel (%p867) target = $region301
            $region300: #{mistral_forward.1} parent=285 // pred_region
              %s871 = sand.u32 1, 7
              %s872 = ssub.s32 1, %s871
              %s873 = scalar_lea.vmem %s845, %s872
              %s874 = ssub.s32 1, %s871
              %s875 = scalar_lea.vmem %s846, %s874 [#allocation2]
              %s876 = sshllo.u32 0, %s871
              loop: start=0, step=1, limit=1
              $region302: #{mistral_forward.1} parent=300 // loop_pre_header
                _
              $region303: #{mistral_forward.1} parent=300 // loop_header
                %s878 = sphi 0, %s882
                %p879 = scmp.ge.s32.totalorder %s878, 1
                %s883 = sphi %s873, %s873
                %s884 = sphi %s875, %s875
              $region304: #{mistral_forward.1} parent=300 // loop_header_branch
                %881 = sbr.rel (%p879) target = $region308
              $region305: #{mistral_forward.1} parent=300 // loop_body
                %v885 = vld [vmem:[%s883] sm:%s876]
                %886 = vst [vmem:[%s884] sm:%s876] %v885
              $region306: #{mistral_forward.1} parent=300 // loop_footer
                %s882 = sadd.s32 1, %s878
              $region307: #{mistral_forward.1} parent=300 // loop_footer_branch
                %877 = sbr.rel target = $region303
              $region308: #{mistral_forward.1} parent=300 // loop_exit
                _
            $region301: #{mistral_forward.1} parent=285 // pred_fallthru
              _
          $region286: #{mistral_forward.1} parent=71 // pred_fallthru
            _
          // Predicated region
          $region287: #{mistral_forward.1} parent=71 // pred_check
            %p852 = pneg %p848
          $region288: #{mistral_forward.1} parent=71 // pred_check_branch
            %854 = sbr.rel (%p852) target = $region290
          $region289: #{mistral_forward.1} parent=71 // pred_region
            %s855 = sshllo.u32 0, 1
            loop: start=0, step=1, limit=1
            $region291: #{mistral_forward.1} parent=289 // loop_pre_header
              _
            $region292: #{mistral_forward.1} parent=289 // loop_header
              %s857 = sphi 0, %s861
              %p858 = scmp.ge.s32.totalorder %s857, 1
              %s862 = sphi %s845, %s845
              %s863 = sphi %s846, %s846
            $region293: #{mistral_forward.1} parent=289 // loop_header_branch
              %860 = sbr.rel (%p858) target = $region297
            $region294: #{mistral_forward.1} parent=289 // loop_body
              %v864 = vld [vmem:[%s862] sm:%s855]
              %865 = vst [vmem:[%s863] sm:%s855] %v864
            $region295: #{mistral_forward.1} parent=289 // loop_footer
              %s861 = sadd.s32 1, %s857
            $region296: #{mistral_forward.1} parent=289 // loop_footer_branch
              %856 = sbr.rel target = $region292
            $region297: #{mistral_forward.1} parent=289 // loop_exit
              _
          $region290: #{mistral_forward.1} parent=71 // pred_fallthru
            _
          // Predicated region
          $region309: #{mistral_forward.1} parent=71 // pred_check
            _
          $region310: #{mistral_forward.1} parent=71 // pred_check_branch
            %889 = sbr.rel (0) target = $region312
          $region311: #{mistral_forward.1} parent=71 // pred_region
            %890 = vsyncadd [#allocation4], 16
          $region312: #{mistral_forward.1} parent=71 // pred_fallthru
            _
          %s891 = sshll.u32 %s547, 4
          %892 = dma.done [#allocation4], %s891
          %v893 = vlaneseq
          %v894 = vshrl.u32 %v893, 7
          %v895 = vadd.s32 %v894, 8
          %v896 = vadd.s32 %v894, 16
          %v897 = vadd.s32 %v894, 24
          %vm898 = vcmp.lt.s32.totalorder %v894, 0
          %v899 = vsub.s32 0, %v894
          %v900 = vsel %vm898, %v899, %v894
          %v901 = vshrl.u32 %v900, 3
          %v902 = vand.u32 %v900, 7
          %v903 = vsub.s32 0, %v902
          %v904 = vsel %vm898, %v903, %v902
          %vm905 = vcmp.lt.s32.totalorder %v895, 0
          %v906 = vsub.s32 0, %v895
          %v907 = vsel %vm905, %v906, %v895
          %v908 = vshrl.u32 %v907, 3
          %v909 = vand.u32 %v907, 7
          %v910 = vsub.s32 0, %v909
          %v911 = vsel %vm905, %v910, %v909
          %vm912 = vcmp.lt.s32.totalorder %v896, 0
          %v913 = vsub.s32 0, %v896
          %v914 = vsel %vm912, %v913, %v896
          %v915 = vshrl.u32 %v914, 3
          %v916 = vand.u32 %v914, 7
          %v917 = vsub.s32 0, %v916
          %v918 = vsel %vm912, %v917, %v916
          %vm919 = vcmp.lt.s32.totalorder %v897, 0
          %v920 = vsub.s32 0, %v897
          %v921 = vsel %vm919, %v920, %v897
          %v922 = vshrl.u32 %v921, 3
          %v923 = vand.u32 %v921, 7
          %v924 = vsub.s32 0, %v923
          %v925 = vsel %vm919, %v924, %v923
          %vm926 = vcmp.ne.s32.totalorder %v904, 0
          %vm927 = vcmp.ne.s32.totalorder %v911, 0
          %vm928 = vcmp.ne.s32.totalorder %v918, 0
          %vm929 = vcmp.ne.s32.totalorder %v925, 0
          %vm930 = vcmp.lt.s32.totalorder %v904, 0
          %vm931 = vcmp.lt.s32.totalorder %v911, 0
          %vm932 = vcmp.lt.s32.totalorder %v918, 0
          %vm933 = vcmp.lt.s32.totalorder %v925, 0
          %vm934 = vmand %vm930, %vm926
          %vm935 = vmand %vm931, %vm927
          %vm936 = vmand %vm932, %vm928
          %vm937 = vmand %vm933, %vm929
          %v938 = vadd.s32 %v904, 8
          %v939 = vadd.s32 %v911, 8
          %v940 = vadd.s32 %v918, 8
          %v941 = vadd.s32 %v925, 8
          %v942 = vsel %vm934, %v938, %v904
          %v943 = vsel %vm935, %v939, %v911
          %v944 = vsel %vm936, %v940, %v918
          %v945 = vsel %vm937, %v941, %v925
          %v946 = vlaneseq
          %v947 = vand.u32 %v946, 127
          %vm948 = vcmp.le.s32.totalorder %v947, %v942
          %vm949 = vcmp.le.s32.totalorder %v947, %v943
          %vm950 = vcmp.le.s32.totalorder %v947, %v944
          %vm951 = vcmp.le.s32.totalorder %v947, %v945
          %v952 = vsel %vm948, 0.0, -1e+30
          %v953 = vsel %vm949, 0.0, -1e+30
          %v954 = vsel %vm950, 0.0, -1e+30
          %v955 = vsel %vm951, 0.0, -1e+30
          %vm956 = vcmask 64512
          %957 = vst.msk [vmem:[#allocation3] sm:$0xff] %vm956, %v952
          %958 = vst.msk [vmem:[#allocation3 + $0x8] sm:$0xff] %vm956, %v953
          %959 = vst.msk [vmem:[#allocation3 + $0x10] sm:$0xff] %vm956, %v954
          %960 = vst.msk [vmem:[#allocation3 + $0x18] sm:$0xff] %vm956, %v955
        $region72: #{mistral_forward.1} parent=67 // pred_fallthru
          _
        %v961 = vld [vmem:[#allocation2] sm:$0xff]
        %v962 = vld [vmem:[%s472] sm:$0x1]
        %v963 = vmul.f32 %v961, %v961
        %vm964 = vcmask 261120
        %v965 = vsel %vm964, %v963, 0.0
        %966 = vadd.xlane.f32.xlu0 %v965
        %v967 = vpop.xlane.xlu0 %966
        %v968 = vrcp.pop 32.0
        %v969 = vmul.f32 %v967, %v968
        %v970 = vadd.f32 %v969, 1e-05
        %v971 = vrsqrt.pop %v970
        %v972 = vmul.f32 %v961, %v971
        %v974 = vlaneseq
        %v975 = vshrl.u32 %v974, 7
        %v976 = vsub.s32 0, %v975
        %v977 = vrot.slane %v962, %v976
        %v979 = vmul.f32 %v972, %v977
        %v980 = vpack.c.bf16 %v979, %v979
        %v981 = vld [vmem:[%s477] sm:$0xff]
        %v982 = vld [vmem:[%s477 + $0x8] sm:$0xff]
        %v983 = vld [vmem:[%s477 + $0x10] sm:$0xff]
        %v984 = vld [vmem:[%s477 + $0x18] sm:$0xff]
        %v985 = vld [vmem:[%s477 + $0x20] sm:$0xff]
        %v986 = vld [vmem:[%s477 + $0x28] sm:$0xff]
        %v987 = vld [vmem:[%s477 + $0x30] sm:$0xff]
        %v988 = vld [vmem:[%s477 + $0x38] sm:$0xff]
        %v989 = vld [vmem:[%s477 + $0x40] sm:$0xff]
        %v990 = vld [vmem:[%s477 + $0x48] sm:$0xff]
        %v991 = vld [vmem:[%s477 + $0x50] sm:$0xff]
        %v992 = vld [vmem:[%s477 + $0x58] sm:$0xff]
        %v993 = vld [vmem:[%s477 + $0x60] sm:$0xff]
        %v994 = vld [vmem:[%s477 + $0x68] sm:$0xff]
        %v995 = vld [vmem:[%s477 + $0x70] sm:$0xff]
        %v996 = vld [vmem:[%s477 + $0x78] sm:$0xff]
        %v997 = vld [vmem:[%s477 + $0x80] sm:$0xff]
        %v998 = vld [vmem:[%s477 + $0x88] sm:$0xff]
        %v999 = vld [vmem:[%s477 + $0x90] sm:$0xff]
        %v1000 = vld [vmem:[%s477 + $0x98] sm:$0xff]
        %v1001 = vld [vmem:[%s477 + $0xa0] sm:$0xff]
        %v1002 = vld [vmem:[%s477 + $0xa8] sm:$0xff]
        %v1003 = vld [vmem:[%s477 + $0xb0] sm:$0xff]
        %v1004 = vld [vmem:[%s477 + $0xb8] sm:$0xff]
        %v1029 = vunpack.c.l.b16 %v981
        %v1030 = vunpack.c.h.b16 %v981
        %v1031 = vunpack.c.l.b16 %v982
        %v1032 = vunpack.c.h.b16 %v982
        %v1033 = vunpack.c.l.b16 %v983
        %v1034 = vunpack.c.h.b16 %v983
        %v1035 = vunpack.c.l.b16 %v984
        %v1036 = vunpack.c.h.b16 %v984
        %v1037 = vunpack.c.l.b16 %v985
        %v1038 = vunpack.c.h.b16 %v985
        %v1039 = vunpack.c.l.b16 %v986
        %v1040 = vunpack.c.h.b16 %v986
        %v1041 = vunpack.c.l.b16 %v987
        %v1042 = vunpack.c.h.b16 %v987
        %v1043 = vunpack.c.l.b16 %v988
        %v1044 = vunpack.c.h.b16 %v988
        %v1045 = vunpack.c.l.b16 %v989
        %v1046 = vunpack.c.h.b16 %v989
        %v1047 = vunpack.c.l.b16 %v990
        %v1048 = vunpack.c.h.b16 %v990
        %v1049 = vunpack.c.l.b16 %v991
        %v1050 = vunpack.c.h.b16 %v991
        %v1051 = vunpack.c.l.b16 %v992
        %v1052 = vunpack.c.h.b16 %v992
        %v1053 = vunpack.c.l.b16 %v993
        %v1054 = vunpack.c.h.b16 %v993
        %v1055 = vunpack.c.l.b16 %v994
        %v1056 = vunpack.c.h.b16 %v994
        %v1057 = vunpack.c.l.b16 %v995
        %v1058 = vunpack.c.h.b16 %v995
        %v1059 = vunpack.c.l.b16 %v996
        %v1060 = vunpack.c.h.b16 %v996
        %v1061 = vunpack.c.l.b16 %v997
        %v1062 = vunpack.c.h.b16 %v997
        %v1063 = vunpack.c.l.b16 %v998
        %v1064 = vunpack.c.h.b16 %v998
        %v1065 = vunpack.c.l.b16 %v999
        %v1066 = vunpack.c.h.b16 %v999
        %v1067 = vunpack.c.l.b16 %v1000
        %v1068 = vunpack.c.h.b16 %v1000
        %v1069 = vunpack.c.l.b16 %v1001
        %v1070 = vunpack.c.h.b16 %v1001
        %v1071 = vunpack.c.l.b16 %v1002
        %v1072 = vunpack.c.h.b16 %v1002
        %v1073 = vunpack.c.l.b16 %v1003
        %v1074 = vunpack.c.h.b16 %v1003
        %v1075 = vunpack.c.l.b16 %v1004
        %v1076 = vunpack.c.h.b16 %v1004
        %v1077 = vpack.c.b16 %v1041, %v1029
        %v1078 = vpack.c.b16 %v1042, %v1030
        %v1079 = vpack.c.b16 %v1043, %v1031
        %v1080 = vpack.c.b16 %v1044, %v1032
        %v1081 = vpack.c.b16 %v1045, %v1033
        %v1082 = vpack.c.b16 %v1046, %v1034
        %v1083 = vpack.c.b16 %v1047, %v1035
        %v1084 = vpack.c.b16 %v1048, %v1036
        %v1085 = vpack.c.b16 %v1049, %v1037
        %v1086 = vpack.c.b16 %v1050, %v1038
        %v1087 = vpack.c.b16 %v1051, %v1039
        %v1088 = vpack.c.b16 %v1052, %v1040
        %v1089 = vpack.c.b16 %v1065, %v1053
        %v1090 = vpack.c.b16 %v1066, %v1054
        %v1091 = vpack.c.b16 %v1067, %v1055
        %v1092 = vpack.c.b16 %v1068, %v1056
        %v1093 = vpack.c.b16 %v1069, %v1057
        %v1094 = vpack.c.b16 %v1070, %v1058
        %v1095 = vpack.c.b16 %v1071, %v1059
        %v1096 = vpack.c.b16 %v1072, %v1060
        %v1097 = vpack.c.b16 %v1073, %v1061
        %v1098 = vpack.c.b16 %v1074, %v1062
        %v1099 = vpack.c.b16 %v1075, %v1063
        %v1100 = vpack.c.b16 %v1076, %v1064
        %v1126 = vsel %vm964, %v980, 0
        %1128 = vmatprep.subr.bf16.mxu0 %v1078
        %1129 = vmatpush1.bf16.msra.mxu0 %v1077
        %1130 = vmatprep.subr.bf16.mxu0 %v1090
        %1131 = vmatpush1.bf16.msra.mxu0 %v1089
        %1132 = vmatprep.subr.bf16.mxu0 0
        %1133 = vmatpush1.bf16.msra.mxu0 0
        %1134 = vmatprep.subr.bf16.mxu0 0
        %1135 = vmatpush1.bf16.msra.mxu0 0
        %1136 = vmatprep.subr.bf16.mxu0 0
        %1137 = vmatpush1.bf16.msra.mxu0 0
        %1138 = vmatprep.subr.bf16.mxu0 0
        %1139 = vmatpush1.bf16.msra.mxu0 0
        %1140 = vmatprep.subr.bf16.mxu0 0
        %1141 = vmatpush1.bf16.msra.mxu0 0
        %1142 = vmatprep.subr.bf16.mxu0 0
        %1143 = vmatpush1.bf16.msra.mxu0 0
        %1144 = vmatprep.subr.bf16.mxu0 0
        %1145 = vmatpush1.bf16.msra.mxu0 0
        %1146 = vmatprep.subr.bf16.mxu0 0
        %1147 = vmatpush1.bf16.msra.mxu0 0
        %1148 = vmatprep.subr.bf16.mxu0 0
        %1149 = vmatpush1.bf16.msra.mxu0 0
        %1150 = vmatprep.subr.bf16.mxu0 0
        %1151 = vmatpush1.bf16.msra.mxu0 0
        %1152 = vmatprep.subr.bf16.mxu0 0
        %1153 = vmatpush1.bf16.msra.mxu0 0
        %1154 = vmatprep.subr.bf16.mxu0 0
        %1155 = vmatpush1.bf16.msra.mxu0 0
        %1156 = vmatprep.subr.bf16.mxu0 0
        %1157 = vmatpush1.bf16.msra.mxu0 0
        %1158 = vmatprep.subr.bf16.mxu0 0
        %1159 = vmatpush1.bf16.msra.mxu0 0
        %1160 = vmatprep.mubr.bf16.mxu0 0
        %1161 = vmatmul.mubr.bf16.gmra.mrb[0].mxu0 %v1126
        %v1162 = vpop.f32.mrb[0].mxu0
        %v1163 = vadd.f32 0.0, %v1162
        %v1164 = vpop.f32.mrb[0].mxu0
        %v1165 = vadd.f32 0.0, %v1164
        %v1166 = vpop.f32.mrb[0].mxu0
        %v1167 = vpop.f32.mrb[0].mxu0
        %1168 = vdwg.mxu0
        %1169 = vmatprep.subr.bf16.mxu0 %v1080
        %1170 = vmatpush1.bf16.msra.mxu0 %v1079
        %1171 = vmatprep.subr.bf16.mxu0 %v1092
        %1172 = vmatpush1.bf16.msra.mxu0 %v1091
        %1173 = vmatprep.subr.bf16.mxu0 0
        %1174 = vmatpush1.bf16.msra.mxu0 0
        %1175 = vmatprep.subr.bf16.mxu0 0
        %1176 = vmatpush1.bf16.msra.mxu0 0
        %1177 = vmatprep.subr.bf16.mxu0 0
        %1178 = vmatpush1.bf16.msra.mxu0 0
        %1179 = vmatprep.subr.bf16.mxu0 0
        %1180 = vmatpush1.bf16.msra.mxu0 0
        %1181 = vmatprep.subr.bf16.mxu0 0
        %1182 = vmatpush1.bf16.msra.mxu0 0
        %1183 = vmatprep.subr.bf16.mxu0 0
        %1184 = vmatpush1.bf16.msra.mxu0 0
        %1185 = vmatprep.subr.bf16.mxu0 0
        %1186 = vmatpush1.bf16.msra.mxu0 0
        %1187 = vmatprep.subr.bf16.mxu0 0
        %1188 = vmatpush1.bf16.msra.mxu0 0
        %1189 = vmatprep.subr.bf16.mxu0 0
        %1190 = vmatpush1.bf16.msra.mxu0 0
        %1191 = vmatprep.subr.bf16.mxu0 0
        %1192 = vmatpush1.bf16.msra.mxu0 0
        %1193 = vmatprep.subr.bf16.mxu0 0
        %1194 = vmatpush1.bf16.msra.mxu0 0
        %1195 = vmatprep.subr.bf16.mxu0 0
        %1196 = vmatpush1.bf16.msra.mxu0 0
        %1197 = vmatprep.subr.bf16.mxu0 0
        %1198 = vmatpush1.bf16.msra.mxu0 0
        %1199 = vmatprep.subr.bf16.mxu0 0
        %1200 = vmatpush1.bf16.msra.mxu0 0
        %1201 = vmatprep.mubr.bf16.mxu0 0
        %1202 = vmatmul.mubr.bf16.gmra.mrb[0].mxu0 %v1126
        %v1203 = vpop.f32.mrb[0].mxu0
        %v1204 = vadd.f32 0.0, %v1203
        %v1205 = vpop.f32.mrb[0].mxu0
        %v1206 = vadd.f32 0.0, %v1205
        %v1207 = vpop.f32.mrb[0].mxu0
        %v1208 = vpop.f32.mrb[0].mxu0
        %1209 = vdwg.mxu0
        %1210 = vmatprep.subr.bf16.mxu0 %v1082
        %1211 = vmatpush1.bf16.msra.mxu0 %v1081
        %1212 = vmatprep.subr.bf16.mxu0 %v1094
        %1213 = vmatpush1.bf16.msra.mxu0 %v1093
        %1214 = vmatprep.subr.bf16.mxu0 0
        %1215 = vmatpush1.bf16.msra.mxu0 0
        %1216 = vmatprep.subr.bf16.mxu0 0
        %1217 = vmatpush1.bf16.msra.mxu0 0
        %1218 = vmatprep.subr.bf16.mxu0 0
        %1219 = vmatpush1.bf16.msra.mxu0 0
        %1220 = vmatprep.subr.bf16.mxu0 0
        %1221 = vmatpush1.bf16.msra.mxu0 0
        %1222 = vmatprep.subr.bf16.mxu0 0
        %1223 = vmatpush1.bf16.msra.mxu0 0
        %1224 = vmatprep.subr.bf16.mxu0 0
        %1225 = vmatpush1.bf16.msra.mxu0 0
        %1226 = vmatprep.subr.bf16.mxu0 0
        %1227 = vmatpush1.bf16.msra.mxu0 0
        %1228 = vmatprep.subr.bf16.mxu0 0
        %1229 = vmatpush1.bf16.msra.mxu0 0
        %1230 = vmatprep.subr.bf16.mxu0 0
        %1231 = vmatpush1.bf16.msra.mxu0 0
        %1232 = vmatprep.subr.bf16.mxu0 0
        %1233 = vmatpush1.bf16.msra.mxu0 0
        %1234 = vmatprep.subr.bf16.mxu0 0
        %1235 = vmatpush1.bf16.msra.mxu0 0
        %1236 = vmatprep.subr.bf16.mxu0 0
        %1237 = vmatpush1.bf16.msra.mxu0 0
        %1238 = vmatprep.subr.bf16.mxu0 0
        %1239 = vmatpush1.bf16.msra.mxu0 0
        %1240 = vmatprep.subr.bf16.mxu0 0
        %1241 = vmatpush1.bf16.msra.mxu0 0
        %1242 = vmatprep.mubr.bf16.mxu0 0
        %1243 = vmatmul.mubr.bf16.gmra.mrb[0].mxu0 %v1126
        %v1244 = vpop.f32.mrb[0].mxu0
        %v1245 = vadd.f32 0.0, %v1244
        %v1246 = vpop.f32.mrb[0].mxu0
        %v1247 = vadd.f32 0.0, %v1246
        %v1248 = vpop.f32.mrb[0].mxu0
        %v1249 = vpop.f32.mrb[0].mxu0
        %1250 = vdwg.mxu0
        %1251 = vmatprep.subr.bf16.mxu0 %v1084
        %1252 = vmatpush1.bf16.msra.mxu0 %v1083
        %1253 = vmatprep.subr.bf16.mxu0 %v1096
        %1254 = vmatpush1.bf16.msra.mxu0 %v1095
        %1255 = vmatprep.subr.bf16.mxu0 0
        %1256 = vmatpush1.bf16.msra.mxu0 0
        %1257 = vmatprep.subr.bf16.mxu0 0
        %1258 = vmatpush1.bf16.msra.mxu0 0
        %1259 = vmatprep.subr.bf16.mxu0 0
        %1260 = vmatpush1.bf16.msra.mxu0 0
        %1261 = vmatprep.subr.bf16.mxu0 0
        %1262 = vmatpush1.bf16.msra.mxu0 0
        %1263 = vmatprep.subr.bf16.mxu0 0
        %1264 = vmatpush1.bf16.msra.mxu0 0
        %1265 = vmatprep.subr.bf16.mxu0 0
        %1266 = vmatpush1.bf16.msra.mxu0 0
        %1267 = vmatprep.subr.bf16.mxu0 0
        %1268 = vmatpush1.bf16.msra.mxu0 0
        %1269 = vmatprep.subr.bf16.mxu0 0
        %1270 = vmatpush1.bf16.msra.mxu0 0
        %1271 = vmatprep.subr.bf16.mxu0 0
        %1272 = vmatpush1.bf16.msra.mxu0 0
        %1273 = vmatprep.subr.bf16.mxu0 0
        %1274 = vmatpush1.bf16.msra.mxu0 0
        %1275 = vmatprep.subr.bf16.mxu0 0
        %1276 = vmatpush1.bf16.msra.mxu0 0
        %1277 = vmatprep.subr.bf16.mxu0 0
        %1278 = vmatpush1.bf16.msra.mxu0 0
        %1279 = vmatprep.subr.bf16.mxu0 0
        %1280 = vmatpush1.bf16.msra.mxu0 0
        %1281 = vmatprep.subr.bf16.mxu0 0
        %1282 = vmatpush1.bf16.msra.mxu0 0
        %1283 = vmatprep.mubr.bf16.mxu0 0
        %1284 = vmatmul.mubr.bf16.gmra.mrb[0].mxu0 %v1126
        %v1285 = vpop.f32.mrb[0].mxu0
        %v1286 = vadd.f32 0.0, %v1285
        %v1287 = vpop.f32.mrb[0].mxu0
        %v1288 = vadd.f32 0.0, %v1287
        %v1289 = vpop.f32.mrb[0].mxu0
        %v1290 = vpop.f32.mrb[0].mxu0
        %1291 = vdwg.mxu0
        %1292 = vmatprep.subr.bf16.mxu0 %v1086
        %1293 = vmatpush1.bf16.msra.mxu0 %v1085
        %1294 = vmatprep.subr.bf16.mxu0 %v1098
        %1295 = vmatpush1.bf16.msra.mxu0 %v1097
        %1296 = vmatprep.subr.bf16.mxu0 0
        %1297 = vmatpush1.bf16.msra.mxu0 0
        %1298 = vmatprep.subr.bf16.mxu0 0
        %1299 = vmatpush1.bf16.msra.mxu0 0
        %1300 = vmatprep.subr.bf16.mxu0 0
        %1301 = vmatpush1.bf16.msra.mxu0 0
        %1302 = vmatprep.subr.bf16.mxu0 0
        %1303 = vmatpush1.bf16.msra.mxu0 0
        %1304 = vmatprep.subr.bf16.mxu0 0
        %1305 = vmatpush1.bf16.msra.mxu0 0
        %1306 = vmatprep.subr.bf16.mxu0 0
        %1307 = vmatpush1.bf16.msra.mxu0 0
        %1308 = vmatprep.subr.bf16.mxu0 0
        %1309 = vmatpush1.bf16.msra.mxu0 0
        %1310 = vmatprep.subr.bf16.mxu0 0
        %1311 = vmatpush1.bf16.msra.mxu0 0
        %1312 = vmatprep.subr.bf16.mxu0 0
        %1313 = vmatpush1.bf16.msra.mxu0 0
        %1314 = vmatprep.subr.bf16.mxu0 0
        %1315 = vmatpush1.bf16.msra.mxu0 0
        %1316 = vmatprep.subr.bf16.mxu0 0
        %1317 = vmatpush1.bf16.msra.mxu0 0
        %1318 = vmatprep.subr.bf16.mxu0 0
        %1319 = vmatpush1.bf16.msra.mxu0 0
        %1320 = vmatprep.subr.bf16.mxu0 0
        %1321 = vmatpush1.bf16.msra.mxu0 0
        %1322 = vmatprep.subr.bf16.mxu0 0
        %1323 = vmatpush1.bf16.msra.mxu0 0
        %1324 = vmatprep.mubr.bf16.mxu0 0
        %1325 = vmatmul.mubr.bf16.gmra.mrb[0].mxu0 %v1126
        %v1326 = vpop.f32.mrb[0].mxu0
        %v1327 = vadd.f32 0.0, %v1326
        %v1328 = vpop.f32.mrb[0].mxu0
        %v1329 = vadd.f32 0.0, %v1328
        %v1330 = vpop.f32.mrb[0].mxu0
        %v1331 = vpop.f32.mrb[0].mxu0
        %1332 = vdwg.mxu0
        %1333 = vmatprep.subr.bf16.mxu0 %v1088
        %1334 = vmatpush1.bf16.msra.mxu0 %v1087
        %1335 = vmatprep.subr.bf16.mxu0 %v1100
        %1336 = vmatpush1.bf16.msra.mxu0 %v1099
        %1337 = vmatprep.subr.bf16.mxu0 0
        %1338 = vmatpush1.bf16.msra.mxu0 0
        %1339 = vmatprep.subr.bf16.mxu0 0
        %1340 = vmatpush1.bf16.msra.mxu0 0
        %1341 = vmatprep.subr.bf16.mxu0 0
        %1342 = vmatpush1.bf16.msra.mxu0 0
        %1343 = vmatprep.subr.bf16.mxu0 0
        %1344 = vmatpush1.bf16.msra.mxu0 0
        %1345 = vmatprep.subr.bf16.mxu0 0
        %1346 = vmatpush1.bf16.msra.mxu0 0
        %1347 = vmatprep.subr.bf16.mxu0 0
        %1348 = vmatpush1.bf16.msra.mxu0 0
        %1349 = vmatprep.subr.bf16.mxu0 0
        %1350 = vmatpush1.bf16.msra.mxu0 0
        %1351 = vmatprep.subr.bf16.mxu0 0
        %1352 = vmatpush1.bf16.msra.mxu0 0
        %1353 = vmatprep.subr.bf16.mxu0 0
        %1354 = vmatpush1.bf16.msra.mxu0 0
        %1355 = vmatprep.subr.bf16.mxu0 0
        %1356 = vmatpush1.bf16.msra.mxu0 0
        %1357 = vmatprep.subr.bf16.mxu0 0
        %1358 = vmatpush1.bf16.msra.mxu0 0
        %1359 = vmatprep.subr.bf16.mxu0 0
        %1360 = vmatpush1.bf16.msra.mxu0 0
        %1361 = vmatprep.subr.bf16.mxu0 0
        %1362 = vmatpush1.bf16.msra.mxu0 0
        %1363 = vmatprep.subr.bf16.mxu0 0
        %1364 = vmatpush1.bf16.msra.mxu0 0
        %1365 = vmatprep.mubr.bf16.mxu0 0
        %1366 = vmatmul.mubr.bf16.gmra.mrb[0].mxu0 %v1126
        %v1367 = vpop.f32.mrb[0].mxu0
        %v1368 = vadd.f32 0.0, %v1367
        %v1369 = vpop.f32.mrb[0].mxu0
        %v1370 = vadd.f32 0.0, %v1369
        %v1371 = vpop.f32.mrb[0].mxu0
        %v1372 = vpop.f32.mrb[0].mxu0
        %1373 = vdwg.mxu0
        %v1374 = vld [vmem:[%s2] sm:$0xff]
        %v1375 = vld [vmem:[%s2 + $0x8] sm:$0xff]
        %v1376 = vld [vmem:[%s2 + $0x10] sm:$0xff]
        %v1377 = vld [vmem:[%s2 + $0x18] sm:$0xff]
        %v1378 = vmul.f32 %v1163, %v1374
        %v1379 = vmul.f32 %v1165, %v1375
        %v1380 = vmul.f32 %v1204, %v1376
        %v1381 = vmul.f32 %v1206, %v1377
        %v1382 = vmul.f32 %v1245, %v1374
        %v1383 = vmul.f32 %v1247, %v1375
        %v1384 = vmul.f32 %v1286, %v1376
        %v1385 = vmul.f32 %v1288, %v1377
        %1386 = vrot.lane.b32.xlu0 %v1163, 64
        %v1387 = vpop.permute.xlu0 %1386
        %1388 = vrot.lane.b32.xlu0 %v1165, 64
        %v1389 = vpop.permute.xlu0 %1388
        %1390 = vrot.lane.b32.xlu0 %v1204, 64
        %v1391 = vpop.permute.xlu0 %1390
        %1392 = vrot.lane.b32.xlu0 %v1206, 64
        %v1393 = vpop.permute.xlu0 %1392
        %1394 = vrot.lane.b32.xlu0 %v1245, 64
        %v1395 = vpop.permute.xlu0 %1394
        %1396 = vrot.lane.b32.xlu0 %v1247, 64
        %v1397 = vpop.permute.xlu0 %1396
        %1398 = vrot.lane.b32.xlu0 %v1286, 64
        %v1399 = vpop.permute.xlu0 %1398
        %1400 = vrot.lane.b32.xlu0 %v1288, 64
        %v1401 = vpop.permute.xlu0 %1400
        %v1402 = vld [vmem:[%s3] sm:$0xff]
        %v1403 = vld [vmem:[%s3 + $0x8] sm:$0xff]
        %v1404 = vld [vmem:[%s3 + $0x10] sm:$0xff]
        %v1405 = vld [vmem:[%s3 + $0x18] sm:$0xff]
        %v1406 = vmul.f32 %v1387, %v1402
        %v1407 = vmul.f32 %v1389, %v1403
        %v1408 = vmul.f32 %v1391, %v1404
        %v1409 = vmul.f32 %v1393, %v1405
        %v1410 = vmul.f32 %v1395, %v1402
        %v1411 = vmul.f32 %v1397, %v1403
        %v1412 = vmul.f32 %v1399, %v1404
        %v1413 = vmul.f32 %v1401, %v1405
        %v1414 = vadd.f32 %v1378, %v1406
        %v1415 = vadd.f32 %v1379, %v1407
        %v1416 = vadd.f32 %v1380, %v1408
        %v1417 = vadd.f32 %v1381, %v1409
        %v1418 = vadd.f32 %v1382, %v1410
        %v1419 = vadd.f32 %v1383, %v1411
        %v1420 = vadd.f32 %v1384, %v1412
        %v1421 = vadd.f32 %v1385, %v1413
        %v1422 = vld [vmem:[%s4] sm:$0xff]
        %v1423 = vmul.f32 %v1327, %v1422
        %v1424 = vmul.f32 %v1329, %v1422
        %1425 = vrot.lane.b32.xlu0 %v1327, 64
        %v1426 = vpop.permute.xlu0 %1425
        %1427 = vrot.lane.b32.xlu0 %v1329, 64
        %v1428 = vpop.permute.xlu0 %1427
        %v1429 = vld [vmem:[%s5] sm:$0xff]
        %v1430 = vmul.f32 %v1426, %v1429
        %v1431 = vmul.f32 %v1428, %v1429
        %v1432 = vadd.f32 %v1423, %v1430
        %v1433 = vadd.f32 %v1424, %v1431
        %v1434 = vpack.c.bf16 %v1415, %v1414
        %v1435 = vpack.c.bf16 %v1417, %v1416
        %v1436 = vpack.c.bf16 %v1419, %v1418
        %v1437 = vpack.c.bf16 %v1421, %v1420
        %v1438 = vpack.c.bf16 %v1432, %v1432
        %v1439 = vpack.c.bf16 %v1433, %v1433
        %v1440 = vld [vmem:[#allocation3] sm:$0xff]
        %v1441 = vld [vmem:[#allocation3 + $0x8] sm:$0xff]
        %v1442 = vld [vmem:[#allocation3 + $0x10] sm:$0xff]
        %v1443 = vld [vmem:[#allocation3 + $0x18] sm:$0xff]
        %1444 = vmatprep.subr.bf16.mxu0 0
        %1445 = vmatpush1.bf16.xpose.msra.mxu0 %v1438
        %1446 = vmatprep.subr.bf16.mxu0 0
        %1447 = vmatpush1.bf16.xpose.msra.mxu0 0
        %1448 = vmatprep.subr.bf16.mxu0 0
        %1449 = vmatpush1.bf16.xpose.msra.mxu0 0
        %1450 = vmatprep.subr.bf16.mxu0 0
        %1451 = vmatpush1.bf16.xpose.msra.mxu0 0
        %1452 = vmatprep.subr.bf16.mxu0 0
        %1453 = vmatpush1.bf16.xpose.msra.mxu0 0
        %1454 = vmatprep.subr.bf16.mxu0 0
        %1455 = vmatpush1.bf16.xpose.msra.mxu0 0
        %1456 = vmatprep.subr.bf16.mxu0 0
        %1457 = vmatpush1.bf16.xpose.msra.mxu0 0
        %1458 = vmatprep.subr.bf16.mxu0 0
        %1459 = vmatpush1.bf16.xpose.msra.mxu0 0
        %1460 = vmatprep.subr.bf16.mxu0 0
        %1461 = vmatpush1.bf16.xpose.msra.mxu0 0
        %1462 = vmatprep.subr.bf16.mxu0 0
        %1463 = vmatpush1.bf16.xpose.msra.mxu0 0
        %1464 = vmatprep.subr.bf16.mxu0 0
        %1465 = vmatpush1.bf16.xpose.msra.mxu0 0
        %1466 = vmatprep.subr.bf16.mxu0 0
        %1467 = vmatpush1.bf16.xpose.msra.mxu0 0
        %1468 = vmatprep.subr.bf16.mxu0 0
        %1469 = vmatpush1.bf16.xpose.msra.mxu0 0
        %1470 = vmatprep.subr.bf16.mxu0 0
        %1471 = vmatpush1.bf16.xpose.msra.mxu0 0
        %1472 = vmatprep.subr.bf16.mxu0 0
        %1473 = vmatpush1.bf16.xpose.msra.mxu0 0
        %1474 = vmatprep.subr.bf16.mxu0 0
        %1475 = vmatpush1.bf16.xpose.msra.mxu0 0
        %1476 = vmatprep.mubr.bf16.mxu0 0
        %1477 = vmatmul.mubr.bf16.gmra.mrb[0].mxu0 %v1434
        %v1478 = vpop.f32.mrb[0].mxu0
        %v1479 = vadd.f32 %v1440, %v1478
        %v1480 = vpop.f32.mrb[0].mxu0
        %v1481 = vpop.f32.mrb[0].mxu0
        %v1482 = vadd.f32 %v1441, %v1481
        %v1483 = vpop.f32.mrb[0].mxu0
        %1484 = vmatprep.mubr.bf16.mxu0 0
        %1485 = vmatmul.mubr.bf16.gmra.mrb[0].mxu0 %v1435
        %v1486 = vpop.f32.mrb[0].mxu0
        %v1487 = vadd.f32 %v1442, %v1486
        %v1488 = vpop.f32.mrb[0].mxu0
        %v1489 = vpop.f32.mrb[0].mxu0
        %v1490 = vadd.f32 %v1443, %v1489
        %v1491 = vpop.f32.mrb[0].mxu0
        %1492 = vdwg.mxu0
        %1493 = vmatprep.subr.bf16.mxu0 0
        %1494 = vmatpush1.bf16.xpose.msra.mxu0 %v1439
        %1495 = vmatprep.subr.bf16.mxu0 0
        %1496 = vmatpush1.bf16.xpose.msra.mxu0 0
        %1497 = vmatprep.subr.bf16.mxu0 0
        %1498 = vmatpush1.bf16.xpose.msra.mxu0 0
        %1499 = vmatprep.subr.bf16.mxu0 0
        %1500 = vmatpush1.bf16.xpose.msra.mxu0 0
        %1501 = vmatprep.subr.bf16.mxu0 0
        %1502 = vmatpush1.bf16.xpose.msra.mxu0 0
        %1503 = vmatprep.subr.bf16.mxu0 0
        %1504 = vmatpush1.bf16.xpose.msra.mxu0 0
        %1505 = vmatprep.subr.bf16.mxu0 0
        %1506 = vmatpush1.bf16.xpose.msra.mxu0 0
        %1507 = vmatprep.subr.bf16.mxu0 0
        %1508 = vmatpush1.bf16.xpose.msra.mxu0 0
        %1509 = vmatprep.subr.bf16.mxu0 0
        %1510 = vmatpush1.bf16.xpose.msra.mxu0 0
        %1511 = vmatprep.subr.bf16.mxu0 0
        %1512 = vmatpush1.bf16.xpose.msra.mxu0 0
        %1513 = vmatprep.subr.bf16.mxu0 0
        %1514 = vmatpush1.bf16.xpose.msra.mxu0 0
        %1515 = vmatprep.subr.bf16.mxu0 0
        %1516 = vmatpush1.bf16.xpose.msra.mxu0 0
        %1517 = vmatprep.subr.bf16.mxu0 0
        %1518 = vmatpush1.bf16.xpose.msra.mxu0 0
        %1519 = vmatprep.subr.bf16.mxu0 0
        %1520 = vmatpush1.bf16.xpose.msra.mxu0 0
        %1521 = vmatprep.subr.bf16.mxu0 0
        %1522 = vmatpush1.bf16.xpose.msra.mxu0 0
        %1523 = vmatprep.subr.bf16.mxu0 0
        %1524 = vmatpush1.bf16.xpose.msra.mxu0 0
        %1525 = vmatprep.mubr.bf16.mxu0 0
        %1526 = vmatmul.mubr.bf16.gmra.mrb[0].mxu0 %v1436
        %v1527 = vpop.f32.mrb[0].mxu0
        %v1528 = vadd.f32 %v1440, %v1527
        %v1529 = vpop.f32.mrb[0].mxu0
        %v1530 = vpop.f32.mrb[0].mxu0
        %v1531 = vadd.f32 %v1441, %v1530
        %v1532 = vpop.f32.mrb[0].mxu0
        %1533 = vmatprep.mubr.bf16.mxu0 0
        %1534 = vmatmul.mubr.bf16.gmra.mrb[0].mxu0 %v1437
        %v1535 = vpop.f32.mrb[0].mxu0
        %v1536 = vadd.f32 %v1442, %v1535
        %v1537 = vpop.f32.mrb[0].mxu0
        %v1538 = vpop.f32.mrb[0].mxu0
        %v1539 = vadd.f32 %v1443, %v1538
        %v1540 = vpop.f32.mrb[0].mxu0
        %1541 = vdwg.mxu0
        %vm1542 = vcmask 64512
        %v1543 = vsel %vm1542, %v1479, -inf
        %1544 = vmax.xlane.f32.xlu0 %v1543
        %v1545 = vpop.xlane.xlu0 %1544
        %v1546 = vsel %vm1542, %v1482, -inf
        %1547 = vmax.xlane.f32.xlu0 %v1546
        %v1548 = vpop.xlane.xlu0 %1547
        %v1549 = vsel %vm1542, %v1487, -inf
        %1550 = vmax.xlane.f32.xlu0 %v1549
        %v1551 = vpop.xlane.xlu0 %1550
        %v1552 = vsel %vm1542, %v1490, -inf
        %1553 = vmax.xlane.f32.xlu0 %v1552
        %v1554 = vpop.xlane.xlu0 %1553
        %v1555 = vsel %vm1542, %v1528, -inf
        %1556 = vmax.xlane.f32.xlu0 %v1555
        %v1557 = vpop.xlane.xlu0 %1556
        %v1558 = vsel %vm1542, %v1531, -inf
        %1559 = vmax.xlane.f32.xlu0 %v1558
        %v1560 = vpop.xlane.xlu0 %1559
        %v1561 = vsel %vm1542, %v1536, -inf
        %1562 = vmax.xlane.f32.xlu0 %v1561
        %v1563 = vpop.xlane.xlu0 %1562
        %v1564 = vsel %vm1542, %v1539, -inf
        %1565 = vmax.xlane.f32.xlu0 %v1564
        %v1566 = vpop.xlane.xlu0 %1565
        %v1567 = vsub.f32 %v1479, %v1545
        %v1568 = vsub.f32 %v1482, %v1548
        %v1569 = vsub.f32 %v1487, %v1551
        %v1570 = vsub.f32 %v1490, %v1554
        %v1571 = vsub.f32 %v1528, %v1557
        %v1572 = vsub.f32 %v1531, %v1560
        %v1573 = vsub.f32 %v1536, %v1563
        %v1574 = vsub.f32 %v1539, %v1566
        %v1575 = vmul.f32 %v1567, 1.442695
        %v1576 = vpow.pop %v1575
        %v1577 = vmul.f32 %v1568, 1.442695
        %v1578 = vpow.pop %v1577
        %v1579 = vmul.f32 %v1569, 1.442695
        %v1580 = vpow.pop %v1579
        %v1581 = vmul.f32 %v1570, 1.442695
        %v1582 = vpow.pop %v1581
        %v1583 = vmul.f32 %v1571, 1.442695
        %v1584 = vpow.pop %v1583
        %v1585 = vmul.f32 %v1572, 1.442695
        %v1586 = vpow.pop %v1585
        %v1587 = vmul.f32 %v1573, 1.442695
        %v1588 = vpow.pop %v1587
        %v1589 = vmul.f32 %v1574, 1.442695
        %v1590 = vpow.pop %v1589
        %v1591 = vsel %vm1542, %v1576, 0.0
        %1592 = vadd.xlane.f32.xlu0 %v1591
        %v1593 = vpop.xlane.xlu0 %1592
        %v1594 = vsel %vm1542, %v1578, 0.0
        %1595 = vadd.xlane.f32.xlu0 %v1594
        %v1596 = vpop.xlane.xlu0 %1595
        %v1597 = vsel %vm1542, %v1580, 0.0
        %1598 = vadd.xlane.f32.xlu0 %v1597
        %v1599 = vpop.xlane.xlu0 %1598
        %v1600 = vsel %vm1542, %v1582, 0.0
        %1601 = vadd.xlane.f32.xlu0 %v1600
        %v1602 = vpop.xlane.xlu0 %1601
        %v1603 = vsel %vm1542, %v1584, 0.0
        %1604 = vadd.xlane.f32.xlu0 %v1603
        %v1605 = vpop.xlane.xlu0 %1604
        %v1606 = vsel %vm1542, %v1586, 0.0
        %1607 = vadd.xlane.f32.xlu0 %v1606
        %v1608 = vpop.xlane.xlu0 %1607
        %v1609 = vsel %vm1542, %v1588, 0.0
        %1610 = vadd.xlane.f32.xlu0 %v1609
        %v1611 = vpop.xlane.xlu0 %1610
        %v1612 = vsel %vm1542, %v1590, 0.0
        %1613 = vadd.xlane.f32.xlu0 %v1612
        %v1614 = vpop.xlane.xlu0 %1613
        %v1615 = vpack.c.bf16 %v1578, %v1576
        %v1616 = vpack.c.bf16 %v1582, %v1580
        %v1617 = vpack.c.bf16 %v1586, %v1584
        %v1618 = vpack.c.bf16 %v1590, %v1588
        %v1619 = vpack.c.bf16 %v1368, %v1368
        %v1620 = vpack.c.bf16 %v1370, %v1370
        %v1622 = vsel %vm1542, %v1615, 0
        %v1625 = vsel %vm1542, %v1616, 0
        %vm1627 = vcmask 1043456
        %v1629 = vsel %vm1627, %v1619, 0
        %1631 = vmatprep.subr.bf16.mxu0 0
        %1632 = vmatpush1.bf16.msra.mxu0 %v1629
        %1633 = vmatprep.subr.bf16.mxu0 0
        %1634 = vmatpush1.bf16.msra.mxu0 0
        %1635 = vmatprep.subr.bf16.mxu0 0
        %1636 = vmatpush1.bf16.msra.mxu0 0
        %1637 = vmatprep.subr.bf16.mxu0 0
        %1638 = vmatpush1.bf16.msra.mxu0 0
        %1639 = vmatprep.subr.bf16.mxu0 0
        %1640 = vmatpush1.bf16.msra.mxu0 0
        %1641 = vmatprep.subr.bf16.mxu0 0
        %1642 = vmatpush1.bf16.msra.mxu0 0
        %1643 = vmatprep.subr.bf16.mxu0 0
        %1644 = vmatpush1.bf16.msra.mxu0 0
        %1645 = vmatprep.subr.bf16.mxu0 0
        %1646 = vmatpush1.bf16.msra.mxu0 0
        %1647 = vmatprep.subr.bf16.mxu0 0
        %1648 = vmatpush1.bf16.msra.mxu0 0
        %1649 = vmatprep.subr.bf16.mxu0 0
        %1650 = vmatpush1.bf16.msra.mxu0 0
        %1651 = vmatprep.subr.bf16.mxu0 0
        %1652 = vmatpush1.bf16.msra.mxu0 0
        %1653 = vmatprep.subr.bf16.mxu0 0
        %1654 = vmatpush1.bf16.msra.mxu0 0
        %1655 = vmatprep.subr.bf16.mxu0 0
        %1656 = vmatpush1.bf16.msra.mxu0 0
        %1657 = vmatprep.subr.bf16.mxu0 0
        %1658 = vmatpush1.bf16.msra.mxu0 0
        %1659 = vmatprep.subr.bf16.mxu0 0
        %1660 = vmatpush1.bf16.msra.mxu0 0
        %1661 = vmatprep.subr.bf16.mxu0 0
        %1662 = vmatpush1.bf16.msra.mxu0 0
        %1663 = vmatprep.mubr.bf16.mxu0 0
        %1664 = vmatmul.mubr.bf16.gmra.mrb[0].mxu0 %v1622
        %v1665 = vpop.f32.mrb[0].mxu0
        %v1666 = vadd.f32 0.0, %v1665
        %v1667 = vpop.f32.mrb[0].mxu0
        %v1668 = vpop.f32.mrb[0].mxu0
        %v1669 = vadd.f32 0.0, %v1668
        %v1670 = vpop.f32.mrb[0].mxu0
        %1671 = vmatprep.mubr.bf16.mxu0 0
        %1672 = vmatmul.mubr.bf16.gmra.mrb[0].mxu0 %v1625
        %v1673 = vpop.f32.mrb[0].mxu0
        %v1674 = vadd.f32 0.0, %v1673
        %v1675 = vpop.f32.mrb[0].mxu0
        %v1676 = vpop.f32.mrb[0].mxu0
        %v1677 = vadd.f32 0.0, %v1676
        %v1678 = vpop.f32.mrb[0].mxu0
        %1679 = vdwg.mxu0
        %v1681 = vsel %vm1542, %v1617, 0
        %v1684 = vsel %vm1542, %v1618, 0
        %v1687 = vsel %vm1627, %v1620, 0
        %1689 = vmatprep.subr.bf16.mxu0 0
        %1690 = vmatpush1.bf16.msra.mxu0 %v1687
        %1691 = vmatprep.subr.bf16.mxu0 0
        %1692 = vmatpush1.bf16.msra.mxu0 0
        %1693 = vmatprep.subr.bf16.mxu0 0
        %1694 = vmatpush1.bf16.msra.mxu0 0
        %1695 = vmatprep.subr.bf16.mxu0 0
        %1696 = vmatpush1.bf16.msra.mxu0 0
        %1697 = vmatprep.subr.bf16.mxu0 0
        %1698 = vmatpush1.bf16.msra.mxu0 0
        %1699 = vmatprep.subr.bf16.mxu0 0
        %1700 = vmatpush1.bf16.msra.mxu0 0
        %1701 = vmatprep.subr.bf16.mxu0 0
        %1702 = vmatpush1.bf16.msra.mxu0 0
        %1703 = vmatprep.subr.bf16.mxu0 0
        %1704 = vmatpush1.bf16.msra.mxu0 0
        %1705 = vmatprep.subr.bf16.mxu0 0
        %1706 = vmatpush1.bf16.msra.mxu0 0
        %1707 = vmatprep.subr.bf16.mxu0 0
        %1708 = vmatpush1.bf16.msra.mxu0 0
        %1709 = vmatprep.subr.bf16.mxu0 0
        %1710 = vmatpush1.bf16.msra.mxu0 0
        %1711 = vmatprep.subr.bf16.mxu0 0
        %1712 = vmatpush1.bf16.msra.mxu0 0
        %1713 = vmatprep.subr.bf16.mxu0 0
        %1714 = vmatpush1.bf16.msra.mxu0 0
        %1715 = vmatprep.subr.bf16.mxu0 0
        %1716 = vmatpush1.bf16.msra.mxu0 0
        %1717 = vmatprep.subr.bf16.mxu0 0
        %1718 = vmatpush1.bf16.msra.mxu0 0
        %1719 = vmatprep.subr.bf16.mxu0 0
        %1720 = vmatpush1.bf16.msra.mxu0 0
        %1721 = vmatprep.mubr.bf16.mxu0 0
        %1722 = vmatmul.mubr.bf16.gmra.mrb[0].mxu0 %v1681
        %v1723 = vpop.f32.mrb[0].mxu0
        %v1724 = vadd.f32 0.0, %v1723
        %v1725 = vpop.f32.mrb[0].mxu0
        %v1726 = vpop.f32.mrb[0].mxu0
        %v1727 = vadd.f32 0.0, %v1726
        %v1728 = vpop.f32.mrb[0].mxu0
        %1729 = vmatprep.mubr.bf16.mxu0 0
        %1730 = vmatmul.mubr.bf16.gmra.mrb[0].mxu0 %v1684
        %v1731 = vpop.f32.mrb[0].mxu0
        %v1732 = vadd.f32 0.0, %v1731
        %v1733 = vpop.f32.mrb[0].mxu0
        %v1734 = vpop.f32.mrb[0].mxu0
        %v1735 = vadd.f32 0.0, %v1734
        %v1736 = vpop.f32.mrb[0].mxu0
        %1737 = vdwg.mxu0
        %v1738 = vrcp.pop %v1593
        %v1739 = vrcp.pop %v1596
        %v1740 = vrcp.pop %v1599
        %v1741 = vrcp.pop %v1602
        %v1742 = vrcp.pop %v1605
        %v1743 = vrcp.pop %v1608
        %v1744 = vrcp.pop %v1611
        %v1745 = vrcp.pop %v1614
        %v1746 = vmul.f32 %v1666, %v1738
        %v1747 = vmul.f32 %v1669, %v1739
        %v1748 = vmul.f32 %v1674, %v1740
        %v1749 = vmul.f32 %v1677, %v1741
        %v1750 = vmul.f32 %v1724, %v1742
        %v1751 = vmul.f32 %v1727, %v1743
        %v1752 = vmul.f32 %v1732, %v1744
        %v1753 = vmul.f32 %v1735, %v1745
        %v1754 = vpack.c.bf16 %v1746, %v1746
        %v1755 = vpack.c.bf16 %v1747, %v1747
        %v1756 = vpack.c.bf16 %v1748, %v1748
        %v1757 = vpack.c.bf16 %v1749, %v1749
        %v1758 = vpack.c.bf16 %v1750, %v1750
        %v1759 = vpack.c.bf16 %v1751, %v1751
        %v1760 = vpack.c.bf16 %v1752, %v1752
        %v1761 = vpack.c.bf16 %v1753, %v1753
        %v1762 = vld [vmem:[%s482] sm:$0xf]
        %v1763 = vld [vmem:[%s482 + $0x4] sm:$0xf]
        %v1764 = vld [vmem:[%s482 + $0x8] sm:$0xf]
        %v1765 = vld [vmem:[%s482 + $0xc] sm:$0xf]
        %v1766 = vld [vmem:[%s482 + $0x10] sm:$0xf]
        %v1767 = vld [vmem:[%s482 + $0x14] sm:$0xf]
        %v1768 = vld [vmem:[%s482 + $0x18] sm:$0xf]
        %v1769 = vld [vmem:[%s482 + $0x1c] sm:$0xf]
        %v1770 = vld [vmem:[%s482 + $0x20] sm:$0xf]
        %v1771 = vld [vmem:[%s482 + $0x24] sm:$0xf]
        %v1772 = vld [vmem:[%s482 + $0x28] sm:$0xf]
        %v1773 = vld [vmem:[%s482 + $0x2c] sm:$0xf]
        %v1774 = vld [vmem:[%s482 + $0x30] sm:$0xf]
        %v1775 = vld [vmem:[%s482 + $0x34] sm:$0xf]
        %v1776 = vld [vmem:[%s482 + $0x38] sm:$0xf]
        %v1777 = vld [vmem:[%s482 + $0x3c] sm:$0xf]
        %v1778 = vld [vmem:[%s482 + $0x40] sm:$0xf]
        %v1779 = vld [vmem:[%s482 + $0x44] sm:$0xf]
        %v1780 = vld [vmem:[%s482 + $0x48] sm:$0xf]
        %v1781 = vld [vmem:[%s482 + $0x4c] sm:$0xf]
        %v1782 = vld [vmem:[%s482 + $0x50] sm:$0xf]
        %v1783 = vld [vmem:[%s482 + $0x54] sm:$0xf]
        %v1784 = vld [vmem:[%s482 + $0x58] sm:$0xf]
        %v1785 = vld [vmem:[%s482 + $0x5c] sm:$0xf]
        %v1786 = vld [vmem:[%s482 + $0x60] sm:$0xf]
        %v1787 = vld [vmem:[%s482 + $0x64] sm:$0xf]
        %v1788 = vld [vmem:[%s482 + $0x68] sm:$0xf]
        %v1789 = vld [vmem:[%s482 + $0x6c] sm:$0xf]
        %v1790 = vld [vmem:[%s482 + $0x70] sm:$0xf]
        %v1791 = vld [vmem:[%s482 + $0x74] sm:$0xf]
        %v1792 = vld [vmem:[%s482 + $0x78] sm:$0xf]
        %v1793 = vld [vmem:[%s482 + $0x7c] sm:$0xf]
        %v1794 = vld [vmem:[%s482 + $0x80] sm:$0xf]
        %v1795 = vld [vmem:[%s482 + $0x84] sm:$0xf]
        %v1796 = vld [vmem:[%s482 + $0x88] sm:$0xf]
        %v1797 = vld [vmem:[%s482 + $0x8c] sm:$0xf]
        %v1798 = vld [vmem:[%s482 + $0x90] sm:$0xf]
        %v1799 = vld [vmem:[%s482 + $0x94] sm:$0xf]
        %v1800 = vld [vmem:[%s482 + $0x98] sm:$0xf]
        %v1801 = vld [vmem:[%s482 + $0x9c] sm:$0xf]
        %v1802 = vld [vmem:[%s482 + $0xa0] sm:$0xf]
        %v1803 = vld [vmem:[%s482 + $0xa4] sm:$0xf]
        %v1804 = vld [vmem:[%s482 + $0xa8] sm:$0xf]
        %v1805 = vld [vmem:[%s482 + $0xac] sm:$0xf]
        %v1806 = vld [vmem:[%s482 + $0xb0] sm:$0xf]
        %v1807 = vld [vmem:[%s482 + $0xb4] sm:$0xf]
        %v1808 = vld [vmem:[%s482 + $0xb8] sm:$0xf]
        %v1809 = vld [vmem:[%s482 + $0xbc] sm:$0xf]
        %v1810 = vld [vmem:[%s482 + $0xc0] sm:$0xf]
        %v1811 = vld [vmem:[%s482 + $0xc4] sm:$0xf]
        %v1812 = vld [vmem:[%s482 + $0xc8] sm:$0xf]
        %v1813 = vld [vmem:[%s482 + $0xcc] sm:$0xf]
        %v1814 = vld [vmem:[%s482 + $0xd0] sm:$0xf]
        %v1815 = vld [vmem:[%s482 + $0xd4] sm:$0xf]
        %v1816 = vld [vmem:[%s482 + $0xd8] sm:$0xf]
        %v1817 = vld [vmem:[%s482 + $0xdc] sm:$0xf]
        %v1818 = vld [vmem:[%s482 + $0xe0] sm:$0xf]
        %v1819 = vld [vmem:[%s482 + $0xe4] sm:$0xf]
        %v1820 = vld [vmem:[%s482 + $0xe8] sm:$0xf]
        %v1821 = vld [vmem:[%s482 + $0xec] sm:$0xf]
        %v1822 = vld [vmem:[%s482 + $0xf0] sm:$0xf]
        %v1823 = vld [vmem:[%s482 + $0xf4] sm:$0xf]
        %v1824 = vld [vmem:[%s482 + $0xf8] sm:$0xf]
        %v1825 = vld [vmem:[%s482 + $0xfc] sm:$0xf]
        %v1826 = vld [vmem:[%s482 + $0x100] sm:$0xf]
        %v1827 = vld [vmem:[%s482 + $0x104] sm:$0xf]
        %v1828 = vld [vmem:[%s482 + $0x108] sm:$0xf]
        %v1829 = vld [vmem:[%s482 + $0x10c] sm:$0xf]
        %v1830 = vld [vmem:[%s482 + $0x110] sm:$0xf]
        %v1831 = vld [vmem:[%s482 + $0x114] sm:$0xf]
        %v1832 = vld [vmem:[%s482 + $0x118] sm:$0xf]
        %v1833 = vld [vmem:[%s482 + $0x11c] sm:$0xf]
        %v1834 = vld [vmem:[%s482 + $0x120] sm:$0xf]
        %v1835 = vld [vmem:[%s482 + $0x124] sm:$0xf]
        %v1836 = vld [vmem:[%s482 + $0x128] sm:$0xf]
        %v1837 = vld [vmem:[%s482 + $0x12c] sm:$0xf]
        %v1838 = vld [vmem:[%s482 + $0x130] sm:$0xf]
        %v1839 = vld [vmem:[%s482 + $0x134] sm:$0xf]
        %v1840 = vld [vmem:[%s482 + $0x138] sm:$0xf]
        %v1841 = vld [vmem:[%s482 + $0x13c] sm:$0xf]
        %v1842 = vld [vmem:[%s482 + $0x140] sm:$0xf]
        %v1843 = vld [vmem:[%s482 + $0x144] sm:$0xf]
        %v1844 = vld [vmem:[%s482 + $0x148] sm:$0xf]
        %v1845 = vld [vmem:[%s482 + $0x14c] sm:$0xf]
        %v1846 = vld [vmem:[%s482 + $0x150] sm:$0xf]
        %v1847 = vld [vmem:[%s482 + $0x154] sm:$0xf]
        %v1848 = vld [vmem:[%s482 + $0x158] sm:$0xf]
        %v1849 = vld [vmem:[%s482 + $0x15c] sm:$0xf]
        %v1850 = vld [vmem:[%s482 + $0x160] sm:$0xf]
        %v1851 = vld [vmem:[%s482 + $0x164] sm:$0xf]
        %v1852 = vld [vmem:[%s482 + $0x168] sm:$0xf]
        %v1853 = vld [vmem:[%s482 + $0x16c] sm:$0xf]
        %v1854 = vld [vmem:[%s482 + $0x170] sm:$0xf]
        %v1855 = vld [vmem:[%s482 + $0x174] sm:$0xf]
        %v1856 = vld [vmem:[%s482 + $0x178] sm:$0xf]
        %v1857 = vld [vmem:[%s482 + $0x17c] sm:$0xf]
        %v1858 = vld [vmem:[%s482 + $0x180] sm:$0xf]
        %v1859 = vld [vmem:[%s482 + $0x184] sm:$0xf]
        %v1860 = vld [vmem:[%s482 + $0x188] sm:$0xf]
        %v1861 = vld [vmem:[%s482 + $0x18c] sm:$0xf]
        %v1862 = vld [vmem:[%s482 + $0x190] sm:$0xf]
        %v1863 = vld [vmem:[%s482 + $0x194] sm:$0xf]
        %v1864 = vld [vmem:[%s482 + $0x198] sm:$0xf]
        %v1865 = vld [vmem:[%s482 + $0x19c] sm:$0xf]
        %v1866 = vld [vmem:[%s482 + $0x1a0] sm:$0xf]
        %v1867 = vld [vmem:[%s482 + $0x1a4] sm:$0xf]
        %v1868 = vld [vmem:[%s482 + $0x1a8] sm:$0xf]
        %v1869 = vld [vmem:[%s482 + $0x1ac] sm:$0xf]
        %v1870 = vld [vmem:[%s482 + $0x1b0] sm:$0xf]
        %v1871 = vld [vmem:[%s482 + $0x1b4] sm:$0xf]
        %v1872 = vld [vmem:[%s482 + $0x1b8] sm:$0xf]
        %v1873 = vld [vmem:[%s482 + $0x1bc] sm:$0xf]
        %v1874 = vld [vmem:[%s482 + $0x1c0] sm:$0xf]
        %v1875 = vld [vmem:[%s482 + $0x1c4] sm:$0xf]
        %v1876 = vld [vmem:[%s482 + $0x1c8] sm:$0xf]
        %v1877 = vld [vmem:[%s482 + $0x1cc] sm:$0xf]
        %v1878 = vld [vmem:[%s482 + $0x1d0] sm:$0xf]
        %v1879 = vld [vmem:[%s482 + $0x1d4] sm:$0xf]
        %v1880 = vld [vmem:[%s482 + $0x1d8] sm:$0xf]
        %v1881 = vld [vmem:[%s482 + $0x1dc] sm:$0xf]
        %v1882 = vld [vmem:[%s482 + $0x1e0] sm:$0xf]
        %v1883 = vld [vmem:[%s482 + $0x1e4] sm:$0xf]
        %v1884 = vld [vmem:[%s482 + $0x1e8] sm:$0xf]
        %v1885 = vld [vmem:[%s482 + $0x1ec] sm:$0xf]
        %v1886 = vld [vmem:[%s482 + $0x1f0] sm:$0xf]
        %v1887 = vld [vmem:[%s482 + $0x1f4] sm:$0xf]
        %v1888 = vld [vmem:[%s482 + $0x1f8] sm:$0xf]
        %v1889 = vld [vmem:[%s482 + $0x1fc] sm:$0xf]
        %v2018 = vunpack.c.l.b16 %v1762
        %v2019 = vunpack.c.l.b16 %v1763
        %v2020 = vunpack.c.l.b16 %v1764
        %v2021 = vunpack.c.l.b16 %v1765
        %v2022 = vunpack.c.l.b16 %v1766
        %v2023 = vunpack.c.l.b16 %v1767
        %v2024 = vunpack.c.l.b16 %v1768
        %v2025 = vunpack.c.l.b16 %v1769
        %v2026 = vunpack.c.l.b16 %v1770
        %v2027 = vunpack.c.l.b16 %v1771
        %v2028 = vunpack.c.l.b16 %v1772
        %v2029 = vunpack.c.l.b16 %v1773
        %v2030 = vunpack.c.l.b16 %v1774
        %v2031 = vunpack.c.l.b16 %v1775
        %v2032 = vunpack.c.l.b16 %v1776
        %v2033 = vunpack.c.l.b16 %v1777
        %v2034 = vunpack.c.l.b16 %v1778
        %v2035 = vunpack.c.l.b16 %v1779
        %v2036 = vunpack.c.l.b16 %v1780
        %v2037 = vunpack.c.l.b16 %v1781
        %v2038 = vunpack.c.l.b16 %v1782
        %v2039 = vunpack.c.l.b16 %v1783
        %v2040 = vunpack.c.l.b16 %v1784
        %v2041 = vunpack.c.l.b16 %v1785
        %v2042 = vunpack.c.l.b16 %v1786
        %v2043 = vunpack.c.l.b16 %v1787
        %v2044 = vunpack.c.l.b16 %v1788
        %v2045 = vunpack.c.l.b16 %v1789
        %v2046 = vunpack.c.l.b16 %v1790
        %v2047 = vunpack.c.l.b16 %v1791
        %v2048 = vunpack.c.l.b16 %v1792
        %v2049 = vunpack.c.l.b16 %v1793
        %v2050 = vunpack.c.l.b16 %v1794
        %v2051 = vunpack.c.l.b16 %v1795
        %v2052 = vunpack.c.l.b16 %v1796
        %v2053 = vunpack.c.l.b16 %v1797
        %v2054 = vunpack.c.l.b16 %v1798
        %v2055 = vunpack.c.l.b16 %v1799
        %v2056 = vunpack.c.l.b16 %v1800
        %v2057 = vunpack.c.l.b16 %v1801
        %v2058 = vunpack.c.l.b16 %v1802
        %v2059 = vunpack.c.l.b16 %v1803
        %v2060 = vunpack.c.l.b16 %v1804
        %v2061 = vunpack.c.l.b16 %v1805
        %v2062 = vunpack.c.l.b16 %v1806
        %v2063 = vunpack.c.l.b16 %v1807
        %v2064 = vunpack.c.l.b16 %v1808
        %v2065 = vunpack.c.l.b16 %v1809
        %v2066 = vunpack.c.l.b16 %v1810
        %v2067 = vunpack.c.l.b16 %v1811
        %v2068 = vunpack.c.l.b16 %v1812
        %v2069 = vunpack.c.l.b16 %v1813
        %v2070 = vunpack.c.l.b16 %v1814
        %v2071 = vunpack.c.l.b16 %v1815
        %v2072 = vunpack.c.l.b16 %v1816
        %v2073 = vunpack.c.l.b16 %v1817
        %v2074 = vunpack.c.l.b16 %v1818
        %v2075 = vunpack.c.l.b16 %v1819
        %v2076 = vunpack.c.l.b16 %v1820
        %v2077 = vunpack.c.l.b16 %v1821
        %v2078 = vunpack.c.l.b16 %v1822
        %v2079 = vunpack.c.l.b16 %v1823
        %v2080 = vunpack.c.l.b16 %v1824
        %v2081 = vunpack.c.l.b16 %v1825
        %v2082 = vunpack.c.l.b16 %v1826
        %v2083 = vunpack.c.l.b16 %v1827
        %v2084 = vunpack.c.l.b16 %v1828
        %v2085 = vunpack.c.l.b16 %v1829
        %v2086 = vunpack.c.l.b16 %v1830
        %v2087 = vunpack.c.l.b16 %v1831
        %v2088 = vunpack.c.l.b16 %v1832
        %v2089 = vunpack.c.l.b16 %v1833
        %v2090 = vunpack.c.l.b16 %v1834
        %v2091 = vunpack.c.l.b16 %v1835
        %v2092 = vunpack.c.l.b16 %v1836
        %v2093 = vunpack.c.l.b16 %v1837
        %v2094 = vunpack.c.l.b16 %v1838
        %v2095 = vunpack.c.l.b16 %v1839
        %v2096 = vunpack.c.l.b16 %v1840
        %v2097 = vunpack.c.l.b16 %v1841
        %v2098 = vunpack.c.l.b16 %v1842
        %v2099 = vunpack.c.l.b16 %v1843
        %v2100 = vunpack.c.l.b16 %v1844
        %v2101 = vunpack.c.l.b16 %v1845
        %v2102 = vunpack.c.l.b16 %v1846
        %v2103 = vunpack.c.l.b16 %v1847
        %v2104 = vunpack.c.l.b16 %v1848
        %v2105 = vunpack.c.l.b16 %v1849
        %v2106 = vunpack.c.l.b16 %v1850
        %v2107 = vunpack.c.l.b16 %v1851
        %v2108 = vunpack.c.l.b16 %v1852
        %v2109 = vunpack.c.l.b16 %v1853
        %v2110 = vunpack.c.l.b16 %v1854
        %v2111 = vunpack.c.l.b16 %v1855
        %v2112 = vunpack.c.l.b16 %v1856
        %v2113 = vunpack.c.l.b16 %v1857
        %v2114 = vunpack.c.l.b16 %v1858
        %v2115 = vunpack.c.l.b16 %v1859
        %v2116 = vunpack.c.l.b16 %v1860
        %v2117 = vunpack.c.l.b16 %v1861
        %v2118 = vunpack.c.l.b16 %v1862
        %v2119 = vunpack.c.l.b16 %v1863
        %v2120 = vunpack.c.l.b16 %v1864
        %v2121 = vunpack.c.l.b16 %v1865
        %v2122 = vunpack.c.l.b16 %v1866
        %v2123 = vunpack.c.l.b16 %v1867
        %v2124 = vunpack.c.l.b16 %v1868
        %v2125 = vunpack.c.l.b16 %v1869
        %v2126 = vunpack.c.l.b16 %v1870
        %v2127 = vunpack.c.l.b16 %v1871
        %v2128 = vunpack.c.l.b16 %v1872
        %v2129 = vunpack.c.l.b16 %v1873
        %v2130 = vunpack.c.l.b16 %v1874
        %v2131 = vunpack.c.l.b16 %v1875
        %v2132 = vunpack.c.l.b16 %v1876
        %v2133 = vunpack.c.l.b16 %v1877
        %v2134 = vunpack.c.l.b16 %v1878
        %v2135 = vunpack.c.l.b16 %v1879
        %v2136 = vunpack.c.l.b16 %v1880
        %v2137 = vunpack.c.l.b16 %v1881
        %v2138 = vunpack.c.l.b16 %v1882
        %v2139 = vunpack.c.l.b16 %v1883
        %v2140 = vunpack.c.l.b16 %v1884
        %v2141 = vunpack.c.l.b16 %v1885
        %v2142 = vunpack.c.l.b16 %v1886
        %v2143 = vunpack.c.l.b16 %v1887
        %v2144 = vunpack.c.l.b16 %v1888
        %v2145 = vunpack.c.l.b16 %v1889
        %v2146 = vpack.c.b16 %v2019, %v2018
        %v2147 = vpack.c.b16 %v2021, %v2020
        %v2148 = vpack.c.b16 %v2023, %v2022
        %v2149 = vpack.c.b16 %v2025, %v2024
        %v2150 = vpack.c.b16 %v2027, %v2026
        %v2151 = vpack.c.b16 %v2029, %v2028
        %v2152 = vpack.c.b16 %v2031, %v2030
        %v2153 = vpack.c.b16 %v2033, %v2032
        %v2154 = vpack.c.b16 %v2035, %v2034
        %v2155 = vpack.c.b16 %v2037, %v2036
        %v2156 = vpack.c.b16 %v2039, %v2038
        %v2157 = vpack.c.b16 %v2041, %v2040
        %v2158 = vpack.c.b16 %v2043, %v2042
        %v2159 = vpack.c.b16 %v2045, %v2044
        %v2160 = vpack.c.b16 %v2047, %v2046
        %v2161 = vpack.c.b16 %v2049, %v2048
        %v2162 = vpack.c.b16 %v2051, %v2050
        %v2163 = vpack.c.b16 %v2053, %v2052
        %v2164 = vpack.c.b16 %v2055, %v2054
        %v2165 = vpack.c.b16 %v2057, %v2056
        %v2166 = vpack.c.b16 %v2059, %v2058
        %v2167 = vpack.c.b16 %v2061, %v2060
        %v2168 = vpack.c.b16 %v2063, %v2062
        %v2169 = vpack.c.b16 %v2065, %v2064
        %v2170 = vpack.c.b16 %v2067, %v2066
        %v2171 = vpack.c.b16 %v2069, %v2068
        %v2172 = vpack.c.b16 %v2071, %v2070
        %v2173 = vpack.c.b16 %v2073, %v2072
        %v2174 = vpack.c.b16 %v2075, %v2074
        %v2175 = vpack.c.b16 %v2077, %v2076
        %v2176 = vpack.c.b16 %v2079, %v2078
        %v2177 = vpack.c.b16 %v2081, %v2080
        %v2178 = vpack.c.b16 %v2083, %v2082
        %v2179 = vpack.c.b16 %v2085, %v2084
        %v2180 = vpack.c.b16 %v2087, %v2086
        %v2181 = vpack.c.b16 %v2089, %v2088
        %v2182 = vpack.c.b16 %v2091, %v2090
        %v2183 = vpack.c.b16 %v2093, %v2092
        %v2184 = vpack.c.b16 %v2095, %v2094
        %v2185 = vpack.c.b16 %v2097, %v2096
        %v2186 = vpack.c.b16 %v2099, %v2098
        %v2187 = vpack.c.b16 %v2101, %v2100
        %v2188 = vpack.c.b16 %v2103, %v2102
        %v2189 = vpack.c.b16 %v2105, %v2104
        %v2190 = vpack.c.b16 %v2107, %v2106
        %v2191 = vpack.c.b16 %v2109, %v2108
        %v2192 = vpack.c.b16 %v2111, %v2110
        %v2193 = vpack.c.b16 %v2113, %v2112
        %v2194 = vpack.c.b16 %v2115, %v2114
        %v2195 = vpack.c.b16 %v2117, %v2116
        %v2196 = vpack.c.b16 %v2119, %v2118
        %v2197 = vpack.c.b16 %v2121, %v2120
        %v2198 = vpack.c.b16 %v2123, %v2122
        %v2199 = vpack.c.b16 %v2125, %v2124
        %v2200 = vpack.c.b16 %v2127, %v2126
        %v2201 = vpack.c.b16 %v2129, %v2128
        %v2202 = vpack.c.b16 %v2131, %v2130
        %v2203 = vpack.c.b16 %v2133, %v2132
        %v2204 = vpack.c.b16 %v2135, %v2134
        %v2205 = vpack.c.b16 %v2137, %v2136
        %v2206 = vpack.c.b16 %v2139, %v2138
        %v2207 = vpack.c.b16 %v2141, %v2140
        %v2208 = vpack.c.b16 %v2143, %v2142
        %v2209 = vpack.c.b16 %v2145, %v2144
        %2274 = vmatprep.subr.bf16.mxu0 0
        %2275 = vmatpush1.bf16.msra.mxu0 %v2146
        %2276 = vmatprep.subr.bf16.mxu0 0
        %2277 = vmatpush1.bf16.msra.mxu0 %v2147
        %2278 = vmatprep.subr.bf16.mxu0 0
        %2279 = vmatpush1.bf16.msra.mxu0 %v2148
        %2280 = vmatprep.subr.bf16.mxu0 0
        %2281 = vmatpush1.bf16.msra.mxu0 %v2149
        %2282 = vmatprep.subr.bf16.mxu0 0
        %2283 = vmatpush1.bf16.msra.mxu0 %v2150
        %2284 = vmatprep.subr.bf16.mxu0 0
        %2285 = vmatpush1.bf16.msra.mxu0 %v2151
        %2286 = vmatprep.subr.bf16.mxu0 0
        %2287 = vmatpush1.bf16.msra.mxu0 %v2152
        %2288 = vmatprep.subr.bf16.mxu0 0
        %2289 = vmatpush1.bf16.msra.mxu0 %v2153
        %2290 = vmatprep.subr.bf16.mxu0 0
        %2291 = vmatpush1.bf16.msra.mxu0 %v2154
        %2292 = vmatprep.subr.bf16.mxu0 0
        %2293 = vmatpush1.bf16.msra.mxu0 %v2155
        %2294 = vmatprep.subr.bf16.mxu0 0
        %2295 = vmatpush1.bf16.msra.mxu0 %v2156
        %2296 = vmatprep.subr.bf16.mxu0 0
        %2297 = vmatpush1.bf16.msra.mxu0 %v2157
        %2298 = vmatprep.subr.bf16.mxu0 0
        %2299 = vmatpush1.bf16.msra.mxu0 %v2158
        %2300 = vmatprep.subr.bf16.mxu0 0
        %2301 = vmatpush1.bf16.msra.mxu0 %v2159
        %2302 = vmatprep.subr.bf16.mxu0 0
        %2303 = vmatpush1.bf16.msra.mxu0 %v2160
        %2304 = vmatprep.subr.bf16.mxu0 0
        %2305 = vmatpush1.bf16.msra.mxu0 %v2161
        %2306 = vmatprep.mubr.bf16.mxu0 %v1755
        %2307 = vmatmul.mubr.bf16.gmra.mrb[0].mxu0 %v1754
        %v2308 = vpop.f32.mrb[0].mxu0
        %v2309 = vadd.f32 0.0, %v2308
        %v2310 = vpop.f32.mrb[0].mxu0
        %v2311 = vpop.f32.mrb[0].mxu0
        %v2312 = vpop.f32.mrb[0].mxu0
        %2313 = vdwg.mxu0
        %2314 = vmatprep.subr.bf16.mxu0 0
        %2315 = vmatpush1.bf16.msra.mxu0 %v2162
        %2316 = vmatprep.subr.bf16.mxu0 0
        %2317 = vmatpush1.bf16.msra.mxu0 %v2163
        %2318 = vmatprep.subr.bf16.mxu0 0
        %2319 = vmatpush1.bf16.msra.mxu0 %v2164
        %2320 = vmatprep.subr.bf16.mxu0 0
        %2321 = vmatpush1.bf16.msra.mxu0 %v2165
        %2322 = vmatprep.subr.bf16.mxu0 0
        %2323 = vmatpush1.bf16.msra.mxu0 %v2166
        %2324 = vmatprep.subr.bf16.mxu0 0
        %2325 = vmatpush1.bf16.msra.mxu0 %v2167
        %2326 = vmatprep.subr.bf16.mxu0 0
        %2327 = vmatpush1.bf16.msra.mxu0 %v2168
        %2328 = vmatprep.subr.bf16.mxu0 0
        %2329 = vmatpush1.bf16.msra.mxu0 %v2169
        %2330 = vmatprep.subr.bf16.mxu0 0
        %2331 = vmatpush1.bf16.msra.mxu0 %v2170
        %2332 = vmatprep.subr.bf16.mxu0 0
        %2333 = vmatpush1.bf16.msra.mxu0 %v2171
        %2334 = vmatprep.subr.bf16.mxu0 0
        %2335 = vmatpush1.bf16.msra.mxu0 %v2172
        %2336 = vmatprep.subr.bf16.mxu0 0
        %2337 = vmatpush1.bf16.msra.mxu0 %v2173
        %2338 = vmatprep.subr.bf16.mxu0 0
        %2339 = vmatpush1.bf16.msra.mxu0 %v2174
        %2340 = vmatprep.subr.bf16.mxu0 0
        %2341 = vmatpush1.bf16.msra.mxu0 %v2175
        %2342 = vmatprep.subr.bf16.mxu0 0
        %2343 = vmatpush1.bf16.msra.mxu0 %v2176
        %2344 = vmatprep.subr.bf16.mxu0 0
        %2345 = vmatpush1.bf16.msra.mxu0 %v2177
        %2346 = vmatprep.mubr.bf16.mxu0 %v1757
        %2347 = vmatmul.mubr.bf16.gmra.mrb[0].mxu0 %v1756
        %v2348 = vpop.f32.mrb[0].mxu0
        %v2349 = vadd.f32 %v2309, %v2348
        %v2350 = vpop.f32.mrb[0].mxu0
        %v2351 = vpop.f32.mrb[0].mxu0
        %v2352 = vpop.f32.mrb[0].mxu0
        %2353 = vdwg.mxu0
        %2354 = vmatprep.subr.bf16.mxu0 0
        %2355 = vmatpush1.bf16.msra.mxu0 %v2178
        %2356 = vmatprep.subr.bf16.mxu0 0
        %2357 = vmatpush1.bf16.msra.mxu0 %v2179
        %2358 = vmatprep.subr.bf16.mxu0 0
        %2359 = vmatpush1.bf16.msra.mxu0 %v2180
        %2360 = vmatprep.subr.bf16.mxu0 0
        %2361 = vmatpush1.bf16.msra.mxu0 %v2181
        %2362 = vmatprep.subr.bf16.mxu0 0
        %2363 = vmatpush1.bf16.msra.mxu0 %v2182
        %2364 = vmatprep.subr.bf16.mxu0 0
        %2365 = vmatpush1.bf16.msra.mxu0 %v2183
        %2366 = vmatprep.subr.bf16.mxu0 0
        %2367 = vmatpush1.bf16.msra.mxu0 %v2184
        %2368 = vmatprep.subr.bf16.mxu0 0
        %2369 = vmatpush1.bf16.msra.mxu0 %v2185
        %2370 = vmatprep.subr.bf16.mxu0 0
        %2371 = vmatpush1.bf16.msra.mxu0 %v2186
        %2372 = vmatprep.subr.bf16.mxu0 0
        %2373 = vmatpush1.bf16.msra.mxu0 %v2187
        %2374 = vmatprep.subr.bf16.mxu0 0
        %2375 = vmatpush1.bf16.msra.mxu0 %v2188
        %2376 = vmatprep.subr.bf16.mxu0 0
        %2377 = vmatpush1.bf16.msra.mxu0 %v2189
        %2378 = vmatprep.subr.bf16.mxu0 0
        %2379 = vmatpush1.bf16.msra.mxu0 %v2190
        %2380 = vmatprep.subr.bf16.mxu0 0
        %2381 = vmatpush1.bf16.msra.mxu0 %v2191
        %2382 = vmatprep.subr.bf16.mxu0 0
        %2383 = vmatpush1.bf16.msra.mxu0 %v2192
        %2384 = vmatprep.subr.bf16.mxu0 0
        %2385 = vmatpush1.bf16.msra.mxu0 %v2193
        %2386 = vmatprep.mubr.bf16.mxu0 %v1759
        %2387 = vmatmul.mubr.bf16.gmra.mrb[0].mxu0 %v1758
        %v2388 = vpop.f32.mrb[0].mxu0
        %v2389 = vadd.f32 %v2349, %v2388
        %v2390 = vpop.f32.mrb[0].mxu0
        %v2391 = vpop.f32.mrb[0].mxu0
        %v2392 = vpop.f32.mrb[0].mxu0
        %2393 = vdwg.mxu0
        %2394 = vmatprep.subr.bf16.mxu0 0
        %2395 = vmatpush1.bf16.msra.mxu0 %v2194
        %2396 = vmatprep.subr.bf16.mxu0 0
        %2397 = vmatpush1.bf16.msra.mxu0 %v2195
        %2398 = vmatprep.subr.bf16.mxu0 0
        %2399 = vmatpush1.bf16.msra.mxu0 %v2196
        %2400 = vmatprep.subr.bf16.mxu0 0
        %2401 = vmatpush1.bf16.msra.mxu0 %v2197
        %2402 = vmatprep.subr.bf16.mxu0 0
        %2403 = vmatpush1.bf16.msra.mxu0 %v2198
        %2404 = vmatprep.subr.bf16.mxu0 0
        %2405 = vmatpush1.bf16.msra.mxu0 %v2199
        %2406 = vmatprep.subr.bf16.mxu0 0
        %2407 = vmatpush1.bf16.msra.mxu0 %v2200
        %2408 = vmatprep.subr.bf16.mxu0 0
        %2409 = vmatpush1.bf16.msra.mxu0 %v2201
        %2410 = vmatprep.subr.bf16.mxu0 0
        %2411 = vmatpush1.bf16.msra.mxu0 %v2202
        %2412 = vmatprep.subr.bf16.mxu0 0
        %2413 = vmatpush1.bf16.msra.mxu0 %v2203
        %2414 = vmatprep.subr.bf16.mxu0 0
        %2415 = vmatpush1.bf16.msra.mxu0 %v2204
        %2416 = vmatprep.subr.bf16.mxu0 0
        %2417 = vmatpush1.bf16.msra.mxu0 %v2205
        %2418 = vmatprep.subr.bf16.mxu0 0
        %2419 = vmatpush1.bf16.msra.mxu0 %v2206
        %2420 = vmatprep.subr.bf16.mxu0 0
        %2421 = vmatpush1.bf16.msra.mxu0 %v2207
        %2422 = vmatprep.subr.bf16.mxu0 0
        %2423 = vmatpush1.bf16.msra.mxu0 %v2208
        %2424 = vmatprep.subr.bf16.mxu0 0
        %2425 = vmatpush1.bf16.msra.mxu0 %v2209
        %2426 = vmatprep.mubr.bf16.mxu0 %v1761
        %2427 = vmatmul.mubr.bf16.gmra.mrb[0].mxu0 %v1760
        %v2428 = vpop.f32.mrb[0].mxu0
        %v2429 = vadd.f32 %v2389, %v2428
        %v2430 = vpop.f32.mrb[0].mxu0
        %v2431 = vpop.f32.mrb[0].mxu0
        %v2432 = vpop.f32.mrb[0].mxu0
        %2433 = vdwg.mxu0
        %v2434 = vadd.f32 %v961, %v2429
        %v2435 = vld [vmem:[%s485] sm:$0x1]
        %v2436 = vmul.f32 %v2434, %v2434
        %v2437 = vsel %vm964, %v2436, 0.0
        %2438 = vadd.xlane.f32.xlu0 %v2437
        %v2439 = vpop.xlane.xlu0 %2438
        %v2440 = vmul.f32 %v2439, %v968
        %v2441 = vadd.f32 %v2440, 1e-05
        %v2442 = vrsqrt.pop %v2441
        %v2443 = vmul.f32 %v2434, %v2442
        %v2445 = vlaneseq
        %v2446 = vshrl.u32 %v2445, 7
        %v2447 = vsub.s32 0, %v2446
        %v2448 = vrot.slane %v2435, %v2447
        %v2450 = vmul.f32 %v2443, %v2448
        %v2451 = vpack.c.bf16 %v2450, %v2450
        %v2452 = vld [vmem:[%s490] sm:$0xff]
        %v2453 = vld [vmem:[%s490 + $0x8] sm:$0xff]
        %v2454 = vld [vmem:[%s490 + $0x10] sm:$0xff]
        %v2455 = vld [vmem:[%s490 + $0x18] sm:$0xff]
        %v2460 = vunpack.c.l.b16 %v2452
        %v2461 = vunpack.c.h.b16 %v2452
        %v2462 = vunpack.c.l.b16 %v2453
        %v2463 = vunpack.c.h.b16 %v2453
        %v2464 = vunpack.c.l.b16 %v2454
        %v2465 = vunpack.c.h.b16 %v2454
        %v2466 = vunpack.c.l.b16 %v2455
        %v2467 = vunpack.c.h.b16 %v2455
        %v2468 = vpack.c.b16 %v2462, %v2460
        %v2469 = vpack.c.b16 %v2463, %v2461
        %v2470 = vpack.c.b16 %v2466, %v2464
        %v2471 = vpack.c.b16 %v2467, %v2465
        %v2477 = vsel %vm964, %v2451, 0
        %2479 = vmatprep.subr.bf16.mxu0 %v2469
        %2480 = vmatpush1.bf16.msra.mxu0 %v2468
        %2481 = vmatprep.subr.bf16.mxu0 %v2471
        %2482 = vmatpush1.bf16.msra.mxu0 %v2470
        %2483 = vmatprep.subr.bf16.mxu0 0
        %2484 = vmatpush1.bf16.msra.mxu0 0
        %2485 = vmatprep.subr.bf16.mxu0 0
        %2486 = vmatpush1.bf16.msra.mxu0 0
        %2487 = vmatprep.subr.bf16.mxu0 0
        %2488 = vmatpush1.bf16.msra.mxu0 0
        %2489 = vmatprep.subr.bf16.mxu0 0
        %2490 = vmatpush1.bf16.msra.mxu0 0
        %2491 = vmatprep.subr.bf16.mxu0 0
        %2492 = vmatpush1.bf16.msra.mxu0 0
        %2493 = vmatprep.subr.bf16.mxu0 0
        %2494 = vmatpush1.bf16.msra.mxu0 0
        %2495 = vmatprep.subr.bf16.mxu0 0
        %2496 = vmatpush1.bf16.msra.mxu0 0
        %2497 = vmatprep.subr.bf16.mxu0 0
        %2498 = vmatpush1.bf16.msra.mxu0 0
        %2499 = vmatprep.subr.bf16.mxu0 0
        %2500 = vmatpush1.bf16.msra.mxu0 0
        %2501 = vmatprep.subr.bf16.mxu0 0
        %2502 = vmatpush1.bf16.msra.mxu0 0
        %2503 = vmatprep.subr.bf16.mxu0 0
        %2504 = vmatpush1.bf16.msra.mxu0 0
        %2505 = vmatprep.subr.bf16.mxu0 0
        %2506 = vmatpush1.bf16.msra.mxu0 0
        %2507 = vmatprep.subr.bf16.mxu0 0
        %2508 = vmatpush1.bf16.msra.mxu0 0
        %2509 = vmatprep.subr.bf16.mxu0 0
        %2510 = vmatpush1.bf16.msra.mxu0 0
        %2511 = vmatprep.mubr.bf16.mxu0 0
        %2512 = vmatmul.mubr.bf16.gmra.mrb[0].mxu0 %v2477
        %v2513 = vpop.f32.mrb[0].mxu0
        %v2514 = vadd.f32 0.0, %v2513
        %v2515 = vpop.f32.mrb[0].mxu0
        %v2516 = vadd.f32 0.0, %v2515
        %v2517 = vpop.f32.mrb[0].mxu0
        %v2518 = vpop.f32.mrb[0].mxu0
        %2519 = vdwg.mxu0
        %v2520 = vxor.u32 %v2514, 2147483648
        %v2521 = vmul.f32 %v2520, 1.442695
        %v2522 = vpow.pop %v2521
        %v2523 = vadd.f32 %v2522, 1.0
        %v2524 = vrcp.pop %v2523
        %v2525 = vmul.f32 1.0, %v2524
        %v2526 = vmul.f32 %v2514, %v2525
        %v2527 = vmul.f32 %v2526, %v2516
        %v2528 = vpack.c.bf16 %v2527, %v2527
        %v2529 = vld [vmem:[%s495] sm:$0xf]
        %v2530 = vld [vmem:[%s495 + $0x4] sm:$0xf]
        %v2531 = vld [vmem:[%s495 + $0x8] sm:$0xf]
        %v2532 = vld [vmem:[%s495 + $0xc] sm:$0xf]
        %v2533 = vld [vmem:[%s495 + $0x10] sm:$0xf]
        %v2534 = vld [vmem:[%s495 + $0x14] sm:$0xf]
        %v2535 = vld [vmem:[%s495 + $0x18] sm:$0xf]
        %v2536 = vld [vmem:[%s495 + $0x1c] sm:$0xf]
        %v2537 = vld [vmem:[%s495 + $0x20] sm:$0xf]
        %v2538 = vld [vmem:[%s495 + $0x24] sm:$0xf]
        %v2539 = vld [vmem:[%s495 + $0x28] sm:$0xf]
        %v2540 = vld [vmem:[%s495 + $0x2c] sm:$0xf]
        %v2541 = vld [vmem:[%s495 + $0x30] sm:$0xf]
        %v2542 = vld [vmem:[%s495 + $0x34] sm:$0xf]
        %v2543 = vld [vmem:[%s495 + $0x38] sm:$0xf]
        %v2544 = vld [vmem:[%s495 + $0x3c] sm:$0xf]
        %v2561 = vunpack.c.l.b16 %v2529
        %v2562 = vunpack.c.l.b16 %v2530
        %v2563 = vunpack.c.l.b16 %v2531
        %v2564 = vunpack.c.l.b16 %v2532
        %v2565 = vunpack.c.l.b16 %v2533
        %v2566 = vunpack.c.l.b16 %v2534
        %v2567 = vunpack.c.l.b16 %v2535
        %v2568 = vunpack.c.l.b16 %v2536
        %v2569 = vunpack.c.l.b16 %v2537
        %v2570 = vunpack.c.l.b16 %v2538
        %v2571 = vunpack.c.l.b16 %v2539
        %v2572 = vunpack.c.l.b16 %v2540
        %v2573 = vunpack.c.l.b16 %v2541
        %v2574 = vunpack.c.l.b16 %v2542
        %v2575 = vunpack.c.l.b16 %v2543
        %v2576 = vunpack.c.l.b16 %v2544
        %v2577 = vpack.c.b16 %v2562, %v2561
        %v2578 = vpack.c.b16 %v2564, %v2563
        %v2579 = vpack.c.b16 %v2566, %v2565
        %v2580 = vpack.c.b16 %v2568, %v2567
        %v2581 = vpack.c.b16 %v2570, %v2569
        %v2582 = vpack.c.b16 %v2572, %v2571
        %v2583 = vpack.c.b16 %v2574, %v2573
        %v2584 = vpack.c.b16 %v2576, %v2575
        %2593 = vmatprep.subr.bf16.mxu0 0
        %2594 = vmatpush1.bf16.msra.mxu0 %v2577
        %2595 = vmatprep.subr.bf16.mxu0 0
        %2596 = vmatpush1.bf16.msra.mxu0 %v2578
        %2597 = vmatprep.subr.bf16.mxu0 0
        %2598 = vmatpush1.bf16.msra.mxu0 %v2579
        %2599 = vmatprep.subr.bf16.mxu0 0
        %2600 = vmatpush1.bf16.msra.mxu0 %v2580
        %2601 = vmatprep.subr.bf16.mxu0 0
        %2602 = vmatpush1.bf16.msra.mxu0 %v2581
        %2603 = vmatprep.subr.bf16.mxu0 0
        %2604 = vmatpush1.bf16.msra.mxu0 %v2582
        %2605 = vmatprep.subr.bf16.mxu0 0
        %2606 = vmatpush1.bf16.msra.mxu0 %v2583
        %2607 = vmatprep.subr.bf16.mxu0 0
        %2608 = vmatpush1.bf16.msra.mxu0 %v2584
        %2609 = vmatprep.subr.bf16.mxu0 0
        %2610 = vmatpush1.bf16.msra.mxu0 0
        %2611 = vmatprep.subr.bf16.mxu0 0
        %2612 = vmatpush1.bf16.msra.mxu0 0
        %2613 = vmatprep.subr.bf16.mxu0 0
        %2614 = vmatpush1.bf16.msra.mxu0 0
        %2615 = vmatprep.subr.bf16.mxu0 0
        %2616 = vmatpush1.bf16.msra.mxu0 0
        %2617 = vmatprep.subr.bf16.mxu0 0
        %2618 = vmatpush1.bf16.msra.mxu0 0
        %2619 = vmatprep.subr.bf16.mxu0 0
        %2620 = vmatpush1.bf16.msra.mxu0 0
        %2621 = vmatprep.subr.bf16.mxu0 0
        %2622 = vmatpush1.bf16.msra.mxu0 0
        %2623 = vmatprep.subr.bf16.mxu0 0
        %2624 = vmatpush1.bf16.msra.mxu0 0
        %2625 = vmatprep.mubr.bf16.mxu0 0
        %2626 = vmatmul.mubr.bf16.gmra.mrb[0].mxu0 %v2528
        %v2627 = vpop.f32.mrb[0].mxu0
        %v2628 = vadd.f32 0.0, %v2627
        %v2629 = vpop.f32.mrb[0].mxu0
        %v2630 = vpop.f32.mrb[0].mxu0
        %v2631 = vpop.f32.mrb[0].mxu0
        %2632 = vdwg.mxu0
        %v2633 = vadd.f32 %v2434, %v2628
        %2634 = vst.msk [vmem:[#allocation2] sm:$0xff] %vm964, %v2633
        %p2635 = scmp.eq.s32.totalorder %s32, 3
        // Predicated region
        $region313: #{mistral_forward.1} parent=67 // pred_check
          %p2636 = pneg %p2635
        $region314: #{mistral_forward.1} parent=67 // pred_check_branch
          %2638 = sbr.rel (%p2636) target = $region316
        $region315: #{mistral_forward.1} parent=67 // pred_region
          %v2639 = vld [vmem:[%s12] sm:$0x1]
          %v2640 = vmul.f32 %v2633, %v2633
          %v2641 = vsel %vm964, %v2640, 0.0
          %2642 = vadd.xlane.f32.xlu0 %v2641
          %v2643 = vpop.xlane.xlu0 %2642
          %v2644 = vmul.f32 %v2643, %v968
          %v2645 = vadd.f32 %v2644, 1e-05
          %v2646 = vrsqrt.pop %v2645
          %v2647 = vmul.f32 %v2633, %v2646
          %v2649 = vlaneseq
          %v2650 = vshrl.u32 %v2649, 7
          %v2651 = vsub.s32 0, %v2650
          %v2652 = vrot.slane %v2639, %v2651
          %v2654 = vmul.f32 %v2647, %v2652
          %v2655 = vpack.c.bf16 %v2654, %v2654
          %v2656 = vld [vmem:[%s13] sm:$0xff]
          %v2657 = vld [vmem:[%s13 + $0x8] sm:$0xff]
          %v2658 = vld [vmem:[%s13 + $0x10] sm:$0xff]
          %v2659 = vld [vmem:[%s13 + $0x18] sm:$0xff]
          %v2660 = vld [vmem:[%s13 + $0x20] sm:$0xff]
          %v2661 = vld [vmem:[%s13 + $0x28] sm:$0xff]
          %v2662 = vld [vmem:[%s13 + $0x30] sm:$0xff]
          %v2663 = vld [vmem:[%s13 + $0x38] sm:$0xff]
          %v2664 = vld [vmem:[%s13 + $0x40] sm:$0xff]
          %v2665 = vld [vmem:[%s13 + $0x48] sm:$0xff]
          %v2666 = vld [vmem:[%s13 + $0x50] sm:$0xff]
          %v2667 = vld [vmem:[%s13 + $0x58] sm:$0xff]
          %v2668 = vld [vmem:[%s13 + $0x60] sm:$0xff]
          %v2669 = vld [vmem:[%s13 + $0x68] sm:$0xff]
          %v2670 = vld [vmem:[%s13 + $0x70] sm:$0xff]
          %v2671 = vld [vmem:[%s13 + $0x78] sm:$0xff]
          %v2672 = vld [vmem:[%s13 + $0x80] sm:$0xff]
          %v2673 = vld [vmem:[%s13 + $0x88] sm:$0xff]
          %v2674 = vld [vmem:[%s13 + $0x90] sm:$0xff]
          %v2675 = vld [vmem:[%s13 + $0x98] sm:$0xff]
          %v2676 = vld [vmem:[%s13 + $0xa0] sm:$0xff]
          %v2677 = vld [vmem:[%s13 + $0xa8] sm:$0xff]
          %v2678 = vld [vmem:[%s13 + $0xb0] sm:$0xff]
          %v2679 = vld [vmem:[%s13 + $0xb8] sm:$0xff]
          %v2680 = vld [vmem:[%s13 + $0xc0] sm:$0xff]
          %v2681 = vld [vmem:[%s13 + $0xc8] sm:$0xff]
          %v2682 = vld [vmem:[%s13 + $0xd0] sm:$0xff]
          %v2683 = vld [vmem:[%s13 + $0xd8] sm:$0xff]
          %v2684 = vld [vmem:[%s13 + $0xe0] sm:$0xff]
          %v2685 = vld [vmem:[%s13 + $0xe8] sm:$0xff]
          %v2686 = vld [vmem:[%s13 + $0xf0] sm:$0xff]
          %v2687 = vld [vmem:[%s13 + $0xf8] sm:$0xff]
          %v2688 = vld [vmem:[%s13 + $0x100] sm:$0xff]
          %v2689 = vld [vmem:[%s13 + $0x108] sm:$0xff]
          %v2690 = vld [vmem:[%s13 + $0x110] sm:$0xff]
          %v2691 = vld [vmem:[%s13 + $0x118] sm:$0xff]
          %v2692 = vld [vmem:[%s13 + $0x120] sm:$0xff]
          %v2693 = vld [vmem:[%s13 + $0x128] sm:$0xff]
          %v2694 = vld [vmem:[%s13 + $0x130] sm:$0xff]
          %v2695 = vld [vmem:[%s13 + $0x138] sm:$0xff]
          %v2696 = vld [vmem:[%s13 + $0x140] sm:$0xff]
          %v2697 = vld [vmem:[%s13 + $0x148] sm:$0xff]
          %v2698 = vld [vmem:[%s13 + $0x150] sm:$0xff]
          %v2699 = vld [vmem:[%s13 + $0x158] sm:$0xff]
          %v2700 = vld [vmem:[%s13 + $0x160] sm:$0xff]
          %v2701 = vld [vmem:[%s13 + $0x168] sm:$0xff]
          %v2702 = vld [vmem:[%s13 + $0x170] sm:$0xff]
          %v2703 = vld [vmem:[%s13 + $0x178] sm:$0xff]
          %v2752 = vunpack.c.l.b16 %v2656
          %v2753 = vunpack.c.h.b16 %v2656
          %v2754 = vunpack.c.l.b16 %v2657
          %v2755 = vunpack.c.h.b16 %v2657
          %v2756 = vunpack.c.l.b16 %v2658
          %v2757 = vunpack.c.h.b16 %v2658
          %v2758 = vunpack.c.l.b16 %v2659
          %v2759 = vunpack.c.h.b16 %v2659
          %v2760 = vunpack.c.l.b16 %v2660
          %v2761 = vunpack.c.h.b16 %v2660
          %v2762 = vunpack.c.l.b16 %v2661
          %v2763 = vunpack.c.h.b16 %v2661
          %v2764 = vunpack.c.l.b16 %v2662
          %v2765 = vunpack.c.h.b16 %v2662
          %v2766 = vunpack.c.l.b16 %v2663
          %v2767 = vunpack.c.h.b16 %v2663
          %v2768 = vunpack.c.l.b16 %v2664
          %v2769 = vunpack.c.h.b16 %v2664
          %v2770 = vunpack.c.l.b16 %v2665
          %v2771 = vunpack.c.h.b16 %v2665
          %v2772 = vunpack.c.l.b16 %v2666
          %v2773 = vunpack.c.h.b16 %v2666
          %v2774 = vunpack.c.l.b16 %v2667
          %v2775 = vunpack.c.h.b16 %v2667
          %v2776 = vunpack.c.l.b16 %v2668
          %v2777 = vunpack.c.h.b16 %v2668
          %v2778 = vunpack.c.l.b16 %v2669
          %v2779 = vunpack.c.h.b16 %v2669
          %v2780 = vunpack.c.l.b16 %v2670
          %v2781 = vunpack.c.h.b16 %v2670
          %v2782 = vunpack.c.l.b16 %v2671
          %v2783 = vunpack.c.h.b16 %v2671
          %v2784 = vunpack.c.l.b16 %v2672
          %v2785 = vunpack.c.h.b16 %v2672
          %v2786 = vunpack.c.l.b16 %v2673
          %v2787 = vunpack.c.h.b16 %v2673
          %v2788 = vunpack.c.l.b16 %v2674
          %v2789 = vunpack.c.h.b16 %v2674
          %v2790 = vunpack.c.l.b16 %v2675
          %v2791 = vunpack.c.h.b16 %v2675
          %v2792 = vunpack.c.l.b16 %v2676
          %v2793 = vunpack.c.h.b16 %v2676
          %v2794 = vunpack.c.l.b16 %v2677
          %v2795 = vunpack.c.h.b16 %v2677
          %v2796 = vunpack.c.l.b16 %v2678
          %v2797 = vunpack.c.h.b16 %v2678
          %v2798 = vunpack.c.l.b16 %v2679
          %v2799 = vunpack.c.h.b16 %v2679
          %v2800 = vunpack.c.l.b16 %v2680
          %v2801 = vunpack.c.h.b16 %v2680
          %v2802 = vunpack.c.l.b16 %v2681
          %v2803 = vunpack.c.h.b16 %v2681
          %v2804 = vunpack.c.l.b16 %v2682
          %v2805 = vunpack.c.h.b16 %v2682
          %v2806 = vunpack.c.l.b16 %v2683
          %v2807 = vunpack.c.h.b16 %v2683
          %v2808 = vunpack.c.l.b16 %v2684
          %v2809 = vunpack.c.h.b16 %v2684
          %v2810 = vunpack.c.l.b16 %v2685
          %v2811 = vunpack.c.h.b16 %v2685
          %v2812 = vunpack.c.l.b16 %v2686
          %v2813 = vunpack.c.h.b16 %v2686
          %v2814 = vunpack.c.l.b16 %v2687
          %v2815 = vunpack.c.h.b16 %v2687
          %v2816 = vunpack.c.l.b16 %v2688
          %v2817 = vunpack.c.h.b16 %v2688
          %v2818 = vunpack.c.l.b16 %v2689
          %v2819 = vunpack.c.h.b16 %v2689
          %v2820 = vunpack.c.l.b16 %v2690
          %v2821 = vunpack.c.h.b16 %v2690
          %v2822 = vunpack.c.l.b16 %v2691
          %v2823 = vunpack.c.h.b16 %v2691
          %v2824 = vunpack.c.l.b16 %v2692
          %v2825 = vunpack.c.h.b16 %v2692
          %v2826 = vunpack.c.l.b16 %v2693
          %v2827 = vunpack.c.h.b16 %v2693
          %v2828 = vunpack.c.l.b16 %v2694
          %v2829 = vunpack.c.h.b16 %v2694
          %v2830 = vunpack.c.l.b16 %v2695
          %v2831 = vunpack.c.h.b16 %v2695
          %v2832 = vunpack.c.l.b16 %v2696
          %v2833 = vunpack.c.h.b16 %v2696
          %v2834 = vunpack.c.l.b16 %v2697
          %v2835 = vunpack.c.h.b16 %v2697
          %v2836 = vunpack.c.l.b16 %v2698
          %v2837 = vunpack.c.h.b16 %v2698
          %v2838 = vunpack.c.l.b16 %v2699
          %v2839 = vunpack.c.h.b16 %v2699
          %v2840 = vunpack.c.l.b16 %v2700
          %v2841 = vunpack.c.h.b16 %v2700
          %v2842 = vunpack.c.l.b16 %v2701
          %v2843 = vunpack.c.h.b16 %v2701
          %v2844 = vunpack.c.l.b16 %v2702
          %v2845 = vunpack.c.h.b16 %v2702
          %v2846 = vunpack.c.l.b16 %v2703
          %v2847 = vunpack.c.h.b16 %v2703
          %v2848 = vpack.c.b16 %v2776, %v2752
          %v2849 = vpack.c.b16 %v2777, %v2753
          %v2850 = vpack.c.b16 %v2778, %v2754
          %v2851 = vpack.c.b16 %v2779, %v2755
          %v2852 = vpack.c.b16 %v2780, %v2756
          %v2853 = vpack.c.b16 %v2781, %v2757
          %v2854 = vpack.c.b16 %v2782, %v2758
          %v2855 = vpack.c.b16 %v2783, %v2759
          %v2856 = vpack.c.b16 %v2784, %v2760
          %v2857 = vpack.c.b16 %v2785, %v2761
          %v2858 = vpack.c.b16 %v2786, %v2762
          %v2859 = vpack.c.b16 %v2787, %v2763
          %v2860 = vpack.c.b16 %v2788, %v2764
          %v2861 = vpack.c.b16 %v2789, %v2765
          %v2862 = vpack.c.b16 %v2790, %v2766
          %v2863 = vpack.c.b16 %v2791, %v2767
          %v2864 = vpack.c.b16 %v2792, %v2768
          %v2865 = vpack.c.b16 %v2793, %v2769
          %v2866 = vpack.c.b16 %v2794, %v2770
          %v2867 = vpack.c.b16 %v2795, %v2771
          %v2868 = vpack.c.b16 %v2796, %v2772
          %v2869 = vpack.c.b16 %v2797, %v2773
          %v2870 = vpack.c.b16 %v2798, %v2774
          %v2871 = vpack.c.b16 %v2799, %v2775
          %v2872 = vpack.c.b16 %v2824, %v2800
          %v2873 = vpack.c.b16 %v2825, %v2801
          %v2874 = vpack.c.b16 %v2826, %v2802
          %v2875 = vpack.c.b16 %v2827, %v2803
          %v2876 = vpack.c.b16 %v2828, %v2804
          %v2877 = vpack.c.b16 %v2829, %v2805
          %v2878 = vpack.c.b16 %v2830, %v2806
          %v2879 = vpack.c.b16 %v2831, %v2807
          %v2880 = vpack.c.b16 %v2832, %v2808
          %v2881 = vpack.c.b16 %v2833, %v2809
          %v2882 = vpack.c.b16 %v2834, %v2810
          %v2883 = vpack.c.b16 %v2835, %v2811
          %v2884 = vpack.c.b16 %v2836, %v2812
          %v2885 = vpack.c.b16 %v2837, %v2813
          %v2886 = vpack.c.b16 %v2838, %v2814
          %v2887 = vpack.c.b16 %v2839, %v2815
          %v2888 = vpack.c.b16 %v2840, %v2816
          %v2889 = vpack.c.b16 %v2841, %v2817
          %v2890 = vpack.c.b16 %v2842, %v2818
          %v2891 = vpack.c.b16 %v2843, %v2819
          %v2892 = vpack.c.b16 %v2844, %v2820
          %v2893 = vpack.c.b16 %v2845, %v2821
          %v2894 = vpack.c.b16 %v2846, %v2822
          %v2895 = vpack.c.b16 %v2847, %v2823
          %v2945 = vsel %vm964, %v2655, 0
          %2947 = vmatprep.subr.bf16.mxu0 %v2849
          %2948 = vmatpush1.bf16.msra.mxu0 %v2848
          %2949 = vmatprep.subr.bf16.mxu0 %v2873
          %2950 = vmatpush1.bf16.msra.mxu0 %v2872
          %2951 = vmatprep.subr.bf16.mxu0 0
          %2952 = vmatpush1.bf16.msra.mxu0 0
          %2953 = vmatprep.subr.bf16.mxu0 0
          %2954 = vmatpush1.bf16.msra.mxu0 0
          %2955 = vmatprep.subr.bf16.mxu0 0
          %2956 = vmatpush1.bf16.msra.mxu0 0
          %2957 = vmatprep.subr.bf16.mxu0 0
          %2958 = vmatpush1.bf16.msra.mxu0 0
          %2959 = vmatprep.subr.bf16.mxu0 0
          %2960 = vmatpush1.bf16.msra.mxu0 0
          %2961 = vmatprep.subr.bf16.mxu0 0
          %2962 = vmatpush1.bf16.msra.mxu0 0
          %2963 = vmatprep.subr.bf16.mxu0 0
          %2964 = vmatpush1.bf16.msra.mxu0 0
          %2965 = vmatprep.subr.bf16.mxu0 0
          %2966 = vmatpush1.bf16.msra.mxu0 0
          %2967 = vmatprep.subr.bf16.mxu0 0
          %2968 = vmatpush1.bf16.msra.mxu0 0
          %2969 = vmatprep.subr.bf16.mxu0 0
          %2970 = vmatpush1.bf16.msra.mxu0 0
          %2971 = vmatprep.subr.bf16.mxu0 0
          %2972 = vmatpush1.bf16.msra.mxu0 0
          %2973 = vmatprep.subr.bf16.mxu0 0
          %2974 = vmatpush1.bf16.msra.mxu0 0
          %2975 = vmatprep.subr.bf16.mxu0 0
          %2976 = vmatpush1.bf16.msra.mxu0 0
          %2977 = vmatprep.subr.bf16.mxu0 0
          %2978 = vmatpush1.bf16.msra.mxu0 0
          %2979 = vmatprep.mubr.bf16.mxu0 0
          %2980 = vmatmul.mubr.bf16.gmra.mrb[0].mxu0 %v2945
          %v2981 = vpop.f32.mrb[0].mxu0
          %v2982 = vadd.f32 0.0, %v2981
          %v2983 = vpop.f32.mrb[0].mxu0
          %v2984 = vadd.f32 0.0, %v2983
          %v2985 = vpop.f32.mrb[0].mxu0
          %v2986 = vpop.f32.mrb[0].mxu0
          %2987 = vdwg.mxu0
          %2988 = vmatprep.subr.bf16.mxu0 %v2851
          %2989 = vmatpush1.bf16.msra.mxu0 %v2850
          %2990 = vmatprep.subr.bf16.mxu0 %v2875
          %2991 = vmatpush1.bf16.msra.mxu0 %v2874
          %2992 = vmatprep.subr.bf16.mxu0 0
          %2993 = vmatpush1.bf16.msra.mxu0 0
          %2994 = vmatprep.subr.bf16.mxu0 0
          %2995 = vmatpush1.bf16.msra.mxu0 0
          %2996 = vmatprep.subr.bf16.mxu0 0
          %2997 = vmatpush1.bf16.msra.mxu0 0
          %2998 = vmatprep.subr.bf16.mxu0 0
          %2999 = vmatpush1.bf16.msra.mxu0 0
          %3000 = vmatprep.subr.bf16.mxu0 0
          %3001 = vmatpush1.bf16.msra.mxu0 0
          %3002 = vmatprep.subr.bf16.mxu0 0
          %3003 = vmatpush1.bf16.msra.mxu0 0
          %3004 = vmatprep.subr.bf16.mxu0 0
          %3005 = vmatpush1.bf16.msra.mxu0 0
          %3006 = vmatprep.subr.bf16.mxu0 0
          %3007 = vmatpush1.bf16.msra.mxu0 0
          %3008 = vmatprep.subr.bf16.mxu0 0
          %3009 = vmatpush1.bf16.msra.mxu0 0
          %3010 = vmatprep.subr.bf16.mxu0 0
          %3011 = vmatpush1.bf16.msra.mxu0 0
          %3012 = vmatprep.subr.bf16.mxu0 0
          %3013 = vmatpush1.bf16.msra.mxu0 0
          %3014 = vmatprep.subr.bf16.mxu0 0
          %3015 = vmatpush1.bf16.msra.mxu0 0
          %3016 = vmatprep.subr.bf16.mxu0 0
          %3017 = vmatpush1.bf16.msra.mxu0 0
          %3018 = vmatprep.subr.bf16.mxu0 0
          %3019 = vmatpush1.bf16.msra.mxu0 0
          %3020 = vmatprep.mubr.bf16.mxu0 0
          %3021 = vmatmul.mubr.bf16.gmra.mrb[0].mxu0 %v2945
          %v3022 = vpop.f32.mrb[0].mxu0
          %v3023 = vadd.f32 0.0, %v3022
          %v3024 = vpop.f32.mrb[0].mxu0
          %v3025 = vadd.f32 0.0, %v3024
          %v3026 = vpop.f32.mrb[0].mxu0
          %v3027 = vpop.f32.mrb[0].mxu0
          %3028 = vdwg.mxu0
          %3029 = vmatprep.subr.bf16.mxu0 %v2853
          %3030 = vmatpush1.bf16.msra.mxu0 %v2852
          %3031 = vmatprep.subr.bf16.mxu0 %v2877
          %3032 = vmatpush1.bf16.msra.mxu0 %v2876
          %3033 = vmatprep.subr.bf16.mxu0 0
          %3034 = vmatpush1.bf16.msra.mxu0 0
          %3035 = vmatprep.subr.bf16.mxu0 0
          %3036 = vmatpush1.bf16.msra.mxu0 0
          %3037 = vmatprep.subr.bf16.mxu0 0
          %3038 = vmatpush1.bf16.msra.mxu0 0
          %3039 = vmatprep.subr.bf16.mxu0 0
          %3040 = vmatpush1.bf16.msra.mxu0 0
          %3041 = vmatprep.subr.bf16.mxu0 0
          %3042 = vmatpush1.bf16.msra.mxu0 0
          %3043 = vmatprep.subr.bf16.mxu0 0
          %3044 = vmatpush1.bf16.msra.mxu0 0
          %3045 = vmatprep.subr.bf16.mxu0 0
          %3046 = vmatpush1.bf16.msra.mxu0 0
          %3047 = vmatprep.subr.bf16.mxu0 0
          %3048 = vmatpush1.bf16.msra.mxu0 0
          %3049 = vmatprep.subr.bf16.mxu0 0
          %3050 = vmatpush1.bf16.msra.mxu0 0
          %3051 = vmatprep.subr.bf16.mxu0 0
          %3052 = vmatpush1.bf16.msra.mxu0 0
          %3053 = vmatprep.subr.bf16.mxu0 0
          %3054 = vmatpush1.bf16.msra.mxu0 0
          %3055 = vmatprep.subr.bf16.mxu0 0
          %3056 = vmatpush1.bf16.msra.mxu0 0
          %3057 = vmatprep.subr.bf16.mxu0 0
          %3058 = vmatpush1.bf16.msra.mxu0 0
          %3059 = vmatprep.subr.bf16.mxu0 0
          %3060 = vmatpush1.bf16.msra.mxu0 0
          %3061 = vmatprep.mubr.bf16.mxu0 0
          %3062 = vmatmul.mubr.bf16.gmra.mrb[0].mxu0 %v2945
          %v3063 = vpop.f32.mrb[0].mxu0
          %v3064 = vadd.f32 0.0, %v3063
          %v3065 = vpop.f32.mrb[0].mxu0
          %v3066 = vadd.f32 0.0, %v3065
          %v3067 = vpop.f32.mrb[0].mxu0
          %v3068 = vpop.f32.mrb[0].mxu0
          %3069 = vdwg.mxu0
          %3070 = vmatprep.subr.bf16.mxu0 %v2855
          %3071 = vmatpush1.bf16.msra.mxu0 %v2854
          %3072 = vmatprep.subr.bf16.mxu0 %v2879
          %3073 = vmatpush1.bf16.msra.mxu0 %v2878
          %3074 = vmatprep.subr.bf16.mxu0 0
          %3075 = vmatpush1.bf16.msra.mxu0 0
          %3076 = vmatprep.subr.bf16.mxu0 0
          %3077 = vmatpush1.bf16.msra.mxu0 0
          %3078 = vmatprep.subr.bf16.mxu0 0
          %3079 = vmatpush1.bf16.msra.mxu0 0
          %3080 = vmatprep.subr.bf16.mxu0 0
          %3081 = vmatpush1.bf16.msra.mxu0 0
          %3082 = vmatprep.subr.bf16.mxu0 0
          %3083 = vmatpush1.bf16.msra.mxu0 0
          %3084 = vmatprep.subr.bf16.mxu0 0
          %3085 = vmatpush1.bf16.msra.mxu0 0
          %3086 = vmatprep.subr.bf16.mxu0 0
          %3087 = vmatpush1.bf16.msra.mxu0 0
          %3088 = vmatprep.subr.bf16.mxu0 0
          %3089 = vmatpush1.bf16.msra.mxu0 0
          %3090 = vmatprep.subr.bf16.mxu0 0
          %3091 = vmatpush1.bf16.msra.mxu0 0
          %3092 = vmatprep.subr.bf16.mxu0 0
          %3093 = vmatpush1.bf16.msra.mxu0 0
          %3094 = vmatprep.subr.bf16.mxu0 0
          %3095 = vmatpush1.bf16.msra.mxu0 0
          %3096 = vmatprep.subr.bf16.mxu0 0
          %3097 = vmatpush1.bf16.msra.mxu0 0
          %3098 = vmatprep.subr.bf16.mxu0 0
          %3099 = vmatpush1.bf16.msra.mxu0 0
          %3100 = vmatprep.subr.bf16.mxu0 0
          %3101 = vmatpush1.bf16.msra.mxu0 0
          %3102 = vmatprep.mubr.bf16.mxu0 0
          %3103 = vmatmul.mubr.bf16.gmra.mrb[0].mxu0 %v2945
          %v3104 = vpop.f32.mrb[0].mxu0
          %v3105 = vadd.f32 0.0, %v3104
          %v3106 = vpop.f32.mrb[0].mxu0
          %v3107 = vadd.f32 0.0, %v3106
          %v3108 = vpop.f32.mrb[0].mxu0
          %v3109 = vpop.f32.mrb[0].mxu0
          %3110 = vdwg.mxu0
          %3111 = vmatprep.subr.bf16.mxu0 %v2857
          %3112 = vmatpush1.bf16.msra.mxu0 %v2856
          %3113 = vmatprep.subr.bf16.mxu0 %v2881
          %3114 = vmatpush1.bf16.msra.mxu0 %v2880
          %3115 = vmatprep.subr.bf16.mxu0 0
          %3116 = vmatpush1.bf16.msra.mxu0 0
          %3117 = vmatprep.subr.bf16.mxu0 0
          %3118 = vmatpush1.bf16.msra.mxu0 0
          %3119 = vmatprep.subr.bf16.mxu0 0
          %3120 = vmatpush1.bf16.msra.mxu0 0
          %3121 = vmatprep.subr.bf16.mxu0 0
          %3122 = vmatpush1.bf16.msra.mxu0 0
          %3123 = vmatprep.subr.bf16.mxu0 0
          %3124 = vmatpush1.bf16.msra.mxu0 0
          %3125 = vmatprep.subr.bf16.mxu0 0
          %3126 = vmatpush1.bf16.msra.mxu0 0
          %3127 = vmatprep.subr.bf16.mxu0 0
          %3128 = vmatpush1.bf16.msra.mxu0 0
          %3129 = vmatprep.subr.bf16.mxu0 0
          %3130 = vmatpush1.bf16.msra.mxu0 0
          %3131 = vmatprep.subr.bf16.mxu0 0
          %3132 = vmatpush1.bf16.msra.mxu0 0
          %3133 = vmatprep.subr.bf16.mxu0 0
          %3134 = vmatpush1.bf16.msra.mxu0 0
          %3135 = vmatprep.subr.bf16.mxu0 0
          %3136 = vmatpush1.bf16.msra.mxu0 0
          %3137 = vmatprep.subr.bf16.mxu0 0
          %3138 = vmatpush1.bf16.msra.mxu0 0
          %3139 = vmatprep.subr.bf16.mxu0 0
          %3140 = vmatpush1.bf16.msra.mxu0 0
          %3141 = vmatprep.subr.bf16.mxu0 0
          %3142 = vmatpush1.bf16.msra.mxu0 0
          %3143 = vmatprep.mubr.bf16.mxu0 0
          %3144 = vmatmul.mubr.bf16.gmra.mrb[0].mxu0 %v2945
          %v3145 = vpop.f32.mrb[0].mxu0
          %v3146 = vadd.f32 0.0, %v3145
          %v3147 = vpop.f32.mrb[0].mxu0
          %v3148 = vadd.f32 0.0, %v3147
          %v3149 = vpop.f32.mrb[0].mxu0
          %v3150 = vpop.f32.mrb[0].mxu0
          %3151 = vdwg.mxu0
          %3152 = vmatprep.subr.bf16.mxu0 %v2859
          %3153 = vmatpush1.bf16.msra.mxu0 %v2858
          %3154 = vmatprep.subr.bf16.mxu0 %v2883
          %3155 = vmatpush1.bf16.msra.mxu0 %v2882
          %3156 = vmatprep.subr.bf16.mxu0 0
          %3157 = vmatpush1.bf16.msra.mxu0 0
          %3158 = vmatprep.subr.bf16.mxu0 0
          %3159 = vmatpush1.bf16.msra.mxu0 0
          %3160 = vmatprep.subr.bf16.mxu0 0
          %3161 = vmatpush1.bf16.msra.mxu0 0
          %3162 = vmatprep.subr.bf16.mxu0 0
          %3163 = vmatpush1.bf16.msra.mxu0 0
          %3164 = vmatprep.subr.bf16.mxu0 0
          %3165 = vmatpush1.bf16.msra.mxu0 0
          %3166 = vmatprep.subr.bf16.mxu0 0
          %3167 = vmatpush1.bf16.msra.mxu0 0
          %3168 = vmatprep.subr.bf16.mxu0 0
          %3169 = vmatpush1.bf16.msra.mxu0 0
          %3170 = vmatprep.subr.bf16.mxu0 0
          %3171 = vmatpush1.bf16.msra.mxu0 0
          %3172 = vmatprep.subr.bf16.mxu0 0
          %3173 = vmatpush1.bf16.msra.mxu0 0
          %3174 = vmatprep.subr.bf16.mxu0 0
          %3175 = vmatpush1.bf16.msra.mxu0 0
          %3176 = vmatprep.subr.bf16.mxu0 0
          %3177 = vmatpush1.bf16.msra.mxu0 0
          %3178 = vmatprep.subr.bf16.mxu0 0
          %3179 = vmatpush1.bf16.msra.mxu0 0
          %3180 = vmatprep.subr.bf16.mxu0 0
          %3181 = vmatpush1.bf16.msra.mxu0 0
          %3182 = vmatprep.subr.bf16.mxu0 0
          %3183 = vmatpush1.bf16.msra.mxu0 0
          %3184 = vmatprep.mubr.bf16.mxu0 0
          %3185 = vmatmul.mubr.bf16.gmra.mrb[0].mxu0 %v2945
          %v3186 = vpop.f32.mrb[0].mxu0
          %v3187 = vadd.f32 0.0, %v3186
          %v3188 = vpop.f32.mrb[0].mxu0
          %v3189 = vadd.f32 0.0, %v3188
          %v3190 = vpop.f32.mrb[0].mxu0
          %v3191 = vpop.f32.mrb[0].mxu0
          %3192 = vdwg.mxu0
          %3193 = vmatprep.subr.bf16.mxu0 %v2861
          %3194 = vmatpush1.bf16.msra.mxu0 %v2860
          %3195 = vmatprep.subr.bf16.mxu0 %v2885
          %3196 = vmatpush1.bf16.msra.mxu0 %v2884
          %3197 = vmatprep.subr.bf16.mxu0 0
          %3198 = vmatpush1.bf16.msra.mxu0 0
          %3199 = vmatprep.subr.bf16.mxu0 0
          %3200 = vmatpush1.bf16.msra.mxu0 0
          %3201 = vmatprep.subr.bf16.mxu0 0
          %3202 = vmatpush1.bf16.msra.mxu0 0
          %3203 = vmatprep.subr.bf16.mxu0 0
          %3204 = vmatpush1.bf16.msra.mxu0 0
          %3205 = vmatprep.subr.bf16.mxu0 0
          %3206 = vmatpush1.bf16.msra.mxu0 0
          %3207 = vmatprep.subr.bf16.mxu0 0
          %3208 = vmatpush1.bf16.msra.mxu0 0
          %3209 = vmatprep.subr.bf16.mxu0 0
          %3210 = vmatpush1.bf16.msra.mxu0 0
          %3211 = vmatprep.subr.bf16.mxu0 0
          %3212 = vmatpush1.bf16.msra.mxu0 0
          %3213 = vmatprep.subr.bf16.mxu0 0
          %3214 = vmatpush1.bf16.msra.mxu0 0
          %3215 = vmatprep.subr.bf16.mxu0 0
          %3216 = vmatpush1.bf16.msra.mxu0 0
          %3217 = vmatprep.subr.bf16.mxu0 0
          %3218 = vmatpush1.bf16.msra.mxu0 0
          %3219 = vmatprep.subr.bf16.mxu0 0
          %3220 = vmatpush1.bf16.msra.mxu0 0
          %3221 = vmatprep.subr.bf16.mxu0 0
          %3222 = vmatpush1.bf16.msra.mxu0 0
          %3223 = vmatprep.subr.bf16.mxu0 0
          %3224 = vmatpush1.bf16.msra.mxu0 0
          %3225 = vmatprep.mubr.bf16.mxu0 0
          %3226 = vmatmul.mubr.bf16.gmra.mrb[0].mxu0 %v2945
          %v3227 = vpop.f32.mrb[0].mxu0
          %v3228 = vadd.f32 0.0, %v3227
          %v3229 = vpop.f32.mrb[0].mxu0
          %v3230 = vadd.f32 0.0, %v3229
          %v3231 = vpop.f32.mrb[0].mxu0
          %v3232 = vpop.f32.mrb[0].mxu0
          %3233 = vdwg.mxu0
          %3234 = vmatprep.subr.bf16.mxu0 %v2863
          %3235 = vmatpush1.bf16.msra.mxu0 %v2862
          %3236 = vmatprep.subr.bf16.mxu0 %v2887
          %3237 = vmatpush1.bf16.msra.mxu0 %v2886
          %3238 = vmatprep.subr.bf16.mxu0 0
          %3239 = vmatpush1.bf16.msra.mxu0 0
          %3240 = vmatprep.subr.bf16.mxu0 0
          %3241 = vmatpush1.bf16.msra.mxu0 0
          %3242 = vmatprep.subr.bf16.mxu0 0
          %3243 = vmatpush1.bf16.msra.mxu0 0
          %3244 = vmatprep.subr.bf16.mxu0 0
          %3245 = vmatpush1.bf16.msra.mxu0 0
          %3246 = vmatprep.subr.bf16.mxu0 0
          %3247 = vmatpush1.bf16.msra.mxu0 0
          %3248 = vmatprep.subr.bf16.mxu0 0
          %3249 = vmatpush1.bf16.msra.mxu0 0
          %3250 = vmatprep.subr.bf16.mxu0 0
          %3251 = vmatpush1.bf16.msra.mxu0 0
          %3252 = vmatprep.subr.bf16.mxu0 0
          %3253 = vmatpush1.bf16.msra.mxu0 0
          %3254 = vmatprep.subr.bf16.mxu0 0
          %3255 = vmatpush1.bf16.msra.mxu0 0
          %3256 = vmatprep.subr.bf16.mxu0 0
          %3257 = vmatpush1.bf16.msra.mxu0 0
          %3258 = vmatprep.subr.bf16.mxu0 0
          %3259 = vmatpush1.bf16.msra.mxu0 0
          %3260 = vmatprep.subr.bf16.mxu0 0
          %3261 = vmatpush1.bf16.msra.mxu0 0
          %3262 = vmatprep.subr.bf16.mxu0 0
          %3263 = vmatpush1.bf16.msra.mxu0 0
          %3264 = vmatprep.subr.bf16.mxu0 0
          %3265 = vmatpush1.bf16.msra.mxu0 0
          %3266 = vmatprep.mubr.bf16.mxu0 0
          %3267 = vmatmul.mubr.bf16.gmra.mrb[0].mxu0 %v2945
          %v3268 = vpop.f32.mrb[0].mxu0
          %v3269 = vadd.f32 0.0, %v3268
          %v3270 = vpop.f32.mrb[0].mxu0
          %v3271 = vadd.f32 0.0, %v3270
          %v3272 = vpop.f32.mrb[0].mxu0
          %v3273 = vpop.f32.mrb[0].mxu0
          %3274 = vdwg.mxu0
          %3275 = vmatprep.subr.bf16.mxu0 %v2865
          %3276 = vmatpush1.bf16.msra.mxu0 %v2864
          %3277 = vmatprep.subr.bf16.mxu0 %v2889
          %3278 = vmatpush1.bf16.msra.mxu0 %v2888
          %3279 = vmatprep.subr.bf16.mxu0 0
          %3280 = vmatpush1.bf16.msra.mxu0 0
          %3281 = vmatprep.subr.bf16.mxu0 0
          %3282 = vmatpush1.bf16.msra.mxu0 0
          %3283 = vmatprep.subr.bf16.mxu0 0
          %3284 = vmatpush1.bf16.msra.mxu0 0
          %3285 = vmatprep.subr.bf16.mxu0 0
          %3286 = vmatpush1.bf16.msra.mxu0 0
          %3287 = vmatprep.subr.bf16.mxu0 0
          %3288 = vmatpush1.bf16.msra.mxu0 0
          %3289 = vmatprep.subr.bf16.mxu0 0
          %3290 = vmatpush1.bf16.msra.mxu0 0
          %3291 = vmatprep.subr.bf16.mxu0 0
          %3292 = vmatpush1.bf16.msra.mxu0 0
          %3293 = vmatprep.subr.bf16.mxu0 0
          %3294 = vmatpush1.bf16.msra.mxu0 0
          %3295 = vmatprep.subr.bf16.mxu0 0
          %3296 = vmatpush1.bf16.msra.mxu0 0
          %3297 = vmatprep.subr.bf16.mxu0 0
          %3298 = vmatpush1.bf16.msra.mxu0 0
          %3299 = vmatprep.subr.bf16.mxu0 0
          %3300 = vmatpush1.bf16.msra.mxu0 0
          %3301 = vmatprep.subr.bf16.mxu0 0
          %3302 = vmatpush1.bf16.msra.mxu0 0
          %3303 = vmatprep.subr.bf16.mxu0 0
          %3304 = vmatpush1.bf16.msra.mxu0 0
          %3305 = vmatprep.subr.bf16.mxu0 0
          %3306 = vmatpush1.bf16.msra.mxu0 0
          %3307 = vmatprep.mubr.bf16.mxu0 0
          %3308 = vmatmul.mubr.bf16.gmra.mrb[0].mxu0 %v2945
          %v3309 = vpop.f32.mrb[0].mxu0
          %v3310 = vadd.f32 0.0, %v3309
          %v3311 = vpop.f32.mrb[0].mxu0
          %v3312 = vadd.f32 0.0, %v3311
          %v3313 = vpop.f32.mrb[0].mxu0
          %v3314 = vpop.f32.mrb[0].mxu0
          %3315 = vdwg.mxu0
          %3316 = vmatprep.subr.bf16.mxu0 %v2867
          %3317 = vmatpush1.bf16.msra.mxu0 %v2866
          %3318 = vmatprep.subr.bf16.mxu0 %v2891
          %3319 = vmatpush1.bf16.msra.mxu0 %v2890
          %3320 = vmatprep.subr.bf16.mxu0 0
          %3321 = vmatpush1.bf16.msra.mxu0 0
          %3322 = vmatprep.subr.bf16.mxu0 0
          %3323 = vmatpush1.bf16.msra.mxu0 0
          %3324 = vmatprep.subr.bf16.mxu0 0
          %3325 = vmatpush1.bf16.msra.mxu0 0
          %3326 = vmatprep.subr.bf16.mxu0 0
          %3327 = vmatpush1.bf16.msra.mxu0 0
          %3328 = vmatprep.subr.bf16.mxu0 0
          %3329 = vmatpush1.bf16.msra.mxu0 0
          %3330 = vmatprep.subr.bf16.mxu0 0
          %3331 = vmatpush1.bf16.msra.mxu0 0
          %3332 = vmatprep.subr.bf16.mxu0 0
          %3333 = vmatpush1.bf16.msra.mxu0 0
          %3334 = vmatprep.subr.bf16.mxu0 0
          %3335 = vmatpush1.bf16.msra.mxu0 0
          %3336 = vmatprep.subr.bf16.mxu0 0
          %3337 = vmatpush1.bf16.msra.mxu0 0
          %3338 = vmatprep.subr.bf16.mxu0 0
          %3339 = vmatpush1.bf16.msra.mxu0 0
          %3340 = vmatprep.subr.bf16.mxu0 0
          %3341 = vmatpush1.bf16.msra.mxu0 0
          %3342 = vmatprep.subr.bf16.mxu0 0
          %3343 = vmatpush1.bf16.msra.mxu0 0
          %3344 = vmatprep.subr.bf16.mxu0 0
          %3345 = vmatpush1.bf16.msra.mxu0 0
          %3346 = vmatprep.subr.bf16.mxu0 0
          %3347 = vmatpush1.bf16.msra.mxu0 0
          %3348 = vmatprep.mubr.bf16.mxu0 0
          %3349 = vmatmul.mubr.bf16.gmra.mrb[0].mxu0 %v2945
          %v3350 = vpop.f32.mrb[0].mxu0
          %v3351 = vadd.f32 0.0, %v3350
          %v3352 = vpop.f32.mrb[0].mxu0
          %v3353 = vadd.f32 0.0, %v3352
          %v3354 = vpop.f32.mrb[0].mxu0
          %v3355 = vpop.f32.mrb[0].mxu0
          %3356 = vdwg.mxu0
          %3357 = vmatprep.subr.bf16.mxu0 %v2869
          %3358 = vmatpush1.bf16.msra.mxu0 %v2868
          %3359 = vmatprep.subr.bf16.mxu0 %v2893
          %3360 = vmatpush1.bf16.msra.mxu0 %v2892
          %3361 = vmatprep.subr.bf16.mxu0 0
          %3362 = vmatpush1.bf16.msra.mxu0 0
          %3363 = vmatprep.subr.bf16.mxu0 0
          %3364 = vmatpush1.bf16.msra.mxu0 0
          %3365 = vmatprep.subr.bf16.mxu0 0
          %3366 = vmatpush1.bf16.msra.mxu0 0
          %3367 = vmatprep.subr.bf16.mxu0 0
          %3368 = vmatpush1.bf16.msra.mxu0 0
          %3369 = vmatprep.subr.bf16.mxu0 0
          %3370 = vmatpush1.bf16.msra.mxu0 0
          %3371 = vmatprep.subr.bf16.mxu0 0
          %3372 = vmatpush1.bf16.msra.mxu0 0
          %3373 = vmatprep.subr.bf16.mxu0 0
          %3374 = vmatpush1.bf16.msra.mxu0 0
          %3375 = vmatprep.subr.bf16.mxu0 0
          %3376 = vmatpush1.bf16.msra.mxu0 0
          %3377 = vmatprep.subr.bf16.mxu0 0
          %3378 = vmatpush1.bf16.msra.mxu0 0
          %3379 = vmatprep.subr.bf16.mxu0 0
          %3380 = vmatpush1.bf16.msra.mxu0 0
          %3381 = vmatprep.subr.bf16.mxu0 0
          %3382 = vmatpush1.bf16.msra.mxu0 0
          %3383 = vmatprep.subr.bf16.mxu0 0
          %3384 = vmatpush1.bf16.msra.mxu0 0
          %3385 = vmatprep.subr.bf16.mxu0 0
          %3386 = vmatpush1.bf16.msra.mxu0 0
          %3387 = vmatprep.subr.bf16.mxu0 0
          %3388 = vmatpush1.bf16.msra.mxu0 0
          %3389 = vmatprep.mubr.bf16.mxu0 0
          %3390 = vmatmul.mubr.bf16.gmra.mrb[0].mxu0 %v2945
          %v3391 = vpop.f32.mrb[0].mxu0
          %v3392 = vadd.f32 0.0, %v3391
          %v3393 = vpop.f32.mrb[0].mxu0
          %v3394 = vadd.f32 0.0, %v3393
          %v3395 = vpop.f32.mrb[0].mxu0
          %v3396 = vpop.f32.mrb[0].mxu0
          %3397 = vdwg.mxu0
          %3398 = vmatprep.subr.bf16.mxu0 %v2871
          %3399 = vmatpush1.bf16.msra.mxu0 %v2870
          %3400 = vmatprep.subr.bf16.mxu0 %v2895
          %3401 = vmatpush1.bf16.msra.mxu0 %v2894
          %3402 = vmatprep.subr.bf16.mxu0 0
          %3403 = vmatpush1.bf16.msra.mxu0 0
          %3404 = vmatprep.subr.bf16.mxu0 0
          %3405 = vmatpush1.bf16.msra.mxu0 0
          %3406 = vmatprep.subr.bf16.mxu0 0
          %3407 = vmatpush1.bf16.msra.mxu0 0
          %3408 = vmatprep.subr.bf16.mxu0 0
          %3409 = vmatpush1.bf16.msra.mxu0 0
          %3410 = vmatprep.subr.bf16.mxu0 0
          %3411 = vmatpush1.bf16.msra.mxu0 0
          %3412 = vmatprep.subr.bf16.mxu0 0
          %3413 = vmatpush1.bf16.msra.mxu0 0
          %3414 = vmatprep.subr.bf16.mxu0 0
          %3415 = vmatpush1.bf16.msra.mxu0 0
          %3416 = vmatprep.subr.bf16.mxu0 0
          %3417 = vmatpush1.bf16.msra.mxu0 0
          %3418 = vmatprep.subr.bf16.mxu0 0
          %3419 = vmatpush1.bf16.msra.mxu0 0
          %3420 = vmatprep.subr.bf16.mxu0 0
          %3421 = vmatpush1.bf16.msra.mxu0 0
          %3422 = vmatprep.subr.bf16.mxu0 0
          %3423 = vmatpush1.bf16.msra.mxu0 0
          %3424 = vmatprep.subr.bf16.mxu0 0
          %3425 = vmatpush1.bf16.msra.mxu0 0
          %3426 = vmatprep.subr.bf16.mxu0 0
          %3427 = vmatpush1.bf16.msra.mxu0 0
          %3428 = vmatprep.subr.bf16.mxu0 0
          %3429 = vmatpush1.bf16.msra.mxu0 0
          %3430 = vmatprep.mubr.bf16.mxu0 0
          %3431 = vmatmul.mubr.bf16.gmra.mrb[0].mxu0 %v2945
          %v3432 = vpop.f32.mrb[0].mxu0
          %v3433 = vadd.f32 0.0, %v3432
          %v3434 = vpop.f32.mrb[0].mxu0
          %v3435 = vadd.f32 0.0, %v3434
          %v3436 = vpop.f32.mrb[0].mxu0
          %v3437 = vpop.f32.mrb[0].mxu0
          %3438 = vdwg.mxu0
          %3439 = vst [vmem:[#allocation7] sm:$0xff] %v2982
          %3440 = vst [vmem:[#allocation7 + $0x8] sm:$0xff] %v2984
          %3441 = vst [vmem:[#allocation7 + $0x10] sm:$0xff] %v3023
          %3442 = vst [vmem:[#allocation7 + $0x18] sm:$0xff] %v3025
          %3443 = vst [vmem:[#allocation7 + $0x20] sm:$0xff] %v3064
          %3444 = vst [vmem:[#allocation7 + $0x28] sm:$0xff] %v3066
          %3445 = vst [vmem:[#allocation7 + $0x30] sm:$0xff] %v3105
          %3446 = vst [vmem:[#allocation7 + $0x38] sm:$0xff] %v3107
          %3447 = vst [vmem:[#allocation7 + $0x40] sm:$0xff] %v3146
          %3448 = vst [vmem:[#allocation7 + $0x48] sm:$0xff] %v3148
          %3449 = vst [vmem:[#allocation7 + $0x50] sm:$0xff] %v3187
          %3450 = vst [vmem:[#allocation7 + $0x58] sm:$0xff] %v3189
          %3451 = vst [vmem:[#allocation7 + $0x60] sm:$0xff] %v3228
          %3452 = vst [vmem:[#allocation7 + $0x68] sm:$0xff] %v3230
          %3453 = vst [vmem:[#allocation7 + $0x70] sm:$0xff] %v3269
          %3454 = vst [vmem:[#allocation7 + $0x78] sm:$0xff] %v3271
          %3455 = vst [vmem:[#allocation7 + $0x80] sm:$0xff] %v3310
          %3456 = vst [vmem:[#allocation7 + $0x88] sm:$0xff] %v3312
          %3457 = vst [vmem:[#allocation7 + $0x90] sm:$0xff] %v3351
          %3458 = vst [vmem:[#allocation7 + $0x98] sm:$0xff] %v3353
          %3459 = vst [vmem:[#allocation7 + $0xa0] sm:$0xff] %v3392
          %3460 = vst [vmem:[#allocation7 + $0xa8] sm:$0xff] %v3394
          %3461 = vst [vmem:[#allocation7 + $0xb0] sm:$0xff] %v3433
          %3462 = vst [vmem:[#allocation7 + $0xb8] sm:$0xff] %v3435
        $region316: #{mistral_forward.1} parent=67 // pred_fallthru
          _
        // Predicated region
        $region317: #{mistral_forward.1} parent=67 // pred_check
          %p3463 = pneg %p327
        $region318: #{mistral_forward.1} parent=67 // pred_check_branch
          %3465 = sbr.rel (%p3463) target = $region320
        $region319: #{mistral_forward.1} parent=67 // pred_region
          %s3467 = ssub.s32 3072, 3072
          %3468 = vsyncadd [#allocation8], %s3467
          %s3470 = sshll.u32 [#allocation7], 4
          %s3471 = int_to_ptr.vmem [resolvable:$true] %s3470
          %3473 = dma.vmem_to_hbm [thread:$0]  %s3471, 3072, %s14, [#allocation8]
        $region320: #{mistral_forward.1} parent=67 // pred_fallthru
          _
        // Predicated region
        $region321: #{mistral_forward.1} parent=67 // pred_check
          %p3474 = pneg %p327
        $region322: #{mistral_forward.1} parent=67 // pred_check_branch
          %3476 = sbr.rel (%p3474) target = $region324
        $region323: #{mistral_forward.1} parent=67 // pred_region
          %3477 = dma.done [#allocation8], 3072
        $region324: #{mistral_forward.1} parent=67 // pred_fallthru
          _
      $region68: #{mistral_forward.1} parent=5 // pred_fallthru
        _
      %p3478 = scmp.le.s32.totalorder 2, %s27
      // Predicated region
      $region325: #{mistral_forward.1} parent=5 // pred_check
        %p3479 = pneg %p3478
      $region326: #{mistral_forward.1} parent=5 // pred_check_branch
        %3481 = sbr.rel (%p3479) target = $region328
      $region327: #{mistral_forward.1} parent=5 // pred_region
        %s3482 = ssub.s32 %s27, 2
      $region328: #{mistral_forward.1} parent=5 // pred_fallthru
        _
    $region6: #{mistral_forward.1} parent=1 // loop_footer
      %s31 = sadd.s32 1, %s27
    $region7: #{mistral_forward.1} parent=1 // loop_footer_branch
      %26 = sbr.rel target = $region3
    $region8: #{mistral_forward.1} parent=1 // loop_exit
      _
    %3483 = vsyncpa [#allocation8], 1
    %s3484 = scalar_lea.sflag [#allocation8], 1
    %3485 = vsyncpa %s3484, 1
  %3486 = vsyncmov [#allocation4]
  %s3487 = vpop.sfrf %3486
  %p3488 = scmp.eq.s32.totalorder %s3487, 0
  %p3489 = pneg %p3488
  %3491 = shalt.err (%p3489)

</llo_original>
